<compile_context>
chip_gen: v6e
topology: v6e:2x2x1
jax: 0.10.0
libtpu: 0.0.40
codegen_flags: <defaults>
</compile_context>

<pallas_src>
import functools

import numpy as np
import jax
import jax.numpy as jnp
from jax import lax
from jax.experimental import pallas as pl
from jax.experimental.pallas import tpu as pltpu

RES = 7      # adaptive-pool output size / fc spatial grid (fixed by the module)
SPAD = 64    # 49 spatial cells padded to 64 lanes per image
# tap t = (dh+1)*3 + (dw+1)   (== PyTorch kernel index kh*3 + kw)
_TAPS = tuple((dh, dw) for dh in (-1, 0, 1) for dw in (-1, 0, 1))


# ------------------------------------------------------------------ helpers --
def _pool_matrix(n: int) -> np.ndarray:
    """AdaptiveAvgPool1d operator (RES, n): row i averages input[start:end)."""
    P = np.zeros((RES, n), dtype=np.float32)
    for i in range(RES):
        s = (i * n) // RES
        e = -((-(i + 1) * n) // RES)          # ceil((i+1)*n/RES)
        P[i, s:e] = 1.0 / float(e - s)
    return P


def _tap_mask() -> np.ndarray:
    """(SPAD, 9): entry [p, t] is 1 iff cell p + off_t stays inside the same
    7x7 image (pad cells 49..63 are all-zero rows)."""
    m = np.zeros((SPAD, 9), dtype=np.float32)
    for p in range(RES * RES):
        i, j = divmod(p, RES)
        for t, (dh, dw) in enumerate(_TAPS):
            if 0 <= i + dh < RES and 0 <= j + dw < RES:
                m[p, t] = 1.0
    return m


# ------------------------------------------------------------------- kernel --
def _conv3x3(h, w_ref, sc_ref, sh_ref, mask_ref):
    """3x3 'same' conv + folded BN + ReLU, spatial-on-lanes layout.

    h: (Cin, L) f32 with L = tb*SPAD.  The 9 taps are gathered with XLU lane
    rotations (pltpu.roll); one full-width (9*Cin, L) mask multiply zeroes every
    tap that would read across an image boundary / outside the 7x7 grid, so the
    rotation wrap-around never leaks between images.  The tap gather stays f32
    (v5e-friendly); only the final im2col block is cast to bf16 for the MXU.
    """
    L = h.shape[-1]
    parts = []
    for dh, dw in _TAPS:
        off = dh * RES + dw
        parts.append(h if off == 0 else pltpu.roll(h, (-off) % L, axis=1))
    gmat = jnp.concatenate(parts, axis=0) * mask_ref[...]        # (9*Cin, L) f32
    out = jnp.dot(w_ref[...], gmat.astype(jnp.bfloat16),
                  preferred_element_type=jnp.float32)            # (Cout, L) f32
    return jnp.maximum(out * sc_ref[...] + sh_ref[...], 0.0)


def gaussian_attention_kernel(x_ref, poolT_ref, seg_ref, m2_ref, m3_ref,
                              w1_ref, sc1_ref, sh1_ref,
                              w2_ref, sc2_ref, sh2_ref,
                              w3_ref, sc3_ref, sh3_ref,
                              wfc_ref, o_ref,
                              *, natt, resolution, sigma_ratio):
    f32, bf16 = jnp.float32, jnp.bfloat16
    c16 = w3_ref.shape[0]

    # ---- AdaptiveAvgPool2d((7,7)): one MXU dot; the block-diagonal pooling
    #      operator emits the (C, tb*64) spatial-on-lanes layout directly, so
    #      the kernel never transposes.
    pooled = jnp.dot(x_ref[...], poolT_ref[...], preferred_element_type=f32)

    # ---- Conv2d 1x1 (bias=False) + folded BN + ReLU.
    h1 = jnp.dot(w1_ref[...], pooled.astype(bf16), preferred_element_type=f32)
    h1 = jnp.maximum(h1 * sc1_ref[...] + sh1_ref[...], 0.0)      # (C, L)

    # ---- two Conv2d 3x3 (pad=1) + BN + ReLU (im2col, one wide-K dot each).
    h2 = _conv3x3(h1, w2_ref, sc2_ref, sh2_ref, m2_ref)          # (C/4 , L)
    h3 = _conv3x3(h2, w3_ref, sc3_ref, sh3_ref, m3_ref)          # (C/16, L)

    # ---- fc (bias=False) + L2 normalization, fused into one contraction.
    #      Row 0 of `stacked` is the per-lane sum of squares; rows 1.. are the
    #      channel-contracted fc products.  One (1+K, L) @ (L, tb) dot reduces
    #      both over the 49 real cells of every image (seg has zero columns at
    #      pad lanes, fc weights are zero-padded there too).
    sumsq = jnp.sum(h3 * h3, axis=0, keepdims=True)              # (1, L)
    red = jnp.sum(wfc_ref[...] * h3[None], axis=1)               # (K, L)
    stacked = jnp.concatenate([sumsq, red], axis=0)              # (1+K, L)
    dotted = jnp.dot(stacked, seg_ref[...],
                     preferred_element_type=f32)                 # (1+K, tb)
    y = jnp.transpose(dotted)                                    # (tb, 1+K) tiny
    dim = float(RES * RES * c16)
    scale = dim ** 0.5 * lax.rsqrt(y[:, 0:1] + 1e-24)            # x*sqrt(D)/||x||
    fc = y[:, 1:] * scale                                        # (tb, 4*natt)

    # ---- Gaussian attention maps, lane-dense on the (padded) resolution grid.
    #      fc columns are grouped j-major (mx block, my block, r block, rho
    #      block); within a block the column index is the attention head a.
    res = float(resolution)
    mxc = fc[:, 0 * natt:1 * natt][:, :, None]                   # (tb, natt, 1)
    myc = fc[:, 1 * natt:2 * natt][:, :, None]
    rc = fc[:, 2 * natt:3 * natt][:, :, None]
    rhoc = fc[:, 3 * natt:4 * natt][:, :, None]

    m_x = jax.nn.sigmoid(mxc) * res - 0.5
    m_y = jax.nn.sigmoid(myc) * res - 0.5
    t_r = (jax.nn.sigmoid(rc) * 2.0 - 1.0) * float(np.log(2.0))
    r = jnp.exp(t_r)
    inv_r = jnp.exp(-t_r)                   # EUP exp instead of a VALU divide
    rho = jax.nn.sigmoid(rhoc) * 1.8 - 0.9
    sigma = res / float(sigma_ratio)
    # exact 1/(1-rho^2): it feeds an exponent (errors amplify ~exp(spread*eps))
    # and the array is only tb*natt elements, so approx=True would buy nothing.
    denom = (-0.5 / (sigma * sigma + 4.9e-11)) / (1.0 - rho * rho)

    sp = o_ref.shape[-1]
    s_f = lax.broadcasted_iota(jnp.int32, (1, 1, sp), 2).astype(f32)
    i_f = jnp.floor(s_f / res)
    j_f = s_f - res * i_f
    valid = (s_f < float(resolution * resolution)).astype(f32)   # zero pad lanes

    dx = m_x - i_f                                               # (tb, natt, sp)
    dy = m_y - j_f
    att = (jnp.exp(denom * (dx * dx * r + dy * dy * inv_r
                            - 2.0 * rho * dx * dy)) + 1e-12) * valid
    # exact reciprocal keeps the sum-to-one invariant at f32 precision.
    att = att * pl.reciprocal(jnp.sum(att, axis=-1, keepdims=True), approx=False)
    o_ref[...] = att


# ------------------------------------------------------------------ wrapper --
def gaussian_attention(x_nchw, params, *, natt=1, resolution=RES,
                       sigma_ratio=1.0, block_b=4):
    B, C, H, W = x_nchw.shape
    C4, C16 = C // 4, C // 16
    HW = H * W
    HWp = -(-HW // 128) * 128          # lane-pad the image so blocks stay aligned
    K = 4 * natt
    SP = ((resolution * resolution + 63) // 64) * 64             # padded output lanes

    # batch blocking: grid of nblk steps, tb images per step.
    # v7x: block_b = ceil(B/2) -> one grid step per TensorCore; v5e/v6e: block_b = B.
    tb = max(1, min(block_b, B))
    nblk = -(-B // tb)
    Bp = nblk * tb
    L = tb * SPAD

    # ---- x: channel-major (C, Bp*HWp) bf16 so the pool dot lands directly in
    #      the spatial-on-lanes layout (one cheap XLA transpose outside the kernel).
    x = x_nchw.reshape(B, C, HW)
    if Bp != B:
        x = jnp.concatenate([x, jnp.zeros((Bp - B, C, HW), x.dtype)], axis=0)
    x = jnp.pad(x, ((0, 0), (0, 0), (0, HWp - HW)))
    x = jnp.transpose(x, (1, 0, 2)).reshape(C, Bp * HWp).astype(jnp.bfloat16)

    # ---- block-diagonal pooling operator (tb*HWp, tb*SPAD): column b*64+p
    #      averages the adaptive-pool window of cell p of image b; pad columns 0.
    pk = np.kron(_pool_matrix(H), _pool_matrix(W))               # (49, H*W)
    pblk = np.zeros((HWp, SPAD), np.float32)
    pblk[:HW, :RES * RES] = pk.T
    poolT = jnp.asarray(np.kron(np.eye(tb, dtype=np.float32), pblk), jnp.bfloat16)

    # ---- tap masks (one full-width multiply per conv layer) and the batch
    #      segment matrix used by the fused norm / fc reduction.
    tm = _tap_mask()                                             # (SPAD, 9)

    def tile_mask(cin):
        return jnp.asarray(np.tile(np.repeat(tm.T, cin, axis=0), (1, tb)),
                           jnp.float32)                          # (9*cin, L)

    mask2 = tile_mask(C)
    mask3 = tile_mask(C4)
    segblk = np.zeros((SPAD, 1), np.float32)
    segblk[:RES * RES, 0] = 1.0
    seg = jnp.asarray(np.kron(np.eye(tb, dtype=np.float32), segblk), jnp.float32)

    # ---- weights: PyTorch OIHW -> (Cout, 9*Cin), column order (kh*3+kw)*Cin+c;
    #      BN folded as per-channel (Cout,1) affine; fc rows regrouped j-major
    #      (mx|my|r|rho blocks), spatially zero-padded and tiled across tb.
    w1k = jnp.asarray(params["w1"][:, :, 0, 0], jnp.bfloat16)                # (C, C)
    w2f = jnp.asarray(jnp.transpose(params["w2"], (0, 2, 3, 1)).reshape(C4, 9 * C),
                      jnp.bfloat16)
    w3f = jnp.asarray(jnp.transpose(params["w3"], (0, 2, 3, 1)).reshape(C16, 9 * C4),
                      jnp.bfloat16)
    col = lambda v: v.reshape(-1, 1).astype(jnp.float32)
    sc1c, sh1c = col(params["sc1"]), col(params["sh1"])
    sc2c, sh2c = col(params["sc2"]), col(params["sh2"])
    sc3c, sh3c = col(params["sc3"]), col(params["sh3"])

    wfc = np.asarray(params["wfc"], np.float32)                              # (K, 49*C16)
    wfc = wfc.reshape(natt, 4, C16, RES * RES).transpose(1, 0, 2, 3)
    wfc = wfc.reshape(K, C16, RES * RES)
    wfc_pad = np.zeros((K, C16, SPAD), np.float32)
    wfc_pad[:, :, :RES * RES] = wfc
    wfck = jnp.asarray(np.tile(wfc_pad, (1, 1, tb)), jnp.float32)            # (K, C16, L)

    kern = functools.partial(gaussian_attention_kernel, natt=natt,
                             resolution=resolution, sigma_ratio=sigma_ratio)

    def full(a):
        return pl.BlockSpec(tuple(a.shape), lambda b, _n=a.ndim: (0,) * _n)

    out = pl.pallas_call(
        kern,
        out_shape=jax.ShapeDtypeStruct((Bp, natt, SP), jnp.float32),
        grid=(nblk,),
        in_specs=[pl.BlockSpec((C, tb * HWp), lambda b: (0, b)),
                  full(poolT), full(seg), full(mask2), full(mask3),
                  full(w1k), full(sc1c), full(sh1c),
                  full(w2f), full(sc2c), full(sh2c),
                  full(w3f), full(sc3c), full(sh3c),
                  full(wfck)],
        out_specs=pl.BlockSpec((tb, natt, SP), lambda b: (b, 0, 0)),
        compiler_params=pltpu.CompilerParams(
            dimension_semantics=("parallel",),
            vmem_limit_bytes=32 * 1024 * 1024),
    )(x, poolT, seg, mask2, mask3,
      w1k, sc1c, sh1c, w2f, sc2c, sh2c, w3f, sc3c, sh3c, wfck)

    out = out[:B, :, :resolution * resolution]
    return out.reshape(B, natt, resolution, resolution)


# ------------------------------------------------------ parameters & reference
def make_params(key, nchannel, natt):
    """Deterministic synthetic parameters (PyTorch layouts: OIHW, (out,in))."""
    C, C4, C16 = nchannel, nchannel // 4, nchannel // 16
    D = RES * RES * C16
    k = jax.random.split(key, 10)
    return dict(
        w1=0.2 * jax.random.normal(k[0], (C, C, 1, 1), jnp.float32),
        w2=0.2 * jax.random.normal(k[1], (C4, C, 3, 3), jnp.float32),
        w3=0.2 * jax.random.normal(k[2], (C16, C4, 3, 3), jnp.float32),
        wfc=0.2 * jax.random.normal(k[3], (4 * natt, D), jnp.float32),
        # eval-mode BatchNorm folded to per-channel affine (scale, shift)
        sc1=1.0 + 0.1 * jax.random.normal(k[4], (C,), jnp.float32),
        sh1=0.1 * jax.random.normal(k[5], (C,), jnp.float32),
        sc2=1.0 + 0.1 * jax.random.normal(k[6], (C4,), jnp.float32),
        sh2=0.1 * jax.random.normal(k[7], (C4,), jnp.float32),
        sc3=1.0 + 0.1 * jax.random.normal(k[8], (C16,), jnp.float32),
        sh3=0.1 * jax.random.normal(k[9], (C16,), jnp.float32),
    )


def reference(x, p, natt, resolution=RES, sigma_ratio=1.0):
    """Pure-JAX f32 reference mirroring the PyTorch forward (NCHW, real convs)."""
    B, C, H, W = x.shape
    x = x.astype(jnp.float32)
    pooled = x.reshape(B, C, RES, H // RES, RES, W // RES).mean(axis=(3, 5))

    def affine_relu(h, sc, sh):
        return jax.nn.relu(h * sc[None, :, None, None] + sh[None, :, None, None])

    h = jnp.einsum("bchw,oc->bohw", pooled, p["w1"][:, :, 0, 0])
    h = affine_relu(h, p["sc1"], p["sh1"])
    h = lax.conv_general_dilated(h, p["w2"], (1, 1), "SAME",
                                 dimension_numbers=("NCHW", "OIHW", "NCHW"))
    h = affine_relu(h, p["sc2"], p["sh2"])
    h = lax.conv_general_dilated(h, p["w3"], (1, 1), "SAME",
                                 dimension_numbers=("NCHW", "OIHW", "NCHW"))
    h = affine_relu(h, p["sc3"], p["sh3"])

    v = h.reshape(B, -1)
    v = v * (v.shape[1] ** 0.5) / jnp.linalg.norm(v, axis=1, keepdims=True)
    y = (v @ p["wfc"].T).reshape(B, natt, 4)

    m_x = jax.nn.sigmoid(y[:, :, 0]) * float(resolution) - 0.5
    m_y = jax.nn.sigmoid(y[:, :, 1]) * float(resolution) - 0.5
    r = jnp.exp((jax.nn.sigmoid(y[:, :, 2]) * 2.0 - 1.0) * float(np.log(2.0)))
    rho = jax.nn.sigmoid(y[:, :, 3]) * 1.8 - 0.9
    sigma = float(resolution) / float(sigma_ratio)
    denom = -0.5 / (1.0 - rho ** 2) / (sigma ** 2 + 4.9e-11)

    ii = jnp.arange(resolution, dtype=jnp.float32).reshape(1, 1, resolution, 1)
    jj = jnp.arange(resolution, dtype=jnp.float32).reshape(1, 1, 1, resolution)
    dx = m_x[:, :, None, None] - ii
    dy = m_y[:, :, None, None] - jj
    att = jnp.exp(denom[:, :, None, None] * (dx ** 2 * r[:, :, None, None]
                                             + dy ** 2 / r[:, :, None, None]
                                             - 2.0 * rho[:, :, None, None] * dx * dy)) + 1e-12
    att = att / att.sum(axis=(2, 3), keepdims=True)
    return att


# --------------------------------------------------------------------- main --
if __name__ == "__main__":
    B, C, H, W = 8, 32, 14, 14      # nchannel=32 (divisible by 16), spatial 14x14
    natt = 2

    key = jax.random.PRNGKey(0)
    kx, kp = jax.random.split(key)
    x = jax.random.normal(kx, (B, C, H, W), jnp.float32)
    params = make_params(kp, C, natt)

    # block_b=4 -> grid=(2,): one step per v7x TensorCore (use block_b=B on v5e/v6e).
    out = gaussian_attention(x, params, natt=natt, block_b=4)
    out = jax.block_until_ready(out)

    ref = reference(x, params, natt)
    assert out.shape == (B, natt, RES, RES)
    # bf16 matmul operands (pool / convs) -> wider value tolerance; the f32 tail
    # keeps the spatial sum-to-one invariant tight.
    np.testing.assert_allclose(np.asarray(out), np.asarray(ref),
                               rtol=5e-2, atol=1e-5)
    np.testing.assert_allclose(np.asarray(out).sum(axis=(2, 3)), 1.0,
                               rtol=0.0, atol=1e-4)

    print("KERNEL_OK")
</pallas_src>

<mosaic_0001>
module attributes {stable_mosaic.version = 11 : i64} {
  func.func @gaussian_attention_kernel(%arg0: i32, %arg1: memref<32x1024xbf16, #tpu.memory_space<vmem>>, %arg2: memref<1024x256xbf16, #tpu.memory_space<vmem>>, %arg3: memref<256x4xf32, #tpu.memory_space<vmem>>, %arg4: memref<288x256xf32, #tpu.memory_space<vmem>>, %arg5: memref<72x256xf32, #tpu.memory_space<vmem>>, %arg6: memref<32x32xbf16, #tpu.memory_space<vmem>>, %arg7: memref<32x1xf32, #tpu.memory_space<vmem>>, %arg8: memref<32x1xf32, #tpu.memory_space<vmem>>, %arg9: memref<8x288xbf16, #tpu.memory_space<vmem>>, %arg10: memref<8x1xf32, #tpu.memory_space<vmem>>, %arg11: memref<8x1xf32, #tpu.memory_space<vmem>>, %arg12: memref<2x72xbf16, #tpu.memory_space<vmem>>, %arg13: memref<2x1xf32, #tpu.memory_space<vmem>>, %arg14: memref<2x1xf32, #tpu.memory_space<vmem>>, %arg15: memref<8x2x256xf32, #tpu.memory_space<vmem>>, %arg16: memref<4x2x64xf32, #tpu.memory_space<vmem>>) attributes {dimension_semantics = [#tpu.dimension_semantics<parallel>], iteration_bounds = array<i64: 2>, scalar_prefetch = 0 : i64, scratch_operands = 0 : i64, tpu.core_type = #tpu.core_type<tc>, window_params = [{transform_indices = @transform_0, window_bounds = array<i64: 32, 1024>}, {pipeline_mode = #tpu.pipeline_mode<synchronous>, transform_indices = @transform_1, window_bounds = array<i64: 1024, 256>}, {pipeline_mode = #tpu.pipeline_mode<synchronous>, transform_indices = @transform_2, window_bounds = array<i64: 256, 4>}, {pipeline_mode = #tpu.pipeline_mode<synchronous>, transform_indices = @transform_3, window_bounds = array<i64: 288, 256>}, {pipeline_mode = #tpu.pipeline_mode<synchronous>, transform_indices = @transform_4, window_bounds = array<i64: 72, 256>}, {pipeline_mode = #tpu.pipeline_mode<synchronous>, transform_indices = @transform_5, window_bounds = array<i64: 32, 32>}, {pipeline_mode = #tpu.pipeline_mode<synchronous>, transform_indices = @transform_6, window_bounds = array<i64: 32, 1>}, {pipeline_mode = #tpu.pipeline_mode<synchronous>, transform_indices = @transform_7, window_bounds = array<i64: 32, 1>}, {pipeline_mode = #tpu.pipeline_mode<synchronous>, transform_indices = @transform_8, window_bounds = array<i64: 8, 288>}, {pipeline_mode = #tpu.pipeline_mode<synchronous>, transform_indices = @transform_9, window_bounds = array<i64: 8, 1>}, {pipeline_mode = #tpu.pipeline_mode<synchronous>, transform_indices = @transform_10, window_bounds = array<i64: 8, 1>}, {pipeline_mode = #tpu.pipeline_mode<synchronous>, transform_indices = @transform_11, window_bounds = array<i64: 2, 72>}, {pipeline_mode = #tpu.pipeline_mode<synchronous>, transform_indices = @transform_12, window_bounds = array<i64: 2, 1>}, {pipeline_mode = #tpu.pipeline_mode<synchronous>, transform_indices = @transform_13, window_bounds = array<i64: 2, 1>}, {pipeline_mode = #tpu.pipeline_mode<synchronous>, transform_indices = @transform_14, window_bounds = array<i64: 8, 2, 256>}, {transform_indices = @transform_15, window_bounds = array<i64: 4, 2, 64>}]} {
    %c0 = arith.constant 0 : index
    %c0_0 = arith.constant 0 : index
    %0 = vector.load %arg1[%c0, %c0_0] : memref<32x1024xbf16, #tpu.memory_space<vmem>>, vector<32x1024xbf16>
    %c0_1 = arith.constant 0 : index
    %c0_2 = arith.constant 0 : index
    %1 = vector.load %arg2[%c0_1, %c0_2] : memref<1024x256xbf16, #tpu.memory_space<vmem>>, vector<1024x256xbf16>
    %cst = arith.constant dense<0.000000e+00> : vector<32x256xf32>
    %2 = tpu.matmul %0, %1, %cst {dimension_numbers = #tpu.dot_dimension_numbers<[1], [0], [0], [1], [0, 0, 1, 1], [], []>} : vector<32x1024xbf16>, vector<1024x256xbf16>, vector<32x256xf32> -> vector<32x256xf32>
    %c0_3 = arith.constant 0 : index
    %c0_4 = arith.constant 0 : index
    %3 = vector.load %arg6[%c0_3, %c0_4] : memref<32x32xbf16, #tpu.memory_space<vmem>>, vector<32x32xbf16>
    %4 = arith.truncf %2 : vector<32x256xf32> to vector<32x256xbf16>
    %cst_5 = arith.constant dense<0.000000e+00> : vector<32x256xf32>
    %5 = tpu.matmul %3, %4, %cst_5 {dimension_numbers = #tpu.dot_dimension_numbers<[1], [0], [0], [1], [0, 0, 1, 1], [], []>} : vector<32x32xbf16>, vector<32x256xbf16>, vector<32x256xf32> -> vector<32x256xf32>
    %c0_6 = arith.constant 0 : index
    %c0_7 = arith.constant 0 : index
    %6 = vector.load %arg7[%c0_6, %c0_7] : memref<32x1xf32, #tpu.memory_space<vmem>>, vector<32x1xf32>
    %7 = vector.broadcast %6 : vector<32x1xf32> to vector<32x256xf32>
    %8 = arith.mulf %5, %7 : vector<32x256xf32>
    %c0_8 = arith.constant 0 : index
    %c0_9 = arith.constant 0 : index
    %9 = vector.load %arg8[%c0_8, %c0_9] : memref<32x1xf32, #tpu.memory_space<vmem>>, vector<32x1xf32>
    %10 = vector.broadcast %9 : vector<32x1xf32> to vector<32x256xf32>
    %11 = arith.addf %8, %10 : vector<32x256xf32>
    %cst_10 = arith.constant 0.000000e+00 : f32
    %12 = vector.broadcast %cst_10 : f32 to vector<32x256xf32>
    %13 = arith.maximumf %11, %12 : vector<32x256xf32>
    %c8_i32 = arith.constant 8 : i32
    %14 = tpu.dynamic_rotate %13 by %c8_i32 dim 1 : vector<32x256xf32>, i32 -> vector<32x256xf32>
    %c7_i32 = arith.constant 7 : i32
    %15 = tpu.dynamic_rotate %13 by %c7_i32 dim 1 : vector<32x256xf32>, i32 -> vector<32x256xf32>
    %c6_i32 = arith.constant 6 : i32
    %16 = tpu.dynamic_rotate %13 by %c6_i32 dim 1 : vector<32x256xf32>, i32 -> vector<32x256xf32>
    %c1_i32 = arith.constant 1 : i32
    %17 = tpu.dynamic_rotate %13 by %c1_i32 dim 1 : vector<32x256xf32>, i32 -> vector<32x256xf32>
    %c255_i32 = arith.constant 255 : i32
    %18 = tpu.dynamic_rotate %13 by %c255_i32 dim 1 : vector<32x256xf32>, i32 -> vector<32x256xf32>
    %c250_i32 = arith.constant 250 : i32
    %19 = tpu.dynamic_rotate %13 by %c250_i32 dim 1 : vector<32x256xf32>, i32 -> vector<32x256xf32>
    %c249_i32 = arith.constant 249 : i32
    %20 = tpu.dynamic_rotate %13 by %c249_i32 dim 1 : vector<32x256xf32>, i32 -> vector<32x256xf32>
    %c248_i32 = arith.constant 248 : i32
    %21 = tpu.dynamic_rotate %13 by %c248_i32 dim 1 : vector<32x256xf32>, i32 -> vector<32x256xf32>
    %22 = tpu.concatenate %14, %15, %16, %17, %13, %18, %19, %20, %21 in 0 : vector<32x256xf32>, vector<32x256xf32>, vector<32x256xf32>, vector<32x256xf32>, vector<32x256xf32>, vector<32x256xf32>, vector<32x256xf32>, vector<32x256xf32>, vector<32x256xf32> -> vector<288x256xf32>
    %c0_11 = arith.constant 0 : index
    %c0_12 = arith.constant 0 : index
    %23 = vector.load %arg4[%c0_11, %c0_12] : memref<288x256xf32, #tpu.memory_space<vmem>>, vector<288x256xf32>
    %24 = arith.mulf %22, %23 : vector<288x256xf32>
    %c0_13 = arith.constant 0 : index
    %c0_14 = arith.constant 0 : index
    %25 = vector.load %arg9[%c0_13, %c0_14] : memref<8x288xbf16, #tpu.memory_space<vmem>>, vector<8x288xbf16>
    %26 = arith.truncf %24 : vector<288x256xf32> to vector<288x256xbf16>
    %cst_15 = arith.constant dense<0.000000e+00> : vector<8x256xf32>
    %27 = tpu.matmul %25, %26, %cst_15 {dimension_numbers = #tpu.dot_dimension_numbers<[1], [0], [0], [1], [0, 0, 1, 1], [], []>} : vector<8x288xbf16>, vector<288x256xbf16>, vector<8x256xf32> -> vector<8x256xf32>
    %c0_16 = arith.constant 0 : index
    %c0_17 = arith.constant 0 : index
    %28 = vector.load %arg10[%c0_16, %c0_17] : memref<8x1xf32, #tpu.memory_space<vmem>>, vector<8x1xf32>
    %29 = vector.broadcast %28 : vector<8x1xf32> to vector<8x256xf32>
    %30 = arith.mulf %27, %29 : vector<8x256xf32>
    %c0_18 = arith.constant 0 : index
    %c0_19 = arith.constant 0 : index
    %31 = vector.load %arg11[%c0_18, %c0_19] : memref<8x1xf32, #tpu.memory_space<vmem>>, vector<8x1xf32>
    %32 = vector.broadcast %31 : vector<8x1xf32> to vector<8x256xf32>
    %33 = arith.addf %30, %32 : vector<8x256xf32>
    %cst_20 = arith.constant 0.000000e+00 : f32
    %34 = vector.broadcast %cst_20 : f32 to vector<8x256xf32>
    %35 = arith.maximumf %33, %34 : vector<8x256xf32>
    %c8_i32_21 = arith.constant 8 : i32
    %36 = tpu.dynamic_rotate %35 by %c8_i32_21 dim 1 : vector<8x256xf32>, i32 -> vector<8x256xf32>
    %c7_i32_22 = arith.constant 7 : i32
    %37 = tpu.dynamic_rotate %35 by %c7_i32_22 dim 1 : vector<8x256xf32>, i32 -> vector<8x256xf32>
    %c6_i32_23 = arith.constant 6 : i32
    %38 = tpu.dynamic_rotate %35 by %c6_i32_23 dim 1 : vector<8x256xf32>, i32 -> vector<8x256xf32>
    %c1_i32_24 = arith.constant 1 : i32
    %39 = tpu.dynamic_rotate %35 by %c1_i32_24 dim 1 : vector<8x256xf32>, i32 -> vector<8x256xf32>
    %c255_i32_25 = arith.constant 255 : i32
    %40 = tpu.dynamic_rotate %35 by %c255_i32_25 dim 1 : vector<8x256xf32>, i32 -> vector<8x256xf32>
    %c250_i32_26 = arith.constant 250 : i32
    %41 = tpu.dynamic_rotate %35 by %c250_i32_26 dim 1 : vector<8x256xf32>, i32 -> vector<8x256xf32>
    %c249_i32_27 = arith.constant 249 : i32
    %42 = tpu.dynamic_rotate %35 by %c249_i32_27 dim 1 : vector<8x256xf32>, i32 -> vector<8x256xf32>
    %c248_i32_28 = arith.constant 248 : i32
    %43 = tpu.dynamic_rotate %35 by %c248_i32_28 dim 1 : vector<8x256xf32>, i32 -> vector<8x256xf32>
    %44 = tpu.concatenate %36, %37, %38, %39, %35, %40, %41, %42, %43 in 0 : vector<8x256xf32>, vector<8x256xf32>, vector<8x256xf32>, vector<8x256xf32>, vector<8x256xf32>, vector<8x256xf32>, vector<8x256xf32>, vector<8x256xf32>, vector<8x256xf32> -> vector<72x256xf32>
    %c0_29 = arith.constant 0 : index
    %c0_30 = arith.constant 0 : index
    %45 = vector.load %arg5[%c0_29, %c0_30] : memref<72x256xf32, #tpu.memory_space<vmem>>, vector<72x256xf32>
    %46 = arith.mulf %44, %45 : vector<72x256xf32>
    %c0_31 = arith.constant 0 : index
    %c0_32 = arith.constant 0 : index
    %47 = vector.load %arg12[%c0_31, %c0_32] : memref<2x72xbf16, #tpu.memory_space<vmem>>, vector<2x72xbf16>
    %48 = arith.truncf %46 : vector<72x256xf32> to vector<72x256xbf16>
    %cst_33 = arith.constant dense<0.000000e+00> : vector<2x256xf32>
    %49 = tpu.matmul %47, %48, %cst_33 {dimension_numbers = #tpu.dot_dimension_numbers<[1], [0], [0], [1], [0, 0, 1, 1], [], []>} : vector<2x72xbf16>, vector<72x256xbf16>, vector<2x256xf32> -> vector<2x256xf32>
    %c0_34 = arith.constant 0 : index
    %c0_35 = arith.constant 0 : index
    %50 = vector.load %arg13[%c0_34, %c0_35] : memref<2x1xf32, #tpu.memory_space<vmem>>, vector<2x1xf32>
    %51 = vector.broadcast %50 : vector<2x1xf32> to vector<2x256xf32>
    %52 = arith.mulf %49, %51 : vector<2x256xf32>
    %c0_36 = arith.constant 0 : index
    %c0_37 = arith.constant 0 : index
    %53 = vector.load %arg14[%c0_36, %c0_37] : memref<2x1xf32, #tpu.memory_space<vmem>>, vector<2x1xf32>
    %54 = vector.broadcast %53 : vector<2x1xf32> to vector<2x256xf32>
    %55 = arith.addf %52, %54 : vector<2x256xf32>
    %cst_38 = arith.constant 0.000000e+00 : f32
    %56 = vector.broadcast %cst_38 : f32 to vector<2x256xf32>
    %57 = arith.maximumf %55, %56 : vector<2x256xf32>
    %58 = arith.mulf %57, %57 : vector<2x256xf32>
    %cst_39 = arith.constant dense<0.000000e+00> : vector<256xf32>
    %59 = vector.multi_reduction <add>, %58, %cst_39 [0] : vector<2x256xf32> to vector<256xf32>
    %60 = vector.shape_cast %59 : vector<256xf32> to vector<1x256xf32>
    %c0_40 = arith.constant 0 : index
    %c0_41 = arith.constant 0 : index
    %c0_42 = arith.constant 0 : index
    %61 = vector.load %arg15[%c0_40, %c0_41, %c0_42] : memref<8x2x256xf32, #tpu.memory_space<vmem>>, vector<8x2x256xf32>
    %62 = vector.shape_cast %57 : vector<2x256xf32> to vector<1x2x256xf32>
    %63 = vector.broadcast %62 : vector<1x2x256xf32> to vector<8x2x256xf32>
    %64 = arith.mulf %61, %63 : vector<8x2x256xf32>
    %cst_43 = arith.constant dense<0.000000e+00> : vector<8x256xf32>
    %65 = vector.multi_reduction <add>, %64, %cst_43 [1] : vector<8x2x256xf32> to vector<8x256xf32>
    %66 = tpu.concatenate %60, %65 in 0 : vector<1x256xf32>, vector<8x256xf32> -> vector<9x256xf32>
    %c0_44 = arith.constant 0 : index
    %c0_45 = arith.constant 0 : index
    %67 = vector.load %arg3[%c0_44, %c0_45] : memref<256x4xf32, #tpu.memory_space<vmem>>, vector<256x4xf32>
    %cst_46 = arith.constant dense<0.000000e+00> : vector<9x4xf32>
    %68 = tpu.matmul %66, %67, %cst_46 {dimension_numbers = #tpu.dot_dimension_numbers<[1], [0], [0], [1], [0, 0, 1, 1], [], []>} : vector<9x256xf32>, vector<256x4xf32>, vector<9x4xf32> -> vector<9x4xf32>
    %69 = tpu.transpose %68, [1, 0] : vector<9x4xf32> -> vector<4x9xf32>
    %70 = vector.extract_strided_slice %69 {offsets = [0, 0], sizes = [4, 1], strides = [1, 1]} : vector<4x9xf32> to vector<4x1xf32>
    %cst_47 = arith.constant 1.000000e-24 : f32
    %71 = vector.broadcast %cst_47 : f32 to vector<4x1xf32>
    %72 = arith.addf %70, %71 : vector<4x1xf32>
    %73 = math.rsqrt %72 : vector<4x1xf32>
    %cst_48 = arith.constant 9.89949512 : f32
    %74 = vector.broadcast %cst_48 : f32 to vector<4x1xf32>
    %75 = arith.mulf %74, %73 : vector<4x1xf32>
    %76 = vector.extract_strided_slice %69 {offsets = [0, 1], sizes = [4, 8], strides = [1, 1]} : vector<4x9xf32> to vector<4x8xf32>
    %77 = vector.broadcast %75 : vector<4x1xf32> to vector<4x8xf32>
    %78 = arith.mulf %76, %77 : vector<4x8xf32>
    %79 = vector.extract_strided_slice %78 {offsets = [0, 0], sizes = [4, 2], strides = [1, 1]} : vector<4x8xf32> to vector<4x2xf32>
    %80 = vector.shape_cast %79 : vector<4x2xf32> to vector<4x2x1xf32>
    %81 = vector.extract_strided_slice %78 {offsets = [0, 2], sizes = [4, 2], strides = [1, 1]} : vector<4x8xf32> to vector<4x2xf32>
    %82 = vector.shape_cast %81 : vector<4x2xf32> to vector<4x2x1xf32>
    %83 = vector.extract_strided_slice %78 {offsets = [0, 4], sizes = [4, 2], strides = [1, 1]} : vector<4x8xf32> to vector<4x2xf32>
    %84 = vector.shape_cast %83 : vector<4x2xf32> to vector<4x2x1xf32>
    %85 = vector.extract_strided_slice %78 {offsets = [0, 6], sizes = [4, 2], strides = [1, 1]} : vector<4x8xf32> to vector<4x2xf32>
    %86 = vector.shape_cast %85 : vector<4x2xf32> to vector<4x2x1xf32>
    %87 = arith.negf %80 : vector<4x2x1xf32>
    %88 = math.exp %87 : vector<4x2x1xf32>
    %cst_49 = arith.constant 1.000000e+00 : f32
    %89 = vector.broadcast %cst_49 : f32 to vector<4x2x1xf32>
    %90 = arith.addf %89, %88 : vector<4x2x1xf32>
    %91 = arith.divf %89, %90 : vector<4x2x1xf32>
    %cst_50 = arith.constant 7.000000e+00 : f32
    %92 = vector.broadcast %cst_50 : f32 to vector<4x2x1xf32>
    %93 = arith.mulf %91, %92 : vector<4x2x1xf32>
    %cst_51 = arith.constant 5.000000e-01 : f32
    %94 = vector.broadcast %cst_51 : f32 to vector<4x2x1xf32>
    %95 = arith.subf %93, %94 : vector<4x2x1xf32>
    %96 = arith.negf %82 : vector<4x2x1xf32>
    %97 = math.exp %96 : vector<4x2x1xf32>
    %cst_52 = arith.constant 1.000000e+00 : f32
    %98 = vector.broadcast %cst_52 : f32 to vector<4x2x1xf32>
    %99 = arith.addf %98, %97 : vector<4x2x1xf32>
    %100 = arith.divf %98, %99 : vector<4x2x1xf32>
    %cst_53 = arith.constant 7.000000e+00 : f32
    %101 = vector.broadcast %cst_53 : f32 to vector<4x2x1xf32>
    %102 = arith.mulf %100, %101 : vector<4x2x1xf32>
    %cst_54 = arith.constant 5.000000e-01 : f32
    %103 = vector.broadcast %cst_54 : f32 to vector<4x2x1xf32>
    %104 = arith.subf %102, %103 : vector<4x2x1xf32>
    %105 = arith.negf %84 : vector<4x2x1xf32>
    %106 = math.exp %105 : vector<4x2x1xf32>
    %cst_55 = arith.constant 1.000000e+00 : f32
    %107 = vector.broadcast %cst_55 : f32 to vector<4x2x1xf32>
    %108 = arith.addf %107, %106 : vector<4x2x1xf32>
    %109 = arith.divf %107, %108 : vector<4x2x1xf32>
    %cst_56 = arith.constant 2.000000e+00 : f32
    %110 = vector.broadcast %cst_56 : f32 to vector<4x2x1xf32>
    %111 = arith.mulf %109, %110 : vector<4x2x1xf32>
    %cst_57 = arith.constant 1.000000e+00 : f32
    %112 = vector.broadcast %cst_57 : f32 to vector<4x2x1xf32>
    %113 = arith.subf %111, %112 : vector<4x2x1xf32>
    %cst_58 = arith.constant 0.693147182 : f32
    %114 = vector.broadcast %cst_58 : f32 to vector<4x2x1xf32>
    %115 = arith.mulf %113, %114 : vector<4x2x1xf32>
    %116 = math.exp %115 : vector<4x2x1xf32>
    %cst_59 = arith.constant 0.000000e+00 : f32
    %117 = vector.broadcast %cst_59 : f32 to vector<4x2x1xf32>
    %118 = arith.subf %117, %115 : vector<4x2x1xf32>
    %119 = math.exp %118 : vector<4x2x1xf32>
    %120 = arith.negf %86 : vector<4x2x1xf32>
    %121 = math.exp %120 : vector<4x2x1xf32>
    %cst_60 = arith.constant 1.000000e+00 : f32
    %122 = vector.broadcast %cst_60 : f32 to vector<4x2x1xf32>
    %123 = arith.addf %122, %121 : vector<4x2x1xf32>
    %124 = arith.divf %122, %123 : vector<4x2x1xf32>
    %cst_61 = arith.constant 1.800000e+00 : f32
    %125 = vector.broadcast %cst_61 : f32 to vector<4x2x1xf32>
    %126 = arith.mulf %124, %125 : vector<4x2x1xf32>
    %cst_62 = arith.constant 0.899999976 : f32
    %127 = vector.broadcast %cst_62 : f32 to vector<4x2x1xf32>
    %128 = arith.subf %126, %127 : vector<4x2x1xf32>
    %129 = arith.mulf %128, %128 : vector<4x2x1xf32>
    %cst_63 = arith.constant 1.000000e+00 : f32
    %130 = vector.broadcast %cst_63 : f32 to vector<4x2x1xf32>
    %131 = arith.subf %130, %129 : vector<4x2x1xf32>
    %cst_64 = arith.constant -0.0102040814 : f32
    %132 = vector.broadcast %cst_64 : f32 to vector<4x2x1xf32>
    %133 = arith.divf %132, %131 : vector<4x2x1xf32>
    %134 = tpu.iota {dimensions = array<i32: 2>} : vector<1x1x64xi32>
    %135 = arith.sitofp %134 : vector<1x1x64xi32> to vector<1x1x64xf32>
    %cst_65 = arith.constant 7.000000e+00 : f32
    %136 = vector.broadcast %cst_65 : f32 to vector<1x1x64xf32>
    %137 = arith.divf %135, %136 : vector<1x1x64xf32>
    %138 = math.floor %137 : vector<1x1x64xf32>
    %cst_66 = arith.constant 7.000000e+00 : f32
    %139 = vector.broadcast %cst_66 : f32 to vector<1x1x64xf32>
    %140 = arith.mulf %139, %138 : vector<1x1x64xf32>
    %141 = arith.subf %135, %140 : vector<1x1x64xf32>
    %cst_67 = arith.constant 4.900000e+01 : f32
    %142 = vector.broadcast %cst_67 : f32 to vector<1x1x64xf32>
    %143 = arith.cmpf olt, %135, %142 : vector<1x1x64xf32>
    %144 = arith.extui %143 : vector<1x1x64xi1> to vector<1x1x64xi32>
    %145 = arith.sitofp %144 : vector<1x1x64xi32> to vector<1x1x64xf32>
    %146 = vector.broadcast %95 : vector<4x2x1xf32> to vector<4x2x64xf32>
    %147 = vector.broadcast %138 : vector<1x1x64xf32> to vector<4x2x64xf32>
    %148 = arith.subf %146, %147 : vector<4x2x64xf32>
    %149 = vector.broadcast %104 : vector<4x2x1xf32> to vector<4x2x64xf32>
    %150 = vector.broadcast %141 : vector<1x1x64xf32> to vector<4x2x64xf32>
    %151 = arith.subf %149, %150 : vector<4x2x64xf32>
    %152 = arith.mulf %148, %148 : vector<4x2x64xf32>
    %153 = vector.broadcast %116 : vector<4x2x1xf32> to vector<4x2x64xf32>
    %154 = arith.mulf %152, %153 : vector<4x2x64xf32>
    %155 = arith.mulf %151, %151 : vector<4x2x64xf32>
    %156 = vector.broadcast %119 : vector<4x2x1xf32> to vector<4x2x64xf32>
    %157 = arith.mulf %155, %156 : vector<4x2x64xf32>
    %158 = arith.addf %154, %157 : vector<4x2x64xf32>
    %cst_68 = arith.constant 2.000000e+00 : f32
    %159 = vector.broadcast %cst_68 : f32 to vector<4x2x1xf32>
    %160 = arith.mulf %159, %128 : vector<4x2x1xf32>
    %161 = vector.broadcast %160 : vector<4x2x1xf32> to vector<4x2x64xf32>
    %162 = arith.mulf %161, %148 : vector<4x2x64xf32>
    %163 = arith.mulf %162, %151 : vector<4x2x64xf32>
    %164 = arith.subf %158, %163 : vector<4x2x64xf32>
    %165 = vector.broadcast %133 : vector<4x2x1xf32> to vector<4x2x64xf32>
    %166 = arith.mulf %165, %164 : vector<4x2x64xf32>
    %167 = math.exp %166 : vector<4x2x64xf32>
    %cst_69 = arith.constant 9.99999996E-13 : f32
    %168 = vector.broadcast %cst_69 : f32 to vector<4x2x64xf32>
    %169 = arith.addf %167, %168 : vector<4x2x64xf32>
    %170 = vector.broadcast %145 : vector<1x1x64xf32> to vector<4x2x64xf32>
    %171 = arith.mulf %169, %170 : vector<4x2x64xf32>
    %cst_70 = arith.constant dense<0.000000e+00> : vector<4x2xf32>
    %172 = vector.multi_reduction <add>, %171, %cst_70 [2] : vector<4x2x64xf32> to vector<4x2xf32>
    %173 = vector.shape_cast %172 : vector<4x2xf32> to vector<4x2x1xf32>
    %174 = tpu.reciprocal %173 : vector<4x2x1xf32> -> vector<4x2x1xf32>
    %175 = vector.broadcast %174 : vector<4x2x1xf32> to vector<4x2x64xf32>
    %176 = arith.mulf %171, %175 : vector<4x2x64xf32>
    %c0_71 = arith.constant 0 : index
    %c0_72 = arith.constant 0 : index
    %c0_73 = arith.constant 0 : index
    %177 = vector.load %arg16[%c0_71, %c0_72, %c0_73] : memref<4x2x64xf32, #tpu.memory_space<vmem>>, vector<4x2x64xf32>
    tpu.vector_store %arg16[%c0_71, %c0_72, %c0_73], %176 {strides = array<i32>} : memref<4x2x64xf32, #tpu.memory_space<vmem>>, vector<4x2x64xf32>,
    return
  }
  func.func @transform_0(%arg0: i32) -> (i32, i32) {
    %c0_i32 = arith.constant 0 : i32
    %c0_i32_0 = arith.constant 0 : i32
    return %c0_i32, %arg0 : i32, i32
  }
  func.func @transform_1(%arg0: i32) -> (i32, i32) {
    %c0_i32 = arith.constant 0 : i32
    %c0_i32_0 = arith.constant 0 : i32
    %c0_i32_1 = arith.constant 0 : i32
    return %c0_i32, %c0_i32_0 : i32, i32
  }
  func.func @transform_2(%arg0: i32) -> (i32, i32) {
    %c0_i32 = arith.constant 0 : i32
    %c0_i32_0 = arith.constant 0 : i32
    %c0_i32_1 = arith.constant 0 : i32
    return %c0_i32, %c0_i32_0 : i32, i32
  }
  func.func @transform_3(%arg0: i32) -> (i32, i32) {
    %c0_i32 = arith.constant 0 : i32
    %c0_i32_0 = arith.constant 0 : i32
    %c0_i32_1 = arith.constant 0 : i32
    return %c0_i32, %c0_i32_0 : i32, i32
  }
  func.func @transform_4(%arg0: i32) -> (i32, i32) {
    %c0_i32 = arith.constant 0 : i32
    %c0_i32_0 = arith.constant 0 : i32
    %c0_i32_1 = arith.constant 0 : i32
    return %c0_i32, %c0_i32_0 : i32, i32
  }
  func.func @transform_5(%arg0: i32) -> (i32, i32) {
    %c0_i32 = arith.constant 0 : i32
    %c0_i32_0 = arith.constant 0 : i32
    %c0_i32_1 = arith.constant 0 : i32
    return %c0_i32, %c0_i32_0 : i32, i32
  }
  func.func @transform_6(%arg0: i32) -> (i32, i32) {
    %c0_i32 = arith.constant 0 : i32
    %c0_i32_0 = arith.constant 0 : i32
    %c0_i32_1 = arith.constant 0 : i32
    return %c0_i32, %c0_i32_0 : i32, i32
  }
  func.func @transform_7(%arg0: i32) -> (i32, i32) {
    %c0_i32 = arith.constant 0 : i32
    %c0_i32_0 = arith.constant 0 : i32
    %c0_i32_1 = arith.constant 0 : i32
    return %c0_i32, %c0_i32_0 : i32, i32
  }
  func.func @transform_8(%arg0: i32) -> (i32, i32) {
    %c0_i32 = arith.constant 0 : i32
    %c0_i32_0 = arith.constant 0 : i32
    %c0_i32_1 = arith.constant 0 : i32
    return %c0_i32, %c0_i32_0 : i32, i32
  }
  func.func @transform_9(%arg0: i32) -> (i32, i32) {
    %c0_i32 = arith.constant 0 : i32
    %c0_i32_0 = arith.constant 0 : i32
    %c0_i32_1 = arith.constant 0 : i32
    return %c0_i32, %c0_i32_0 : i32, i32
  }
  func.func @transform_10(%arg0: i32) -> (i32, i32) {
    %c0_i32 = arith.constant 0 : i32
    %c0_i32_0 = arith.constant 0 : i32
    %c0_i32_1 = arith.constant 0 : i32
    return %c0_i32, %c0_i32_0 : i32, i32
  }
  func.func @transform_11(%arg0: i32) -> (i32, i32) {
    %c0_i32 = arith.constant 0 : i32
    %c0_i32_0 = arith.constant 0 : i32
    %c0_i32_1 = arith.constant 0 : i32
    return %c0_i32, %c0_i32_0 : i32, i32
  }
  func.func @transform_12(%arg0: i32) -> (i32, i32) {
    %c0_i32 = arith.constant 0 : i32
    %c0_i32_0 = arith.constant 0 : i32
    %c0_i32_1 = arith.constant 0 : i32
    return %c0_i32, %c0_i32_0 : i32, i32
  }
  func.func @transform_13(%arg0: i32) -> (i32, i32) {
    %c0_i32 = arith.constant 0 : i32
    %c0_i32_0 = arith.constant 0 : i32
    %c0_i32_1 = arith.constant 0 : i32
    return %c0_i32, %c0_i32_0 : i32, i32
  }
  func.func @transform_14(%arg0: i32) -> (i32, i32, i32) {
    %c0_i32 = arith.constant 0 : i32
    %c0_i32_0 = arith.constant 0 : i32
    %c0_i32_1 = arith.constant 0 : i32
    %c0_i32_2 = arith.constant 0 : i32
    return %c0_i32, %c0_i32_0, %c0_i32_1 : i32, i32, i32
  }
  func.func @transform_15(%arg0: i32) -> (i32, i32, i32) {
    %c0_i32 = arith.constant 0 : i32
    %c0_i32_0 = arith.constant 0 : i32
    %c0_i32_1 = arith.constant 0 : i32
    return %arg0, %c0_i32, %c0_i32_0 : i32, i32, i32
  }
}

</mosaic_0001>

<llo_original>
// kernel: tpu_custom_call.1
$region0: #{tpu_custom_call.1}
  #allocation0 [shape = 'u32[]', space=smem, size = 0x4, offset = 0x4, fixed_abs, tag = 'smem constant byte address 0x4 - core index']
  #allocation1 [shape = 'u32[144,128]{1,0:T(1,128)}', space=vmem, size = 0x12000, scoped, tag = 'internal scratch']
  %s0 = inlined_call_operand.vmem [shape: bf16[32,2048], index: 0, kind: input, shape index: {}]
  %s1 = inlined_call_operand.hbm [shape: bf16[1024,256], index: 1, kind: input, shape index: {}]
  %s2 = inlined_call_operand.vmem [shape: f32[256,4], index: 2, kind: input, shape index: {}]
  %s3 = inlined_call_operand.hbm [shape: f32[288,256], index: 3, kind: input, shape index: {}]
  %s4 = inlined_call_operand.hbm [shape: f32[72,256], index: 4, kind: input, shape index: {}]
  %s5 = inlined_call_operand.vmem [shape: bf16[32,32], index: 5, kind: input, shape index: {}]
  %s6 = inlined_call_operand.vmem [shape: f32[32,1], index: 6, kind: input, shape index: {}]
  %s7 = inlined_call_operand.vmem [shape: f32[32,1], index: 7, kind: input, shape index: {}]
  %s8 = inlined_call_operand.vmem [shape: bf16[8,288], index: 8, kind: input, shape index: {}]
  %s9 = inlined_call_operand.vmem [shape: f32[8,1], index: 9, kind: input, shape index: {}]
  %s10 = inlined_call_operand.vmem [shape: f32[8,1], index: 10, kind: input, shape index: {}]
  %s11 = inlined_call_operand.vmem [shape: bf16[2,72], index: 11, kind: input, shape index: {}]
  %s12 = inlined_call_operand.vmem [shape: f32[2,1], index: 12, kind: input, shape index: {}]
  %s13 = inlined_call_operand.vmem [shape: f32[2,1], index: 13, kind: input, shape index: {}]
  %s14 = inlined_call_operand.vmem [shape: f32[8,2,256], index: 14, kind: input, shape index: {}]
  %s15 = inlined_call_operand.hbm [shape: f32[8,2,64], index: 15, kind: output, shape index: {}]
  %s16 = sld [smem:[#allocation0]]
  $region128: #{tpu_custom_call.1} parent=0
    _
  %s18 = ssub.s32 1, %s16
  %s19 = scalar_select 0, %s18, %s16
  $region1: #{tpu_custom_call.1} parent=0
    #allocation2 [shape = 'u8[131072]{0}', space=vmem, size = 0x20000, scoped, tag = 'input window, operand 0']
    #allocation3 [shape = 'u8[524288]{0}', space=vmem, size = 0x80000, scoped, tag = 'input window, operand 1, single buffered']
    #allocation4 [shape = 's32[2]{0}', space=sflag, size = 0x8, scoped, tag = 'scoped memory for tpu_custom_call.1']
    #allocation5 [shape = 's32[2]{0}', space=sflag, size = 0x8, scoped, tag = 'scoped memory for tpu_custom_call.1']
    #allocation6 [shape = 'u8[294912]{0}', space=vmem, size = 0x48000, scoped, tag = 'input window, operand 3, single buffered']
    #allocation7 [shape = 's32[1]{0}', space=sflag, size = 0x4, scoped, tag = 'scoped memory for tpu_custom_call.1']
    #allocation8 [shape = 'u8[73728]{0}', space=vmem, size = 0x12000, scoped, tag = 'input window, operand 4, single buffered']
    #allocation9 [shape = 'u8[8192]{0}', space=vmem, size = 0x2000, scoped, tag = 'output window, operand 0']
    %20 = vsyncpa [#allocation4], 0
    %21 = vsyncpa [#allocation7], 0
    %22 = vsyncpa [#allocation5], 0
    %s23 = scalar_lea.sflag [#allocation5], 1
    %24 = vsyncpa %s23, 0
    loop: start=0, step=1, limit=4
    $region2: #{tpu_custom_call.1} parent=1 // loop_pre_header
      _
    $region3: #{tpu_custom_call.1} parent=1 // loop_header
      %s26 = sphi 0, %s30
      %p27 = scmp.ge.s32.totalorder %s26, 4
      %s36 = sphi 0, %s38
      %s39 = sphi 0, %s36
      %s40 = sphi 0, %s39
      %s56 = sphi 0, %s40
      %s60 = sphi 0, %s60
      %s62 = sphi 0, %s60
      %s63 = sphi 0, %s62
      %s77 = sphi 0, %s63
      %s81 = sphi 0, %s81
      %s83 = sphi 0, %s81
      %s84 = sphi 0, %s83
      %s98 = sphi 0, %s84
      %s102 = sphi 0, %s102
      %s104 = sphi 0, %s102
      %s105 = sphi 0, %s104
      %s119 = sphi 0, %s105
      %s123 = sphi 0, %s123
      %s125 = sphi 0, %s123
      %s126 = sphi 0, %s125
      %s140 = sphi 0, %s126
      %s144 = sphi 0, %s144
      %s146 = sphi 0, %s144
      %s147 = sphi 0, %s146
      %s161 = sphi 0, %s147
      %s165 = sphi 0, %s165
      %s167 = sphi 0, %s165
      %s168 = sphi 0, %s167
      %s182 = sphi 0, %s168
      %s186 = sphi 0, %s186
      %s188 = sphi 0, %s186
      %s189 = sphi 0, %s188
      %s203 = sphi 0, %s189
      %s207 = sphi 0, %s207
      %s209 = sphi 0, %s207
      %s210 = sphi 0, %s209
      %s224 = sphi 0, %s210
      %s228 = sphi 0, %s228
      %s230 = sphi 0, %s228
      %s231 = sphi 0, %s230
      %s245 = sphi 0, %s231
      %s249 = sphi 0, %s249
      %s251 = sphi 0, %s249
      %s252 = sphi 0, %s251
      %s266 = sphi 0, %s252
      %s270 = sphi 0, %s270
      %s272 = sphi 0, %s270
      %s273 = sphi 0, %s272
      %s287 = sphi 0, %s273
      %s291 = sphi 0, %s291
      %s293 = sphi 0, %s291
      %s294 = sphi 0, %s293
      %s308 = sphi 0, %s294
      %s312 = sphi 0, %s312
      %s314 = sphi 0, %s312
      %s315 = sphi 0, %s314
      %s329 = sphi 0, %s315
      %s333 = sphi 0, %s333
      %s335 = sphi 0, %s333
      %s336 = sphi 0, %s335
      %s350 = sphi 0, %s336
      %s356 = sphi 0, %s358
      %s359 = sphi 0, %s356
      %s360 = sphi 0, %s359
      %s376 = sphi 0, %s360
    $region4: #{tpu_custom_call.1} parent=1 // loop_header_branch
      %29 = sbr.rel (%p27) target = $region8
    $region5: #{tpu_custom_call.1} parent=1 // loop_body
      %s31 = ssub.s32 %s26, 1
      %s32 = ssub.s32 %s26, 2
      %s33 = sadd.s32 %s26, 1
      %s34 = ssub.s32 %s26, %s33
      %p35 = scmp.eq.s32.totalorder %s34, 0
      %s37 = sadd.s32 %s36, 1
      %s38 = scalar_select %p35, %s36, %s37
      %p41 = pneg %p35
      %p42 = scmp.eq.s32.totalorder %s26, 1
      %p43 = por %p41, %p42
      %p44 = scmp.ne.s32.totalorder %s36, %s39
      %p45 = scmp.eq.s32.totalorder %s26, 0
      %p46 = por %p44, %p45
      %p47 = scmp.ne.s32.totalorder %s36, %s39
      %p48 = scmp.eq.s32.totalorder %s31, 1
      %p49 = por %p47, %p48
      %p50 = scmp.ne.s32.totalorder %s39, %s40
      %p51 = scmp.eq.s32.totalorder %s31, 0
      %p52 = por %p50, %p51
      %p53 = scmp.ne.s32.totalorder %s39, %s40
      %p54 = scmp.eq.s32.totalorder %s32, 1
      %p55 = por %p53, %p54
      %p57 = scmp.ne.s32.totalorder %s40, %s56
      %p58 = scmp.eq.s32.totalorder %s32, 0
      %p59 = por %p57, %p58
      %s61 = sadd.s32 %s60, 1
      %p64 = scmp.eq.s32.totalorder %s26, 1
      %p65 = scmp.ne.s32.totalorder %s60, %s62
      %p66 = scmp.eq.s32.totalorder %s26, 0
      %p67 = por %p65, %p66
      %p68 = scmp.ne.s32.totalorder %s60, %s62
      %p69 = scmp.eq.s32.totalorder %s31, 1
      %p70 = por %p68, %p69
      %p71 = scmp.ne.s32.totalorder %s62, %s63
      %p72 = scmp.eq.s32.totalorder %s31, 0
      %p73 = por %p71, %p72
      %p74 = scmp.ne.s32.totalorder %s62, %s63
      %p75 = scmp.eq.s32.totalorder %s32, 1
      %p76 = por %p74, %p75
      %p78 = scmp.ne.s32.totalorder %s63, %s77
      %p79 = scmp.eq.s32.totalorder %s32, 0
      %p80 = por %p78, %p79
      %s82 = sadd.s32 %s81, 1
      %p85 = scmp.eq.s32.totalorder %s26, 1
      %p86 = scmp.ne.s32.totalorder %s81, %s83
      %p87 = scmp.eq.s32.totalorder %s26, 0
      %p88 = por %p86, %p87
      %p89 = scmp.ne.s32.totalorder %s81, %s83
      %p90 = scmp.eq.s32.totalorder %s31, 1
      %p91 = por %p89, %p90
      %p92 = scmp.ne.s32.totalorder %s83, %s84
      %p93 = scmp.eq.s32.totalorder %s31, 0
      %p94 = por %p92, %p93
      %p95 = scmp.ne.s32.totalorder %s83, %s84
      %p96 = scmp.eq.s32.totalorder %s32, 1
      %p97 = por %p95, %p96
      %p99 = scmp.ne.s32.totalorder %s84, %s98
      %p100 = scmp.eq.s32.totalorder %s32, 0
      %p101 = por %p99, %p100
      %s103 = sadd.s32 %s102, 1
      %p106 = scmp.eq.s32.totalorder %s26, 1
      %p107 = scmp.ne.s32.totalorder %s102, %s104
      %p108 = scmp.eq.s32.totalorder %s26, 0
      %p109 = por %p107, %p108
      %p110 = scmp.ne.s32.totalorder %s102, %s104
      %p111 = scmp.eq.s32.totalorder %s31, 1
      %p112 = por %p110, %p111
      %p113 = scmp.ne.s32.totalorder %s104, %s105
      %p114 = scmp.eq.s32.totalorder %s31, 0
      %p115 = por %p113, %p114
      %p116 = scmp.ne.s32.totalorder %s104, %s105
      %p117 = scmp.eq.s32.totalorder %s32, 1
      %p118 = por %p116, %p117
      %p120 = scmp.ne.s32.totalorder %s105, %s119
      %p121 = scmp.eq.s32.totalorder %s32, 0
      %p122 = por %p120, %p121
      %s124 = sadd.s32 %s123, 1
      %p127 = scmp.eq.s32.totalorder %s26, 1
      %p128 = scmp.ne.s32.totalorder %s123, %s125
      %p129 = scmp.eq.s32.totalorder %s26, 0
      %p130 = por %p128, %p129
      %p131 = scmp.ne.s32.totalorder %s123, %s125
      %p132 = scmp.eq.s32.totalorder %s31, 1
      %p133 = por %p131, %p132
      %p134 = scmp.ne.s32.totalorder %s125, %s126
      %p135 = scmp.eq.s32.totalorder %s31, 0
      %p136 = por %p134, %p135
      %p137 = scmp.ne.s32.totalorder %s125, %s126
      %p138 = scmp.eq.s32.totalorder %s32, 1
      %p139 = por %p137, %p138
      %p141 = scmp.ne.s32.totalorder %s126, %s140
      %p142 = scmp.eq.s32.totalorder %s32, 0
      %p143 = por %p141, %p142
      %s145 = sadd.s32 %s144, 1
      %p148 = scmp.eq.s32.totalorder %s26, 1
      %p149 = scmp.ne.s32.totalorder %s144, %s146
      %p150 = scmp.eq.s32.totalorder %s26, 0
      %p151 = por %p149, %p150
      %p152 = scmp.ne.s32.totalorder %s144, %s146
      %p153 = scmp.eq.s32.totalorder %s31, 1
      %p154 = por %p152, %p153
      %p155 = scmp.ne.s32.totalorder %s146, %s147
      %p156 = scmp.eq.s32.totalorder %s31, 0
      %p157 = por %p155, %p156
      %p158 = scmp.ne.s32.totalorder %s146, %s147
      %p159 = scmp.eq.s32.totalorder %s32, 1
      %p160 = por %p158, %p159
      %p162 = scmp.ne.s32.totalorder %s147, %s161
      %p163 = scmp.eq.s32.totalorder %s32, 0
      %p164 = por %p162, %p163
      %s166 = sadd.s32 %s165, 1
      %p169 = scmp.eq.s32.totalorder %s26, 1
      %p170 = scmp.ne.s32.totalorder %s165, %s167
      %p171 = scmp.eq.s32.totalorder %s26, 0
      %p172 = por %p170, %p171
      %p173 = scmp.ne.s32.totalorder %s165, %s167
      %p174 = scmp.eq.s32.totalorder %s31, 1
      %p175 = por %p173, %p174
      %p176 = scmp.ne.s32.totalorder %s167, %s168
      %p177 = scmp.eq.s32.totalorder %s31, 0
      %p178 = por %p176, %p177
      %p179 = scmp.ne.s32.totalorder %s167, %s168
      %p180 = scmp.eq.s32.totalorder %s32, 1
      %p181 = por %p179, %p180
      %p183 = scmp.ne.s32.totalorder %s168, %s182
      %p184 = scmp.eq.s32.totalorder %s32, 0
      %p185 = por %p183, %p184
      %s187 = sadd.s32 %s186, 1
      %p190 = scmp.eq.s32.totalorder %s26, 1
      %p191 = scmp.ne.s32.totalorder %s186, %s188
      %p192 = scmp.eq.s32.totalorder %s26, 0
      %p193 = por %p191, %p192
      %p194 = scmp.ne.s32.totalorder %s186, %s188
      %p195 = scmp.eq.s32.totalorder %s31, 1
      %p196 = por %p194, %p195
      %p197 = scmp.ne.s32.totalorder %s188, %s189
      %p198 = scmp.eq.s32.totalorder %s31, 0
      %p199 = por %p197, %p198
      %p200 = scmp.ne.s32.totalorder %s188, %s189
      %p201 = scmp.eq.s32.totalorder %s32, 1
      %p202 = por %p200, %p201
      %p204 = scmp.ne.s32.totalorder %s189, %s203
      %p205 = scmp.eq.s32.totalorder %s32, 0
      %p206 = por %p204, %p205
      %s208 = sadd.s32 %s207, 1
      %p211 = scmp.eq.s32.totalorder %s26, 1
      %p212 = scmp.ne.s32.totalorder %s207, %s209
      %p213 = scmp.eq.s32.totalorder %s26, 0
      %p214 = por %p212, %p213
      %p215 = scmp.ne.s32.totalorder %s207, %s209
      %p216 = scmp.eq.s32.totalorder %s31, 1
      %p217 = por %p215, %p216
      %p218 = scmp.ne.s32.totalorder %s209, %s210
      %p219 = scmp.eq.s32.totalorder %s31, 0
      %p220 = por %p218, %p219
      %p221 = scmp.ne.s32.totalorder %s209, %s210
      %p222 = scmp.eq.s32.totalorder %s32, 1
      %p223 = por %p221, %p222
      %p225 = scmp.ne.s32.totalorder %s210, %s224
      %p226 = scmp.eq.s32.totalorder %s32, 0
      %p227 = por %p225, %p226
      %s229 = sadd.s32 %s228, 1
      %p232 = scmp.eq.s32.totalorder %s26, 1
      %p233 = scmp.ne.s32.totalorder %s228, %s230
      %p234 = scmp.eq.s32.totalorder %s26, 0
      %p235 = por %p233, %p234
      %p236 = scmp.ne.s32.totalorder %s228, %s230
      %p237 = scmp.eq.s32.totalorder %s31, 1
      %p238 = por %p236, %p237
      %p239 = scmp.ne.s32.totalorder %s230, %s231
      %p240 = scmp.eq.s32.totalorder %s31, 0
      %p241 = por %p239, %p240
      %p242 = scmp.ne.s32.totalorder %s230, %s231
      %p243 = scmp.eq.s32.totalorder %s32, 1
      %p244 = por %p242, %p243
      %p246 = scmp.ne.s32.totalorder %s231, %s245
      %p247 = scmp.eq.s32.totalorder %s32, 0
      %p248 = por %p246, %p247
      %s250 = sadd.s32 %s249, 1
      %p253 = scmp.eq.s32.totalorder %s26, 1
      %p254 = scmp.ne.s32.totalorder %s249, %s251
      %p255 = scmp.eq.s32.totalorder %s26, 0
      %p256 = por %p254, %p255
      %p257 = scmp.ne.s32.totalorder %s249, %s251
      %p258 = scmp.eq.s32.totalorder %s31, 1
      %p259 = por %p257, %p258
      %p260 = scmp.ne.s32.totalorder %s251, %s252
      %p261 = scmp.eq.s32.totalorder %s31, 0
      %p262 = por %p260, %p261
      %p263 = scmp.ne.s32.totalorder %s251, %s252
      %p264 = scmp.eq.s32.totalorder %s32, 1
      %p265 = por %p263, %p264
      %p267 = scmp.ne.s32.totalorder %s252, %s266
      %p268 = scmp.eq.s32.totalorder %s32, 0
      %p269 = por %p267, %p268
      %s271 = sadd.s32 %s270, 1
      %p274 = scmp.eq.s32.totalorder %s26, 1
      %p275 = scmp.ne.s32.totalorder %s270, %s272
      %p276 = scmp.eq.s32.totalorder %s26, 0
      %p277 = por %p275, %p276
      %p278 = scmp.ne.s32.totalorder %s270, %s272
      %p279 = scmp.eq.s32.totalorder %s31, 1
      %p280 = por %p278, %p279
      %p281 = scmp.ne.s32.totalorder %s272, %s273
      %p282 = scmp.eq.s32.totalorder %s31, 0
      %p283 = por %p281, %p282
      %p284 = scmp.ne.s32.totalorder %s272, %s273
      %p285 = scmp.eq.s32.totalorder %s32, 1
      %p286 = por %p284, %p285
      %p288 = scmp.ne.s32.totalorder %s273, %s287
      %p289 = scmp.eq.s32.totalorder %s32, 0
      %p290 = por %p288, %p289
      %s292 = sadd.s32 %s291, 1
      %p295 = scmp.eq.s32.totalorder %s26, 1
      %p296 = scmp.ne.s32.totalorder %s291, %s293
      %p297 = scmp.eq.s32.totalorder %s26, 0
      %p298 = por %p296, %p297
      %p299 = scmp.ne.s32.totalorder %s291, %s293
      %p300 = scmp.eq.s32.totalorder %s31, 1
      %p301 = por %p299, %p300
      %p302 = scmp.ne.s32.totalorder %s293, %s294
      %p303 = scmp.eq.s32.totalorder %s31, 0
      %p304 = por %p302, %p303
      %p305 = scmp.ne.s32.totalorder %s293, %s294
      %p306 = scmp.eq.s32.totalorder %s32, 1
      %p307 = por %p305, %p306
      %p309 = scmp.ne.s32.totalorder %s294, %s308
      %p310 = scmp.eq.s32.totalorder %s32, 0
      %p311 = por %p309, %p310
      %s313 = sadd.s32 %s312, 1
      %p316 = scmp.eq.s32.totalorder %s26, 1
      %p317 = scmp.ne.s32.totalorder %s312, %s314
      %p318 = scmp.eq.s32.totalorder %s26, 0
      %p319 = por %p317, %p318
      %p320 = scmp.ne.s32.totalorder %s312, %s314
      %p321 = scmp.eq.s32.totalorder %s31, 1
      %p322 = por %p320, %p321
      %p323 = scmp.ne.s32.totalorder %s314, %s315
      %p324 = scmp.eq.s32.totalorder %s31, 0
      %p325 = por %p323, %p324
      %p326 = scmp.ne.s32.totalorder %s314, %s315
      %p327 = scmp.eq.s32.totalorder %s32, 1
      %p328 = por %p326, %p327
      %p330 = scmp.ne.s32.totalorder %s315, %s329
      %p331 = scmp.eq.s32.totalorder %s32, 0
      %p332 = por %p330, %p331
      %s334 = sadd.s32 %s333, 1
      %p337 = scmp.eq.s32.totalorder %s26, 1
      %p338 = scmp.ne.s32.totalorder %s333, %s335
      %p339 = scmp.eq.s32.totalorder %s26, 0
      %p340 = por %p338, %p339
      %p341 = scmp.ne.s32.totalorder %s333, %s335
      %p342 = scmp.eq.s32.totalorder %s31, 1
      %p343 = por %p341, %p342
      %p344 = scmp.ne.s32.totalorder %s335, %s336
      %p345 = scmp.eq.s32.totalorder %s31, 0
      %p346 = por %p344, %p345
      %p347 = scmp.ne.s32.totalorder %s335, %s336
      %p348 = scmp.eq.s32.totalorder %s32, 1
      %p349 = por %p347, %p348
      %p351 = scmp.ne.s32.totalorder %s336, %s350
      %p352 = scmp.eq.s32.totalorder %s32, 0
      %p353 = por %p351, %p352
      %s354 = ssub.s32 %s26, %s33
      %p355 = scmp.eq.s32.totalorder %s354, 0
      %s357 = sadd.s32 %s356, 1
      %s358 = scalar_select %p355, %s356, %s357
      %p361 = pneg %p355
      %p362 = scmp.eq.s32.totalorder %s26, 1
      %p363 = por %p361, %p362
      %p364 = scmp.ne.s32.totalorder %s356, %s359
      %p365 = scmp.eq.s32.totalorder %s26, 0
      %p366 = por %p364, %p365
      %p367 = scmp.ne.s32.totalorder %s356, %s359
      %p368 = scmp.eq.s32.totalorder %s31, 1
      %p369 = por %p367, %p368
      %p370 = scmp.ne.s32.totalorder %s359, %s360
      %p371 = scmp.eq.s32.totalorder %s31, 0
      %p372 = por %p370, %p371
      %p373 = scmp.ne.s32.totalorder %s359, %s360
      %p374 = scmp.eq.s32.totalorder %s32, 1
      %p375 = por %p373, %p374
      %p377 = scmp.ne.s32.totalorder %s360, %s376
      %p378 = scmp.eq.s32.totalorder %s32, 0
      %p379 = por %p377, %p378
      %p380 = scmp.le.s32.totalorder 1, %s26
      %p381 = scmp.lt.s32.totalorder %s26, 3
      %p382 = pnand %p380, %p381
      %p383 = pneg %p382
      // Predicated region
      $region9: #{tpu_custom_call.1} parent=5 // pred_check
        _
      $region10: #{tpu_custom_call.1} parent=5 // pred_check_branch
        %385 = sbr.rel (%p382) target = $region12
      $region11: #{tpu_custom_call.1} parent=5 // pred_region
        %s386 = ssub.s32 %s26, 1
        // Predicated region
        $region13: #{tpu_custom_call.1} parent=11 // pred_check
          %p387 = pneg %p73
        $region14: #{tpu_custom_call.1} parent=11 // pred_check_branch
          %389 = sbr.rel (%p387) target = $region16
        $region15: #{tpu_custom_call.1} parent=11 // pred_region
          %s391 = ssub.s32 16384, 16384
          %392 = vsyncadd [#allocation4], %s391
          %s393 = sshll.u32 [#allocation3], 4
          %s394 = int_to_ptr.vmem [resolvable:$true] %s393
          %399 = dma.hbm_to_vmem [thread:$0]  %s1, 16384, %s394, [#allocation4], 128, 128, 8
        $region16: #{tpu_custom_call.1} parent=11 // pred_fallthru
          _
        // Predicated region
        $region17: #{tpu_custom_call.1} parent=11 // pred_check
          %p400 = pneg %p94
        $region18: #{tpu_custom_call.1} parent=11 // pred_check_branch
          %402 = sbr.rel (%p400) target = $region20
        $region19: #{tpu_custom_call.1} parent=11 // pred_region
          _
        $region20: #{tpu_custom_call.1} parent=11 // pred_fallthru
          _
        // Predicated region
        $region21: #{tpu_custom_call.1} parent=11 // pred_check
          %p403 = pneg %p115
        $region22: #{tpu_custom_call.1} parent=11 // pred_check_branch
          %405 = sbr.rel (%p403) target = $region24
        $region23: #{tpu_custom_call.1} parent=11 // pred_region
          %s407 = ssub.s32 9216, 9216
          %408 = vsyncadd [#allocation7], %s407
          %s409 = sshll.u32 [#allocation6], 4
          %s410 = int_to_ptr.vmem [resolvable:$true] %s409
          %415 = dma.hbm_to_vmem [thread:$0]  %s3, 9216, %s410, [#allocation7], 256, 256, 16
        $region24: #{tpu_custom_call.1} parent=11 // pred_fallthru
          _
        // Predicated region
        $region25: #{tpu_custom_call.1} parent=11 // pred_check
          %p416 = pneg %p136
        $region26: #{tpu_custom_call.1} parent=11 // pred_check_branch
          %418 = sbr.rel (%p416) target = $region28
        $region27: #{tpu_custom_call.1} parent=11 // pred_region
          %s420 = ssub.s32 2304, 2304
          %421 = vsyncadd [#allocation7], %s420
          %s422 = sshll.u32 [#allocation8], 4
          %s423 = int_to_ptr.vmem [resolvable:$true] %s422
          %428 = dma.hbm_to_vmem [thread:$0]  %s4, 2304, %s423, [#allocation7], 256, 256, 16
        $region28: #{tpu_custom_call.1} parent=11 // pred_fallthru
          _
        // Predicated region
        $region29: #{tpu_custom_call.1} parent=11 // pred_check
          %p429 = pneg %p157
        $region30: #{tpu_custom_call.1} parent=11 // pred_check_branch
          %431 = sbr.rel (%p429) target = $region32
        $region31: #{tpu_custom_call.1} parent=11 // pred_region
          _
        $region32: #{tpu_custom_call.1} parent=11 // pred_fallthru
          _
        // Predicated region
        $region33: #{tpu_custom_call.1} parent=11 // pred_check
          %p432 = pneg %p178
        $region34: #{tpu_custom_call.1} parent=11 // pred_check_branch
          %434 = sbr.rel (%p432) target = $region36
        $region35: #{tpu_custom_call.1} parent=11 // pred_region
          _
        $region36: #{tpu_custom_call.1} parent=11 // pred_fallthru
          _
        // Predicated region
        $region37: #{tpu_custom_call.1} parent=11 // pred_check
          %p435 = pneg %p199
        $region38: #{tpu_custom_call.1} parent=11 // pred_check_branch
          %437 = sbr.rel (%p435) target = $region40
        $region39: #{tpu_custom_call.1} parent=11 // pred_region
          _
        $region40: #{tpu_custom_call.1} parent=11 // pred_fallthru
          _
        // Predicated region
        $region41: #{tpu_custom_call.1} parent=11 // pred_check
          %p438 = pneg %p220
        $region42: #{tpu_custom_call.1} parent=11 // pred_check_branch
          %440 = sbr.rel (%p438) target = $region44
        $region43: #{tpu_custom_call.1} parent=11 // pred_region
          _
        $region44: #{tpu_custom_call.1} parent=11 // pred_fallthru
          _
        // Predicated region
        $region45: #{tpu_custom_call.1} parent=11 // pred_check
          %p441 = pneg %p241
        $region46: #{tpu_custom_call.1} parent=11 // pred_check_branch
          %443 = sbr.rel (%p441) target = $region48
        $region47: #{tpu_custom_call.1} parent=11 // pred_region
          _
        $region48: #{tpu_custom_call.1} parent=11 // pred_fallthru
          _
        // Predicated region
        $region49: #{tpu_custom_call.1} parent=11 // pred_check
          %p444 = pneg %p262
        $region50: #{tpu_custom_call.1} parent=11 // pred_check_branch
          %446 = sbr.rel (%p444) target = $region52
        $region51: #{tpu_custom_call.1} parent=11 // pred_region
          _
        $region52: #{tpu_custom_call.1} parent=11 // pred_fallthru
          _
        // Predicated region
        $region53: #{tpu_custom_call.1} parent=11 // pred_check
          %p447 = pneg %p283
        $region54: #{tpu_custom_call.1} parent=11 // pred_check_branch
          %449 = sbr.rel (%p447) target = $region56
        $region55: #{tpu_custom_call.1} parent=11 // pred_region
          _
        $region56: #{tpu_custom_call.1} parent=11 // pred_fallthru
          _
        // Predicated region
        $region57: #{tpu_custom_call.1} parent=11 // pred_check
          %p450 = pneg %p304
        $region58: #{tpu_custom_call.1} parent=11 // pred_check_branch
          %452 = sbr.rel (%p450) target = $region60
        $region59: #{tpu_custom_call.1} parent=11 // pred_region
          _
        $region60: #{tpu_custom_call.1} parent=11 // pred_fallthru
          _
        // Predicated region
        $region61: #{tpu_custom_call.1} parent=11 // pred_check
          %p453 = pneg %p325
        $region62: #{tpu_custom_call.1} parent=11 // pred_check_branch
          %455 = sbr.rel (%p453) target = $region64
        $region63: #{tpu_custom_call.1} parent=11 // pred_region
          _
        $region64: #{tpu_custom_call.1} parent=11 // pred_fallthru
          _
        // Predicated region
        $region65: #{tpu_custom_call.1} parent=11 // pred_check
          %p456 = pneg %p346
        $region66: #{tpu_custom_call.1} parent=11 // pred_check_branch
          %458 = sbr.rel (%p456) target = $region68
        $region67: #{tpu_custom_call.1} parent=11 // pred_region
          _
        $region68: #{tpu_custom_call.1} parent=11 // pred_fallthru
          _
      $region12: #{tpu_custom_call.1} parent=5 // pred_fallthru
        _
      %p459 = scmp.lt.s32.totalorder %s26, 2
      // Predicated region
      $region69: #{tpu_custom_call.1} parent=5 // pred_check
        %p460 = pneg %p459
      $region70: #{tpu_custom_call.1} parent=5 // pred_check_branch
        %462 = sbr.rel (%p460) target = $region72
      $region71: #{tpu_custom_call.1} parent=5 // pred_region
        // Predicated region
        $region73: #{tpu_custom_call.1} parent=71 // pred_check
          %p463 = pneg %p46
        $region74: #{tpu_custom_call.1} parent=71 // pred_check_branch
          %465 = sbr.rel (%p463) target = $region76
        $region75: #{tpu_custom_call.1} parent=71 // pred_region
          %s466 = sand.u32 %s36, 1
          %s467 = sand.u32 %s36, 1
          %s468 = smul.addr %s467, 128
          %s469 = scalar_lea.vmem [#allocation2], %s468
          %s470 = smul.u32 8, %s26
          %s471 = smul.addr %s470, 4
          %s472 = scalar_lea.vmem %s0, %s471
          // Predicated region
          $region77: #{tpu_custom_call.1} parent=75 // pred_check
            _
          $region78: #{tpu_custom_call.1} parent=75 // pred_check_branch
            %474 = sbr.rel (0) target = $region80
          $region79: #{tpu_custom_call.1} parent=75 // pred_region
            // Predicated region
            $region81: #{tpu_custom_call.1} parent=79 // pred_check
              _
            $region82: #{tpu_custom_call.1} parent=79 // pred_check_branch
              %476 = sbr.rel (0) target = $region84
            $region83: #{tpu_custom_call.1} parent=79 // pred_region
              loop: start=0, step=1, limit=1
              $region85: #{tpu_custom_call.1} parent=83 // loop_pre_header
                _
              $region86: #{tpu_custom_call.1} parent=83 // loop_header
                %s478 = sphi 0, %s482
                %p479 = scmp.ge.s32.totalorder %s478, 1
                %s483 = sphi %s472, %s472
                %s484 = sphi %s469, %s469
              $region87: #{tpu_custom_call.1} parent=83 // loop_header_branch
                %481 = sbr.rel (%p479) target = $region91
              $region88: #{tpu_custom_call.1} parent=83 // loop_body
                %v485 = vld [vmem:[%s483] sm:$0xff]
                %486 = vst [vmem:[%s484] sm:$0xff] %v485
                %v487 = vld [vmem:[%s483 + $0x8] sm:$0xff]
                %488 = vst [vmem:[%s484 + $0x8] sm:$0xff] %v487
                %v489 = vld [vmem:[%s483 + $0x10] sm:$0xff]
                %490 = vst [vmem:[%s484 + $0x10] sm:$0xff] %v489
                %v491 = vld [vmem:[%s483 + $0x18] sm:$0xff]
                %492 = vst [vmem:[%s484 + $0x18] sm:$0xff] %v491
                %v493 = vld [vmem:[%s483 + $0x40] sm:$0xff]
                %494 = vst [vmem:[%s484 + $0x20] sm:$0xff] %v493
                %v495 = vld [vmem:[%s483 + $0x48] sm:$0xff]
                %496 = vst [vmem:[%s484 + $0x28] sm:$0xff] %v495
                %v497 = vld [vmem:[%s483 + $0x50] sm:$0xff]
                %498 = vst [vmem:[%s484 + $0x30] sm:$0xff] %v497
                %v499 = vld [vmem:[%s483 + $0x58] sm:$0xff]
                %500 = vst [vmem:[%s484 + $0x38] sm:$0xff] %v499
                %v501 = vld [vmem:[%s483 + $0x80] sm:$0xff]
                %502 = vst [vmem:[%s484 + $0x40] sm:$0xff] %v501
                %v503 = vld [vmem:[%s483 + $0x88] sm:$0xff]
                %504 = vst [vmem:[%s484 + $0x48] sm:$0xff] %v503
                %v505 = vld [vmem:[%s483 + $0x90] sm:$0xff]
                %506 = vst [vmem:[%s484 + $0x50] sm:$0xff] %v505
                %v507 = vld [vmem:[%s483 + $0x98] sm:$0xff]
                %508 = vst [vmem:[%s484 + $0x58] sm:$0xff] %v507
                %v509 = vld [vmem:[%s483 + $0xc0] sm:$0xff]
                %510 = vst [vmem:[%s484 + $0x60] sm:$0xff] %v509
                %v511 = vld [vmem:[%s483 + $0xc8] sm:$0xff]
                %512 = vst [vmem:[%s484 + $0x68] sm:$0xff] %v511
                %v513 = vld [vmem:[%s483 + $0xd0] sm:$0xff]
                %514 = vst [vmem:[%s484 + $0x70] sm:$0xff] %v513
                %v515 = vld [vmem:[%s483 + $0xd8] sm:$0xff]
                %516 = vst [vmem:[%s484 + $0x78] sm:$0xff] %v515
              $region89: #{tpu_custom_call.1} parent=83 // loop_footer
                %s482 = sadd.s32 1, %s478
              $region90: #{tpu_custom_call.1} parent=83 // loop_footer_branch
                %477 = sbr.rel target = $region86
              $region91: #{tpu_custom_call.1} parent=83 // loop_exit
                _
            $region84: #{tpu_custom_call.1} parent=79 // pred_fallthru
              _
            // Predicated region
            $region92: #{tpu_custom_call.1} parent=79 // pred_check
              _
            $region93: #{tpu_custom_call.1} parent=79 // pred_check_branch
              %518 = sbr.rel target = $region95
            $region94: #{tpu_custom_call.1} parent=79 // pred_region
              _
            $region95: #{tpu_custom_call.1} parent=79 // pred_fallthru
              _
          $region80: #{tpu_custom_call.1} parent=75 // pred_fallthru
            _
          %519 = vnop
        $region76: #{tpu_custom_call.1} parent=71 // pred_fallthru
          _
      $region72: #{tpu_custom_call.1} parent=5 // pred_fallthru
        _
      %p520 = scmp.le.s32.totalorder 1, %s26
      %p521 = scmp.lt.s32.totalorder %s26, 3
      %p522 = pnand %p520, %p521
      %p523 = pneg %p522
      // Predicated region
      $region96: #{tpu_custom_call.1} parent=5 // pred_check
        _
      $region97: #{tpu_custom_call.1} parent=5 // pred_check_branch
        %525 = sbr.rel (%p522) target = $region99
      $region98: #{tpu_custom_call.1} parent=5 // pred_region
        %s526 = ssub.s32 %s26, 1
        %s527 = sand.u32 %s39, 1
        %s528 = sand.u32 %s39, 1
        %s529 = smul.addr %s528, 128
        %s530 = scalar_lea.vmem [#allocation2], %s529
        // Predicated region
        $region100: #{tpu_custom_call.1} parent=98 // pred_check
          %p531 = pneg %p52
        $region101: #{tpu_custom_call.1} parent=98 // pred_check_branch
          %533 = sbr.rel (%p531) target = $region103
        $region102: #{tpu_custom_call.1} parent=98 // pred_region
          _
        $region103: #{tpu_custom_call.1} parent=98 // pred_fallthru
          _
        // Predicated region
        $region104: #{tpu_custom_call.1} parent=98 // pred_check
          %p534 = pneg %p73
        $region105: #{tpu_custom_call.1} parent=98 // pred_check_branch
          %536 = sbr.rel (%p534) target = $region107
        $region106: #{tpu_custom_call.1} parent=98 // pred_region
          %537 = dma.done [#allocation4], 16384
        $region107: #{tpu_custom_call.1} parent=98 // pred_fallthru
          _
        // Predicated region
        $region108: #{tpu_custom_call.1} parent=98 // pred_check
          %p538 = pneg %p115
        $region109: #{tpu_custom_call.1} parent=98 // pred_check_branch
          %540 = sbr.rel (%p538) target = $region111
        $region110: #{tpu_custom_call.1} parent=98 // pred_region
          %541 = dma.done [#allocation7], 9216
        $region111: #{tpu_custom_call.1} parent=98 // pred_fallthru
          _
        // Predicated region
        $region112: #{tpu_custom_call.1} parent=98 // pred_check
          %p542 = pneg %p136
        $region113: #{tpu_custom_call.1} parent=98 // pred_check_branch
          %544 = sbr.rel (%p542) target = $region115
        $region114: #{tpu_custom_call.1} parent=98 // pred_region
          %545 = dma.done [#allocation7], 2304
        $region115: #{tpu_custom_call.1} parent=98 // pred_fallthru
          _
        %s546 = sand.u32 %s39, 1
        %s547 = sand.u32 %s39, 1
        %s548 = smul.addr %s547, 128
        %s549 = scalar_lea.vmem [#allocation2], %s548
        %p550 = pneg %p52
        %p551 = pneg %p49
        %p552 = pneg %p73
        %p553 = pneg %p70
        %p554 = pneg %p94
        %p555 = pneg %p91
        %p556 = pneg %p115
        %p557 = pneg %p112
        %p558 = pneg %p136
        %p559 = pneg %p133
        %p560 = pneg %p157
        %p561 = pneg %p154
        %p562 = pneg %p178
        %p563 = pneg %p175
        %p564 = pneg %p199
        %p565 = pneg %p196
        %p566 = pneg %p220
        %p567 = pneg %p217
        %p568 = pneg %p241
        %p569 = pneg %p238
        %p570 = pneg %p262
        %p571 = pneg %p259
        %p572 = pneg %p283
        %p573 = pneg %p280
        %p574 = pneg %p304
        %p575 = pneg %p301
        %p576 = pneg %p325
        %p577 = pneg %p322
        %p578 = pneg %p346
        %p579 = pneg %p343
        %p580 = pneg %p372
        %p581 = pneg %p369
        %s582 = sand.u32 %s359, 1
        %s583 = scalar_lea.sflag [#allocation5], %s582
        %s584 = sand.u32 %s359, 1
        %s585 = smul.addr %s584, 8
        %s586 = scalar_lea.vmem [#allocation9], %s585
        %s587 = smul.u32 8, %s31
        %s588 = smul.u32 4, %s31
        %v590 = vld [vmem:[%s530] sm:$0xff]
        %v591 = vld [vmem:[%s530 + $0x8] sm:$0xff]
        %v592 = vld [vmem:[%s530 + $0x10] sm:$0xff]
        %v593 = vld [vmem:[%s530 + $0x18] sm:$0xff]
        %v594 = vld [vmem:[%s530 + $0x20] sm:$0xff]
        %v595 = vld [vmem:[%s530 + $0x28] sm:$0xff]
        %v596 = vld [vmem:[%s530 + $0x30] sm:$0xff]
        %v597 = vld [vmem:[%s530 + $0x38] sm:$0xff]
        %v598 = vld [vmem:[%s530 + $0x40] sm:$0xff]
        %v599 = vld [vmem:[%s530 + $0x48] sm:$0xff]
        %v600 = vld [vmem:[%s530 + $0x50] sm:$0xff]
        %v601 = vld [vmem:[%s530 + $0x58] sm:$0xff]
        %v602 = vld [vmem:[%s530 + $0x60] sm:$0xff]
        %v603 = vld [vmem:[%s530 + $0x68] sm:$0xff]
        %v604 = vld [vmem:[%s530 + $0x70] sm:$0xff]
        %v605 = vld [vmem:[%s530 + $0x78] sm:$0xff]
        %v606 = vld [vmem:[#allocation3] sm:$0xff]
        %v607 = vld [vmem:[#allocation3 + $0x8] sm:$0xff]
        %v608 = vld [vmem:[#allocation3 + $0x10] sm:$0xff]
        %v609 = vld [vmem:[#allocation3 + $0x18] sm:$0xff]
        %v610 = vld [vmem:[#allocation3 + $0x20] sm:$0xff]
        %v611 = vld [vmem:[#allocation3 + $0x28] sm:$0xff]
        %v612 = vld [vmem:[#allocation3 + $0x30] sm:$0xff]
        %v613 = vld [vmem:[#allocation3 + $0x38] sm:$0xff]
        %v614 = vld [vmem:[#allocation3 + $0x40] sm:$0xff]
        %v615 = vld [vmem:[#allocation3 + $0x48] sm:$0xff]
        %v616 = vld [vmem:[#allocation3 + $0x50] sm:$0xff]
        %v617 = vld [vmem:[#allocation3 + $0x58] sm:$0xff]
        %v618 = vld [vmem:[#allocation3 + $0x60] sm:$0xff]
        %v619 = vld [vmem:[#allocation3 + $0x68] sm:$0xff]
        %v620 = vld [vmem:[#allocation3 + $0x70] sm:$0xff]
        %v621 = vld [vmem:[#allocation3 + $0x78] sm:$0xff]
        %v622 = vld [vmem:[#allocation3 + $0x80] sm:$0xff]
        %v623 = vld [vmem:[#allocation3 + $0x88] sm:$0xff]
        %v624 = vld [vmem:[#allocation3 + $0x90] sm:$0xff]
        %v625 = vld [vmem:[#allocation3 + $0x98] sm:$0xff]
        %v626 = vld [vmem:[#allocation3 + $0xa0] sm:$0xff]
        %v627 = vld [vmem:[#allocation3 + $0xa8] sm:$0xff]
        %v628 = vld [vmem:[#allocation3 + $0xb0] sm:$0xff]
        %v629 = vld [vmem:[#allocation3 + $0xb8] sm:$0xff]
        %v630 = vld [vmem:[#allocation3 + $0xc0] sm:$0xff]
        %v631 = vld [vmem:[#allocation3 + $0xc8] sm:$0xff]
        %v632 = vld [vmem:[#allocation3 + $0xd0] sm:$0xff]
        %v633 = vld [vmem:[#allocation3 + $0xd8] sm:$0xff]
        %v634 = vld [vmem:[#allocation3 + $0xe0] sm:$0xff]
        %v635 = vld [vmem:[#allocation3 + $0xe8] sm:$0xff]
        %v636 = vld [vmem:[#allocation3 + $0xf0] sm:$0xff]
        %v637 = vld [vmem:[#allocation3 + $0xf8] sm:$0xff]
        %v638 = vld [vmem:[#allocation3 + $0x100] sm:$0xff]
        %v639 = vld [vmem:[#allocation3 + $0x108] sm:$0xff]
        %v640 = vld [vmem:[#allocation3 + $0x110] sm:$0xff]
        %v641 = vld [vmem:[#allocation3 + $0x118] sm:$0xff]
        %v642 = vld [vmem:[#allocation3 + $0x120] sm:$0xff]
        %v643 = vld [vmem:[#allocation3 + $0x128] sm:$0xff]
        %v644 = vld [vmem:[#allocation3 + $0x130] sm:$0xff]
        %v645 = vld [vmem:[#allocation3 + $0x138] sm:$0xff]
        %v646 = vld [vmem:[#allocation3 + $0x140] sm:$0xff]
        %v647 = vld [vmem:[#allocation3 + $0x148] sm:$0xff]
        %v648 = vld [vmem:[#allocation3 + $0x150] sm:$0xff]
        %v649 = vld [vmem:[#allocation3 + $0x158] sm:$0xff]
        %v650 = vld [vmem:[#allocation3 + $0x160] sm:$0xff]
        %v651 = vld [vmem:[#allocation3 + $0x168] sm:$0xff]
        %v652 = vld [vmem:[#allocation3 + $0x170] sm:$0xff]
        %v653 = vld [vmem:[#allocation3 + $0x178] sm:$0xff]
        %v654 = vld [vmem:[#allocation3 + $0x180] sm:$0xff]
        %v655 = vld [vmem:[#allocation3 + $0x188] sm:$0xff]
        %v656 = vld [vmem:[#allocation3 + $0x190] sm:$0xff]
        %v657 = vld [vmem:[#allocation3 + $0x198] sm:$0xff]
        %v658 = vld [vmem:[#allocation3 + $0x1a0] sm:$0xff]
        %v659 = vld [vmem:[#allocation3 + $0x1a8] sm:$0xff]
        %v660 = vld [vmem:[#allocation3 + $0x1b0] sm:$0xff]
        %v661 = vld [vmem:[#allocation3 + $0x1b8] sm:$0xff]
        %v662 = vld [vmem:[#allocation3 + $0x1c0] sm:$0xff]
        %v663 = vld [vmem:[#allocation3 + $0x1c8] sm:$0xff]
        %v664 = vld [vmem:[#allocation3 + $0x1d0] sm:$0xff]
        %v665 = vld [vmem:[#allocation3 + $0x1d8] sm:$0xff]
        %v666 = vld [vmem:[#allocation3 + $0x1e0] sm:$0xff]
        %v667 = vld [vmem:[#allocation3 + $0x1e8] sm:$0xff]
        %v668 = vld [vmem:[#allocation3 + $0x1f0] sm:$0xff]
        %v669 = vld [vmem:[#allocation3 + $0x1f8] sm:$0xff]
        %v670 = vld [vmem:[#allocation3 + $0x200] sm:$0xff]
        %v671 = vld [vmem:[#allocation3 + $0x208] sm:$0xff]
        %v672 = vld [vmem:[#allocation3 + $0x210] sm:$0xff]
        %v673 = vld [vmem:[#allocation3 + $0x218] sm:$0xff]
        %v674 = vld [vmem:[#allocation3 + $0x220] sm:$0xff]
        %v675 = vld [vmem:[#allocation3 + $0x228] sm:$0xff]
        %v676 = vld [vmem:[#allocation3 + $0x230] sm:$0xff]
        %v677 = vld [vmem:[#allocation3 + $0x238] sm:$0xff]
        %v678 = vld [vmem:[#allocation3 + $0x240] sm:$0xff]
        %v679 = vld [vmem:[#allocation3 + $0x248] sm:$0xff]
        %v680 = vld [vmem:[#allocation3 + $0x250] sm:$0xff]
        %v681 = vld [vmem:[#allocation3 + $0x258] sm:$0xff]
        %v682 = vld [vmem:[#allocation3 + $0x260] sm:$0xff]
        %v683 = vld [vmem:[#allocation3 + $0x268] sm:$0xff]
        %v684 = vld [vmem:[#allocation3 + $0x270] sm:$0xff]
        %v685 = vld [vmem:[#allocation3 + $0x278] sm:$0xff]
        %v686 = vld [vmem:[#allocation3 + $0x280] sm:$0xff]
        %v687 = vld [vmem:[#allocation3 + $0x288] sm:$0xff]
        %v688 = vld [vmem:[#allocation3 + $0x290] sm:$0xff]
        %v689 = vld [vmem:[#allocation3 + $0x298] sm:$0xff]
        %v690 = vld [vmem:[#allocation3 + $0x2a0] sm:$0xff]
        %v691 = vld [vmem:[#allocation3 + $0x2a8] sm:$0xff]
        %v692 = vld [vmem:[#allocation3 + $0x2b0] sm:$0xff]
        %v693 = vld [vmem:[#allocation3 + $0x2b8] sm:$0xff]
        %v694 = vld [vmem:[#allocation3 + $0x2c0] sm:$0xff]
        %v695 = vld [vmem:[#allocation3 + $0x2c8] sm:$0xff]
        %v696 = vld [vmem:[#allocation3 + $0x2d0] sm:$0xff]
        %v697 = vld [vmem:[#allocation3 + $0x2d8] sm:$0xff]
        %v698 = vld [vmem:[#allocation3 + $0x2e0] sm:$0xff]
        %v699 = vld [vmem:[#allocation3 + $0x2e8] sm:$0xff]
        %v700 = vld [vmem:[#allocation3 + $0x2f0] sm:$0xff]
        %v701 = vld [vmem:[#allocation3 + $0x2f8] sm:$0xff]
        %v702 = vld [vmem:[#allocation3 + $0x300] sm:$0xff]
        %v703 = vld [vmem:[#allocation3 + $0x308] sm:$0xff]
        %v704 = vld [vmem:[#allocation3 + $0x310] sm:$0xff]
        %v705 = vld [vmem:[#allocation3 + $0x318] sm:$0xff]
        %v706 = vld [vmem:[#allocation3 + $0x320] sm:$0xff]
        %v707 = vld [vmem:[#allocation3 + $0x328] sm:$0xff]
        %v708 = vld [vmem:[#allocation3 + $0x330] sm:$0xff]
        %v709 = vld [vmem:[#allocation3 + $0x338] sm:$0xff]
        %v710 = vld [vmem:[#allocation3 + $0x340] sm:$0xff]
        %v711 = vld [vmem:[#allocation3 + $0x348] sm:$0xff]
        %v712 = vld [vmem:[#allocation3 + $0x350] sm:$0xff]
        %v713 = vld [vmem:[#allocation3 + $0x358] sm:$0xff]
        %v714 = vld [vmem:[#allocation3 + $0x360] sm:$0xff]
        %v715 = vld [vmem:[#allocation3 + $0x368] sm:$0xff]
        %v716 = vld [vmem:[#allocation3 + $0x370] sm:$0xff]
        %v717 = vld [vmem:[#allocation3 + $0x378] sm:$0xff]
        %v718 = vld [vmem:[#allocation3 + $0x380] sm:$0xff]
        %v719 = vld [vmem:[#allocation3 + $0x388] sm:$0xff]
        %v720 = vld [vmem:[#allocation3 + $0x390] sm:$0xff]
        %v721 = vld [vmem:[#allocation3 + $0x398] sm:$0xff]
        %v722 = vld [vmem:[#allocation3 + $0x3a0] sm:$0xff]
        %v723 = vld [vmem:[#allocation3 + $0x3a8] sm:$0xff]
        %v724 = vld [vmem:[#allocation3 + $0x3b0] sm:$0xff]
        %v725 = vld [vmem:[#allocation3 + $0x3b8] sm:$0xff]
        %v726 = vld [vmem:[#allocation3 + $0x3c0] sm:$0xff]
        %v727 = vld [vmem:[#allocation3 + $0x3c8] sm:$0xff]
        %v728 = vld [vmem:[#allocation3 + $0x3d0] sm:$0xff]
        %v729 = vld [vmem:[#allocation3 + $0x3d8] sm:$0xff]
        %v730 = vld [vmem:[#allocation3 + $0x3e0] sm:$0xff]
        %v731 = vld [vmem:[#allocation3 + $0x3e8] sm:$0xff]
        %v732 = vld [vmem:[#allocation3 + $0x3f0] sm:$0xff]
        %v733 = vld [vmem:[#allocation3 + $0x3f8] sm:$0xff]
        %v750 = vunpack.c.l.b16 %v590
        %v751 = vunpack.c.h.b16 %v590
        %v752 = vunpack.c.l.b16 %v591
        %v753 = vunpack.c.h.b16 %v591
        %v754 = vunpack.c.l.b16 %v592
        %v755 = vunpack.c.h.b16 %v592
        %v756 = vunpack.c.l.b16 %v593
        %v757 = vunpack.c.h.b16 %v593
        %v758 = vunpack.c.l.b16 %v594
        %v759 = vunpack.c.h.b16 %v594
        %v760 = vunpack.c.l.b16 %v595
        %v761 = vunpack.c.h.b16 %v595
        %v762 = vunpack.c.l.b16 %v596
        %v763 = vunpack.c.h.b16 %v596
        %v764 = vunpack.c.l.b16 %v597
        %v765 = vunpack.c.h.b16 %v597
        %v766 = vunpack.c.l.b16 %v598
        %v767 = vunpack.c.h.b16 %v598
        %v768 = vunpack.c.l.b16 %v599
        %v769 = vunpack.c.h.b16 %v599
        %v770 = vunpack.c.l.b16 %v600
        %v771 = vunpack.c.h.b16 %v600
        %v772 = vunpack.c.l.b16 %v601
        %v773 = vunpack.c.h.b16 %v601
        %v774 = vunpack.c.l.b16 %v602
        %v775 = vunpack.c.h.b16 %v602
        %v776 = vunpack.c.l.b16 %v603
        %v777 = vunpack.c.h.b16 %v603
        %v778 = vunpack.c.l.b16 %v604
        %v779 = vunpack.c.h.b16 %v604
        %v780 = vunpack.c.l.b16 %v605
        %v781 = vunpack.c.h.b16 %v605
        %v782 = vpack.c.b16 %v758, %v750
        %v783 = vpack.c.b16 %v759, %v751
        %v784 = vpack.c.b16 %v760, %v752
        %v785 = vpack.c.b16 %v761, %v753
        %v786 = vpack.c.b16 %v762, %v754
        %v787 = vpack.c.b16 %v763, %v755
        %v788 = vpack.c.b16 %v764, %v756
        %v789 = vpack.c.b16 %v765, %v757
        %v790 = vpack.c.b16 %v774, %v766
        %v791 = vpack.c.b16 %v775, %v767
        %v792 = vpack.c.b16 %v776, %v768
        %v793 = vpack.c.b16 %v777, %v769
        %v794 = vpack.c.b16 %v778, %v770
        %v795 = vpack.c.b16 %v779, %v771
        %v796 = vpack.c.b16 %v780, %v772
        %v797 = vpack.c.b16 %v781, %v773
        %v942 = vunpack.c.l.b16 %v606
        %v943 = vunpack.c.h.b16 %v606
        %v944 = vunpack.c.l.b16 %v607
        %v945 = vunpack.c.h.b16 %v607
        %v946 = vunpack.c.l.b16 %v608
        %v947 = vunpack.c.h.b16 %v608
        %v948 = vunpack.c.l.b16 %v609
        %v949 = vunpack.c.h.b16 %v609
        %v950 = vunpack.c.l.b16 %v610
        %v951 = vunpack.c.h.b16 %v610
        %v952 = vunpack.c.l.b16 %v611
        %v953 = vunpack.c.h.b16 %v611
        %v954 = vunpack.c.l.b16 %v612
        %v955 = vunpack.c.h.b16 %v612
        %v956 = vunpack.c.l.b16 %v613
        %v957 = vunpack.c.h.b16 %v613
        %v958 = vunpack.c.l.b16 %v614
        %v959 = vunpack.c.h.b16 %v614
        %v960 = vunpack.c.l.b16 %v615
        %v961 = vunpack.c.h.b16 %v615
        %v962 = vunpack.c.l.b16 %v616
        %v963 = vunpack.c.h.b16 %v616
        %v964 = vunpack.c.l.b16 %v617
        %v965 = vunpack.c.h.b16 %v617
        %v966 = vunpack.c.l.b16 %v618
        %v967 = vunpack.c.h.b16 %v618
        %v968 = vunpack.c.l.b16 %v619
        %v969 = vunpack.c.h.b16 %v619
        %v970 = vunpack.c.l.b16 %v620
        %v971 = vunpack.c.h.b16 %v620
        %v972 = vunpack.c.l.b16 %v621
        %v973 = vunpack.c.h.b16 %v621
        %v974 = vunpack.c.l.b16 %v622
        %v975 = vunpack.c.h.b16 %v622
        %v976 = vunpack.c.l.b16 %v623
        %v977 = vunpack.c.h.b16 %v623
        %v978 = vunpack.c.l.b16 %v624
        %v979 = vunpack.c.h.b16 %v624
        %v980 = vunpack.c.l.b16 %v625
        %v981 = vunpack.c.h.b16 %v625
        %v982 = vunpack.c.l.b16 %v626
        %v983 = vunpack.c.h.b16 %v626
        %v984 = vunpack.c.l.b16 %v627
        %v985 = vunpack.c.h.b16 %v627
        %v986 = vunpack.c.l.b16 %v628
        %v987 = vunpack.c.h.b16 %v628
        %v988 = vunpack.c.l.b16 %v629
        %v989 = vunpack.c.h.b16 %v629
        %v990 = vunpack.c.l.b16 %v630
        %v991 = vunpack.c.h.b16 %v630
        %v992 = vunpack.c.l.b16 %v631
        %v993 = vunpack.c.h.b16 %v631
        %v994 = vunpack.c.l.b16 %v632
        %v995 = vunpack.c.h.b16 %v632
        %v996 = vunpack.c.l.b16 %v633
        %v997 = vunpack.c.h.b16 %v633
        %v998 = vunpack.c.l.b16 %v634
        %v999 = vunpack.c.h.b16 %v634
        %v1000 = vunpack.c.l.b16 %v635
        %v1001 = vunpack.c.h.b16 %v635
        %v1002 = vunpack.c.l.b16 %v636
        %v1003 = vunpack.c.h.b16 %v636
        %v1004 = vunpack.c.l.b16 %v637
        %v1005 = vunpack.c.h.b16 %v637
        %v1006 = vunpack.c.l.b16 %v638
        %v1007 = vunpack.c.h.b16 %v638
        %v1008 = vunpack.c.l.b16 %v639
        %v1009 = vunpack.c.h.b16 %v639
        %v1010 = vunpack.c.l.b16 %v640
        %v1011 = vunpack.c.h.b16 %v640
        %v1012 = vunpack.c.l.b16 %v641
        %v1013 = vunpack.c.h.b16 %v641
        %v1014 = vunpack.c.l.b16 %v642
        %v1015 = vunpack.c.h.b16 %v642
        %v1016 = vunpack.c.l.b16 %v643
        %v1017 = vunpack.c.h.b16 %v643
        %v1018 = vunpack.c.l.b16 %v644
        %v1019 = vunpack.c.h.b16 %v644
        %v1020 = vunpack.c.l.b16 %v645
        %v1021 = vunpack.c.h.b16 %v645
        %v1022 = vunpack.c.l.b16 %v646
        %v1023 = vunpack.c.h.b16 %v646
        %v1024 = vunpack.c.l.b16 %v647
        %v1025 = vunpack.c.h.b16 %v647
        %v1026 = vunpack.c.l.b16 %v648
        %v1027 = vunpack.c.h.b16 %v648
        %v1028 = vunpack.c.l.b16 %v649
        %v1029 = vunpack.c.h.b16 %v649
        %v1030 = vunpack.c.l.b16 %v650
        %v1031 = vunpack.c.h.b16 %v650
        %v1032 = vunpack.c.l.b16 %v651
        %v1033 = vunpack.c.h.b16 %v651
        %v1034 = vunpack.c.l.b16 %v652
        %v1035 = vunpack.c.h.b16 %v652
        %v1036 = vunpack.c.l.b16 %v653
        %v1037 = vunpack.c.h.b16 %v653
        %v1038 = vunpack.c.l.b16 %v654
        %v1039 = vunpack.c.h.b16 %v654
        %v1040 = vunpack.c.l.b16 %v655
        %v1041 = vunpack.c.h.b16 %v655
        %v1042 = vunpack.c.l.b16 %v656
        %v1043 = vunpack.c.h.b16 %v656
        %v1044 = vunpack.c.l.b16 %v657
        %v1045 = vunpack.c.h.b16 %v657
        %v1046 = vunpack.c.l.b16 %v658
        %v1047 = vunpack.c.h.b16 %v658
        %v1048 = vunpack.c.l.b16 %v659
        %v1049 = vunpack.c.h.b16 %v659
        %v1050 = vunpack.c.l.b16 %v660
        %v1051 = vunpack.c.h.b16 %v660
        %v1052 = vunpack.c.l.b16 %v661
        %v1053 = vunpack.c.h.b16 %v661
        %v1054 = vunpack.c.l.b16 %v662
        %v1055 = vunpack.c.h.b16 %v662
        %v1056 = vunpack.c.l.b16 %v663
        %v1057 = vunpack.c.h.b16 %v663
        %v1058 = vunpack.c.l.b16 %v664
        %v1059 = vunpack.c.h.b16 %v664
        %v1060 = vunpack.c.l.b16 %v665
        %v1061 = vunpack.c.h.b16 %v665
        %v1062 = vunpack.c.l.b16 %v666
        %v1063 = vunpack.c.h.b16 %v666
        %v1064 = vunpack.c.l.b16 %v667
        %v1065 = vunpack.c.h.b16 %v667
        %v1066 = vunpack.c.l.b16 %v668
        %v1067 = vunpack.c.h.b16 %v668
        %v1068 = vunpack.c.l.b16 %v669
        %v1069 = vunpack.c.h.b16 %v669
        %v1070 = vunpack.c.l.b16 %v670
        %v1071 = vunpack.c.h.b16 %v670
        %v1072 = vunpack.c.l.b16 %v671
        %v1073 = vunpack.c.h.b16 %v671
        %v1074 = vunpack.c.l.b16 %v672
        %v1075 = vunpack.c.h.b16 %v672
        %v1076 = vunpack.c.l.b16 %v673
        %v1077 = vunpack.c.h.b16 %v673
        %v1078 = vunpack.c.l.b16 %v674
        %v1079 = vunpack.c.h.b16 %v674
        %v1080 = vunpack.c.l.b16 %v675
        %v1081 = vunpack.c.h.b16 %v675
        %v1082 = vunpack.c.l.b16 %v676
        %v1083 = vunpack.c.h.b16 %v676
        %v1084 = vunpack.c.l.b16 %v677
        %v1085 = vunpack.c.h.b16 %v677
        %v1086 = vunpack.c.l.b16 %v678
        %v1087 = vunpack.c.h.b16 %v678
        %v1088 = vunpack.c.l.b16 %v679
        %v1089 = vunpack.c.h.b16 %v679
        %v1090 = vunpack.c.l.b16 %v680
        %v1091 = vunpack.c.h.b16 %v680
        %v1092 = vunpack.c.l.b16 %v681
        %v1093 = vunpack.c.h.b16 %v681
        %v1094 = vunpack.c.l.b16 %v682
        %v1095 = vunpack.c.h.b16 %v682
        %v1096 = vunpack.c.l.b16 %v683
        %v1097 = vunpack.c.h.b16 %v683
        %v1098 = vunpack.c.l.b16 %v684
        %v1099 = vunpack.c.h.b16 %v684
        %v1100 = vunpack.c.l.b16 %v685
        %v1101 = vunpack.c.h.b16 %v685
        %v1102 = vunpack.c.l.b16 %v686
        %v1103 = vunpack.c.h.b16 %v686
        %v1104 = vunpack.c.l.b16 %v687
        %v1105 = vunpack.c.h.b16 %v687
        %v1106 = vunpack.c.l.b16 %v688
        %v1107 = vunpack.c.h.b16 %v688
        %v1108 = vunpack.c.l.b16 %v689
        %v1109 = vunpack.c.h.b16 %v689
        %v1110 = vunpack.c.l.b16 %v690
        %v1111 = vunpack.c.h.b16 %v690
        %v1112 = vunpack.c.l.b16 %v691
        %v1113 = vunpack.c.h.b16 %v691
        %v1114 = vunpack.c.l.b16 %v692
        %v1115 = vunpack.c.h.b16 %v692
        %v1116 = vunpack.c.l.b16 %v693
        %v1117 = vunpack.c.h.b16 %v693
        %v1118 = vunpack.c.l.b16 %v694
        %v1119 = vunpack.c.h.b16 %v694
        %v1120 = vunpack.c.l.b16 %v695
        %v1121 = vunpack.c.h.b16 %v695
        %v1122 = vunpack.c.l.b16 %v696
        %v1123 = vunpack.c.h.b16 %v696
        %v1124 = vunpack.c.l.b16 %v697
        %v1125 = vunpack.c.h.b16 %v697
        %v1126 = vunpack.c.l.b16 %v698
        %v1127 = vunpack.c.h.b16 %v698
        %v1128 = vunpack.c.l.b16 %v699
        %v1129 = vunpack.c.h.b16 %v699
        %v1130 = vunpack.c.l.b16 %v700
        %v1131 = vunpack.c.h.b16 %v700
        %v1132 = vunpack.c.l.b16 %v701
        %v1133 = vunpack.c.h.b16 %v701
        %v1134 = vunpack.c.l.b16 %v702
        %v1135 = vunpack.c.h.b16 %v702
        %v1136 = vunpack.c.l.b16 %v703
        %v1137 = vunpack.c.h.b16 %v703
        %v1138 = vunpack.c.l.b16 %v704
        %v1139 = vunpack.c.h.b16 %v704
        %v1140 = vunpack.c.l.b16 %v705
        %v1141 = vunpack.c.h.b16 %v705
        %v1142 = vunpack.c.l.b16 %v706
        %v1143 = vunpack.c.h.b16 %v706
        %v1144 = vunpack.c.l.b16 %v707
        %v1145 = vunpack.c.h.b16 %v707
        %v1146 = vunpack.c.l.b16 %v708
        %v1147 = vunpack.c.h.b16 %v708
        %v1148 = vunpack.c.l.b16 %v709
        %v1149 = vunpack.c.h.b16 %v709
        %v1150 = vunpack.c.l.b16 %v710
        %v1151 = vunpack.c.h.b16 %v710
        %v1152 = vunpack.c.l.b16 %v711
        %v1153 = vunpack.c.h.b16 %v711
        %v1154 = vunpack.c.l.b16 %v712
        %v1155 = vunpack.c.h.b16 %v712
        %v1156 = vunpack.c.l.b16 %v713
        %v1157 = vunpack.c.h.b16 %v713
        %v1158 = vunpack.c.l.b16 %v714
        %v1159 = vunpack.c.h.b16 %v714
        %v1160 = vunpack.c.l.b16 %v715
        %v1161 = vunpack.c.h.b16 %v715
        %v1162 = vunpack.c.l.b16 %v716
        %v1163 = vunpack.c.h.b16 %v716
        %v1164 = vunpack.c.l.b16 %v717
        %v1165 = vunpack.c.h.b16 %v717
        %v1166 = vunpack.c.l.b16 %v718
        %v1167 = vunpack.c.h.b16 %v718
        %v1168 = vunpack.c.l.b16 %v719
        %v1169 = vunpack.c.h.b16 %v719
        %v1170 = vunpack.c.l.b16 %v720
        %v1171 = vunpack.c.h.b16 %v720
        %v1172 = vunpack.c.l.b16 %v721
        %v1173 = vunpack.c.h.b16 %v721
        %v1174 = vunpack.c.l.b16 %v722
        %v1175 = vunpack.c.h.b16 %v722
        %v1176 = vunpack.c.l.b16 %v723
        %v1177 = vunpack.c.h.b16 %v723
        %v1178 = vunpack.c.l.b16 %v724
        %v1179 = vunpack.c.h.b16 %v724
        %v1180 = vunpack.c.l.b16 %v725
        %v1181 = vunpack.c.h.b16 %v725
        %v1182 = vunpack.c.l.b16 %v726
        %v1183 = vunpack.c.h.b16 %v726
        %v1184 = vunpack.c.l.b16 %v727
        %v1185 = vunpack.c.h.b16 %v727
        %v1186 = vunpack.c.l.b16 %v728
        %v1187 = vunpack.c.h.b16 %v728
        %v1188 = vunpack.c.l.b16 %v729
        %v1189 = vunpack.c.h.b16 %v729
        %v1190 = vunpack.c.l.b16 %v730
        %v1191 = vunpack.c.h.b16 %v730
        %v1192 = vunpack.c.l.b16 %v731
        %v1193 = vunpack.c.h.b16 %v731
        %v1194 = vunpack.c.l.b16 %v732
        %v1195 = vunpack.c.h.b16 %v732
        %v1196 = vunpack.c.l.b16 %v733
        %v1197 = vunpack.c.h.b16 %v733
        %v1198 = vpack.c.b16 %v944, %v942
        %v1199 = vpack.c.b16 %v945, %v943
        %v1200 = vpack.c.b16 %v948, %v946
        %v1201 = vpack.c.b16 %v949, %v947
        %v1202 = vpack.c.b16 %v952, %v950
        %v1203 = vpack.c.b16 %v953, %v951
        %v1204 = vpack.c.b16 %v956, %v954
        %v1205 = vpack.c.b16 %v957, %v955
        %v1206 = vpack.c.b16 %v960, %v958
        %v1207 = vpack.c.b16 %v961, %v959
        %v1208 = vpack.c.b16 %v964, %v962
        %v1209 = vpack.c.b16 %v965, %v963
        %v1210 = vpack.c.b16 %v968, %v966
        %v1211 = vpack.c.b16 %v969, %v967
        %v1212 = vpack.c.b16 %v972, %v970
        %v1213 = vpack.c.b16 %v973, %v971
        %v1214 = vpack.c.b16 %v976, %v974
        %v1215 = vpack.c.b16 %v977, %v975
        %v1216 = vpack.c.b16 %v980, %v978
        %v1217 = vpack.c.b16 %v981, %v979
        %v1218 = vpack.c.b16 %v984, %v982
        %v1219 = vpack.c.b16 %v985, %v983
        %v1220 = vpack.c.b16 %v988, %v986
        %v1221 = vpack.c.b16 %v989, %v987
        %v1222 = vpack.c.b16 %v992, %v990
        %v1223 = vpack.c.b16 %v993, %v991
        %v1224 = vpack.c.b16 %v996, %v994
        %v1225 = vpack.c.b16 %v997, %v995
        %v1226 = vpack.c.b16 %v1000, %v998
        %v1227 = vpack.c.b16 %v1001, %v999
        %v1228 = vpack.c.b16 %v1004, %v1002
        %v1229 = vpack.c.b16 %v1005, %v1003
        %v1230 = vpack.c.b16 %v1008, %v1006
        %v1231 = vpack.c.b16 %v1009, %v1007
        %v1232 = vpack.c.b16 %v1012, %v1010
        %v1233 = vpack.c.b16 %v1013, %v1011
        %v1234 = vpack.c.b16 %v1016, %v1014
        %v1235 = vpack.c.b16 %v1017, %v1015
        %v1236 = vpack.c.b16 %v1020, %v1018
        %v1237 = vpack.c.b16 %v1021, %v1019
        %v1238 = vpack.c.b16 %v1024, %v1022
        %v1239 = vpack.c.b16 %v1025, %v1023
        %v1240 = vpack.c.b16 %v1028, %v1026
        %v1241 = vpack.c.b16 %v1029, %v1027
        %v1242 = vpack.c.b16 %v1032, %v1030
        %v1243 = vpack.c.b16 %v1033, %v1031
        %v1244 = vpack.c.b16 %v1036, %v1034
        %v1245 = vpack.c.b16 %v1037, %v1035
        %v1246 = vpack.c.b16 %v1040, %v1038
        %v1247 = vpack.c.b16 %v1041, %v1039
        %v1248 = vpack.c.b16 %v1044, %v1042
        %v1249 = vpack.c.b16 %v1045, %v1043
        %v1250 = vpack.c.b16 %v1048, %v1046
        %v1251 = vpack.c.b16 %v1049, %v1047
        %v1252 = vpack.c.b16 %v1052, %v1050
        %v1253 = vpack.c.b16 %v1053, %v1051
        %v1254 = vpack.c.b16 %v1056, %v1054
        %v1255 = vpack.c.b16 %v1057, %v1055
        %v1256 = vpack.c.b16 %v1060, %v1058
        %v1257 = vpack.c.b16 %v1061, %v1059
        %v1258 = vpack.c.b16 %v1064, %v1062
        %v1259 = vpack.c.b16 %v1065, %v1063
        %v1260 = vpack.c.b16 %v1068, %v1066
        %v1261 = vpack.c.b16 %v1069, %v1067
        %v1262 = vpack.c.b16 %v1072, %v1070
        %v1263 = vpack.c.b16 %v1073, %v1071
        %v1264 = vpack.c.b16 %v1076, %v1074
        %v1265 = vpack.c.b16 %v1077, %v1075
        %v1266 = vpack.c.b16 %v1080, %v1078
        %v1267 = vpack.c.b16 %v1081, %v1079
        %v1268 = vpack.c.b16 %v1084, %v1082
        %v1269 = vpack.c.b16 %v1085, %v1083
        %v1270 = vpack.c.b16 %v1088, %v1086
        %v1271 = vpack.c.b16 %v1089, %v1087
        %v1272 = vpack.c.b16 %v1092, %v1090
        %v1273 = vpack.c.b16 %v1093, %v1091
        %v1274 = vpack.c.b16 %v1096, %v1094
        %v1275 = vpack.c.b16 %v1097, %v1095
        %v1276 = vpack.c.b16 %v1100, %v1098
        %v1277 = vpack.c.b16 %v1101, %v1099
        %v1278 = vpack.c.b16 %v1104, %v1102
        %v1279 = vpack.c.b16 %v1105, %v1103
        %v1280 = vpack.c.b16 %v1108, %v1106
        %v1281 = vpack.c.b16 %v1109, %v1107
        %v1282 = vpack.c.b16 %v1112, %v1110
        %v1283 = vpack.c.b16 %v1113, %v1111
        %v1284 = vpack.c.b16 %v1116, %v1114
        %v1285 = vpack.c.b16 %v1117, %v1115
        %v1286 = vpack.c.b16 %v1120, %v1118
        %v1287 = vpack.c.b16 %v1121, %v1119
        %v1288 = vpack.c.b16 %v1124, %v1122
        %v1289 = vpack.c.b16 %v1125, %v1123
        %v1290 = vpack.c.b16 %v1128, %v1126
        %v1291 = vpack.c.b16 %v1129, %v1127
        %v1292 = vpack.c.b16 %v1132, %v1130
        %v1293 = vpack.c.b16 %v1133, %v1131
        %v1294 = vpack.c.b16 %v1136, %v1134
        %v1295 = vpack.c.b16 %v1137, %v1135
        %v1296 = vpack.c.b16 %v1140, %v1138
        %v1297 = vpack.c.b16 %v1141, %v1139
        %v1298 = vpack.c.b16 %v1144, %v1142
        %v1299 = vpack.c.b16 %v1145, %v1143
        %v1300 = vpack.c.b16 %v1148, %v1146
        %v1301 = vpack.c.b16 %v1149, %v1147
        %v1302 = vpack.c.b16 %v1152, %v1150
        %v1303 = vpack.c.b16 %v1153, %v1151
        %v1304 = vpack.c.b16 %v1156, %v1154
        %v1305 = vpack.c.b16 %v1157, %v1155
        %v1306 = vpack.c.b16 %v1160, %v1158
        %v1307 = vpack.c.b16 %v1161, %v1159
        %v1308 = vpack.c.b16 %v1164, %v1162
        %v1309 = vpack.c.b16 %v1165, %v1163
        %v1310 = vpack.c.b16 %v1168, %v1166
        %v1311 = vpack.c.b16 %v1169, %v1167
        %v1312 = vpack.c.b16 %v1172, %v1170
        %v1313 = vpack.c.b16 %v1173, %v1171
        %v1314 = vpack.c.b16 %v1176, %v1174
        %v1315 = vpack.c.b16 %v1177, %v1175
        %v1316 = vpack.c.b16 %v1180, %v1178
        %v1317 = vpack.c.b16 %v1181, %v1179
        %v1318 = vpack.c.b16 %v1184, %v1182
        %v1319 = vpack.c.b16 %v1185, %v1183
        %v1320 = vpack.c.b16 %v1188, %v1186
        %v1321 = vpack.c.b16 %v1189, %v1187
        %v1322 = vpack.c.b16 %v1192, %v1190
        %v1323 = vpack.c.b16 %v1193, %v1191
        %v1324 = vpack.c.b16 %v1196, %v1194
        %v1325 = vpack.c.b16 %v1197, %v1195
        %1454 = vmatprep.subr.bf16.mxu0 %v1213
        %1455 = vmatpush1.bf16.msra.mxu0 %v1212
        %1456 = vmatprep.subr.bf16.mxu0 %v1211
        %1457 = vmatpush1.bf16.msra.mxu0 %v1210
        %1458 = vmatprep.subr.bf16.mxu0 %v1209
        %1459 = vmatpush1.bf16.msra.mxu0 %v1208
        %1460 = vmatprep.subr.bf16.mxu0 %v1207
        %1461 = vmatpush1.bf16.msra.mxu0 %v1206
        %1462 = vmatprep.subr.bf16.mxu0 %v1205
        %1463 = vmatpush1.bf16.msra.mxu0 %v1204
        %1464 = vmatprep.subr.bf16.mxu0 %v1203
        %1465 = vmatpush1.bf16.msra.mxu0 %v1202
        %1466 = vmatprep.subr.bf16.mxu0 %v1201
        %1467 = vmatpush1.bf16.msra.mxu0 %v1200
        %1468 = vmatprep.subr.bf16.mxu0 %v1199
        %1469 = vmatpush1.bf16.msra.mxu0 %v1198
        %1470 = vmatprep.subr.bf16.mxu0 %v1229
        %1471 = vmatpush2.bf16.msra.mxu0 %v1228
        %1472 = vmatprep.subr.bf16.mxu0 %v1227
        %1473 = vmatpush2.bf16.msra.mxu0 %v1226
        %1474 = vmatprep.subr.bf16.mxu0 %v1225
        %1475 = vmatpush2.bf16.msra.mxu0 %v1224
        %1476 = vmatprep.subr.bf16.mxu0 %v1223
        %1477 = vmatpush2.bf16.msra.mxu0 %v1222
        %1478 = vmatprep.subr.bf16.mxu0 %v1221
        %1479 = vmatpush2.bf16.msra.mxu0 %v1220
        %1480 = vmatprep.subr.bf16.mxu0 %v1219
        %1481 = vmatpush2.bf16.msra.mxu0 %v1218
        %1482 = vmatprep.subr.bf16.mxu0 %v1217
        %1483 = vmatpush2.bf16.msra.mxu0 %v1216
        %1484 = vmatprep.subr.bf16.mxu0 %v1215
        %1485 = vmatpush2.bf16.msra.mxu0 %v1214
        %1486 = vmatprep.mubr.bf16.mxu0 %v783
        %1487 = vmatmul.mubr.bf16.gmra.mxu0 %v782
        %v1488 = vpop.f32.mrf.mxu0
        %v1489 = vadd.f32 0.0, %v1488
        %v1490 = vpop.f32.mrf.mxu0
        %v1491 = vadd.f32 0.0, %v1490
        %v1492 = vpop.f32.mrf.mxu0
        %v1493 = vadd.f32 0.0, %v1492
        %v1494 = vpop.f32.mrf.mxu0
        %v1495 = vadd.f32 0.0, %v1494
        %1496 = vmatprep.mubr.bf16.mxu0 %v791
        %1497 = vmatmul.mubr.bf16.gmra.mxu0 %v790
        %v1498 = vpop.f32.mrf.mxu0
        %v1499 = vadd.f32 0.0, %v1498
        %v1500 = vpop.f32.mrf.mxu0
        %v1501 = vadd.f32 0.0, %v1500
        %v1502 = vpop.f32.mrf.mxu0
        %v1503 = vadd.f32 0.0, %v1502
        %v1504 = vpop.f32.mrf.mxu0
        %v1505 = vadd.f32 0.0, %v1504
        %1506 = vdwg.mxu0
        %1507 = vmatprep.subr.bf16.mxu0 %v1245
        %1508 = vmatpush1.bf16.msra.mxu0 %v1244
        %1509 = vmatprep.subr.bf16.mxu0 %v1243
        %1510 = vmatpush1.bf16.msra.mxu0 %v1242
        %1511 = vmatprep.subr.bf16.mxu0 %v1241
        %1512 = vmatpush1.bf16.msra.mxu0 %v1240
        %1513 = vmatprep.subr.bf16.mxu0 %v1239
        %1514 = vmatpush1.bf16.msra.mxu0 %v1238
        %1515 = vmatprep.subr.bf16.mxu0 %v1237
        %1516 = vmatpush1.bf16.msra.mxu0 %v1236
        %1517 = vmatprep.subr.bf16.mxu0 %v1235
        %1518 = vmatpush1.bf16.msra.mxu0 %v1234
        %1519 = vmatprep.subr.bf16.mxu0 %v1233
        %1520 = vmatpush1.bf16.msra.mxu0 %v1232
        %1521 = vmatprep.subr.bf16.mxu0 %v1231
        %1522 = vmatpush1.bf16.msra.mxu0 %v1230
        %1523 = vmatprep.subr.bf16.mxu0 %v1261
        %1524 = vmatpush2.bf16.msra.mxu0 %v1260
        %1525 = vmatprep.subr.bf16.mxu0 %v1259
        %1526 = vmatpush2.bf16.msra.mxu0 %v1258
        %1527 = vmatprep.subr.bf16.mxu0 %v1257
        %1528 = vmatpush2.bf16.msra.mxu0 %v1256
        %1529 = vmatprep.subr.bf16.mxu0 %v1255
        %1530 = vmatpush2.bf16.msra.mxu0 %v1254
        %1531 = vmatprep.subr.bf16.mxu0 %v1253
        %1532 = vmatpush2.bf16.msra.mxu0 %v1252
        %1533 = vmatprep.subr.bf16.mxu0 %v1251
        %1534 = vmatpush2.bf16.msra.mxu0 %v1250
        %1535 = vmatprep.subr.bf16.mxu0 %v1249
        %1536 = vmatpush2.bf16.msra.mxu0 %v1248
        %1537 = vmatprep.subr.bf16.mxu0 %v1247
        %1538 = vmatpush2.bf16.msra.mxu0 %v1246
        %1539 = vmatprep.mubr.bf16.mxu0 %v785
        %1540 = vmatmul.mubr.bf16.gmra.mxu0 %v784
        %v1541 = vpop.f32.mrf.mxu0
        %v1542 = vadd.f32 %v1489, %v1541
        %v1543 = vpop.f32.mrf.mxu0
        %v1544 = vadd.f32 %v1491, %v1543
        %v1545 = vpop.f32.mrf.mxu0
        %v1546 = vadd.f32 %v1493, %v1545
        %v1547 = vpop.f32.mrf.mxu0
        %v1548 = vadd.f32 %v1495, %v1547
        %1549 = vmatprep.mubr.bf16.mxu0 %v793
        %1550 = vmatmul.mubr.bf16.gmra.mxu0 %v792
        %v1551 = vpop.f32.mrf.mxu0
        %v1552 = vadd.f32 %v1499, %v1551
        %v1553 = vpop.f32.mrf.mxu0
        %v1554 = vadd.f32 %v1501, %v1553
        %v1555 = vpop.f32.mrf.mxu0
        %v1556 = vadd.f32 %v1503, %v1555
        %v1557 = vpop.f32.mrf.mxu0
        %v1558 = vadd.f32 %v1505, %v1557
        %1559 = vdwg.mxu0
        %1560 = vmatprep.subr.bf16.mxu0 %v1277
        %1561 = vmatpush1.bf16.msra.mxu0 %v1276
        %1562 = vmatprep.subr.bf16.mxu0 %v1275
        %1563 = vmatpush1.bf16.msra.mxu0 %v1274
        %1564 = vmatprep.subr.bf16.mxu0 %v1273
        %1565 = vmatpush1.bf16.msra.mxu0 %v1272
        %1566 = vmatprep.subr.bf16.mxu0 %v1271
        %1567 = vmatpush1.bf16.msra.mxu0 %v1270
        %1568 = vmatprep.subr.bf16.mxu0 %v1269
        %1569 = vmatpush1.bf16.msra.mxu0 %v1268
        %1570 = vmatprep.subr.bf16.mxu0 %v1267
        %1571 = vmatpush1.bf16.msra.mxu0 %v1266
        %1572 = vmatprep.subr.bf16.mxu0 %v1265
        %1573 = vmatpush1.bf16.msra.mxu0 %v1264
        %1574 = vmatprep.subr.bf16.mxu0 %v1263
        %1575 = vmatpush1.bf16.msra.mxu0 %v1262
        %1576 = vmatprep.subr.bf16.mxu0 %v1293
        %1577 = vmatpush2.bf16.msra.mxu0 %v1292
        %1578 = vmatprep.subr.bf16.mxu0 %v1291
        %1579 = vmatpush2.bf16.msra.mxu0 %v1290
        %1580 = vmatprep.subr.bf16.mxu0 %v1289
        %1581 = vmatpush2.bf16.msra.mxu0 %v1288
        %1582 = vmatprep.subr.bf16.mxu0 %v1287
        %1583 = vmatpush2.bf16.msra.mxu0 %v1286
        %1584 = vmatprep.subr.bf16.mxu0 %v1285
        %1585 = vmatpush2.bf16.msra.mxu0 %v1284
        %1586 = vmatprep.subr.bf16.mxu0 %v1283
        %1587 = vmatpush2.bf16.msra.mxu0 %v1282
        %1588 = vmatprep.subr.bf16.mxu0 %v1281
        %1589 = vmatpush2.bf16.msra.mxu0 %v1280
        %1590 = vmatprep.subr.bf16.mxu0 %v1279
        %1591 = vmatpush2.bf16.msra.mxu0 %v1278
        %1592 = vmatprep.mubr.bf16.mxu0 %v787
        %1593 = vmatmul.mubr.bf16.gmra.mxu0 %v786
        %v1594 = vpop.f32.mrf.mxu0
        %v1595 = vadd.f32 %v1542, %v1594
        %v1596 = vpop.f32.mrf.mxu0
        %v1597 = vadd.f32 %v1544, %v1596
        %v1598 = vpop.f32.mrf.mxu0
        %v1599 = vadd.f32 %v1546, %v1598
        %v1600 = vpop.f32.mrf.mxu0
        %v1601 = vadd.f32 %v1548, %v1600
        %1602 = vmatprep.mubr.bf16.mxu0 %v795
        %1603 = vmatmul.mubr.bf16.gmra.mxu0 %v794
        %v1604 = vpop.f32.mrf.mxu0
        %v1605 = vadd.f32 %v1552, %v1604
        %v1606 = vpop.f32.mrf.mxu0
        %v1607 = vadd.f32 %v1554, %v1606
        %v1608 = vpop.f32.mrf.mxu0
        %v1609 = vadd.f32 %v1556, %v1608
        %v1610 = vpop.f32.mrf.mxu0
        %v1611 = vadd.f32 %v1558, %v1610
        %1612 = vdwg.mxu0
        %1613 = vmatprep.subr.bf16.mxu0 %v1309
        %1614 = vmatpush1.bf16.msra.mxu0 %v1308
        %1615 = vmatprep.subr.bf16.mxu0 %v1307
        %1616 = vmatpush1.bf16.msra.mxu0 %v1306
        %1617 = vmatprep.subr.bf16.mxu0 %v1305
        %1618 = vmatpush1.bf16.msra.mxu0 %v1304
        %1619 = vmatprep.subr.bf16.mxu0 %v1303
        %1620 = vmatpush1.bf16.msra.mxu0 %v1302
        %1621 = vmatprep.subr.bf16.mxu0 %v1301
        %1622 = vmatpush1.bf16.msra.mxu0 %v1300
        %1623 = vmatprep.subr.bf16.mxu0 %v1299
        %1624 = vmatpush1.bf16.msra.mxu0 %v1298
        %1625 = vmatprep.subr.bf16.mxu0 %v1297
        %1626 = vmatpush1.bf16.msra.mxu0 %v1296
        %1627 = vmatprep.subr.bf16.mxu0 %v1295
        %1628 = vmatpush1.bf16.msra.mxu0 %v1294
        %1629 = vmatprep.subr.bf16.mxu0 %v1325
        %1630 = vmatpush2.bf16.msra.mxu0 %v1324
        %1631 = vmatprep.subr.bf16.mxu0 %v1323
        %1632 = vmatpush2.bf16.msra.mxu0 %v1322
        %1633 = vmatprep.subr.bf16.mxu0 %v1321
        %1634 = vmatpush2.bf16.msra.mxu0 %v1320
        %1635 = vmatprep.subr.bf16.mxu0 %v1319
        %1636 = vmatpush2.bf16.msra.mxu0 %v1318
        %1637 = vmatprep.subr.bf16.mxu0 %v1317
        %1638 = vmatpush2.bf16.msra.mxu0 %v1316
        %1639 = vmatprep.subr.bf16.mxu0 %v1315
        %1640 = vmatpush2.bf16.msra.mxu0 %v1314
        %1641 = vmatprep.subr.bf16.mxu0 %v1313
        %1642 = vmatpush2.bf16.msra.mxu0 %v1312
        %1643 = vmatprep.subr.bf16.mxu0 %v1311
        %1644 = vmatpush2.bf16.msra.mxu0 %v1310
        %1645 = vmatprep.mubr.bf16.mxu0 %v789
        %1646 = vmatmul.mubr.bf16.gmra.mxu0 %v788
        %v1647 = vpop.f32.mrf.mxu0
        %v1648 = vadd.f32 %v1595, %v1647
        %v1649 = vpop.f32.mrf.mxu0
        %v1650 = vadd.f32 %v1597, %v1649
        %v1651 = vpop.f32.mrf.mxu0
        %v1652 = vadd.f32 %v1599, %v1651
        %v1653 = vpop.f32.mrf.mxu0
        %v1654 = vadd.f32 %v1601, %v1653
        %1655 = vmatprep.mubr.bf16.mxu0 %v797
        %1656 = vmatmul.mubr.bf16.gmra.mxu0 %v796
        %v1657 = vpop.f32.mrf.mxu0
        %v1658 = vadd.f32 %v1605, %v1657
        %v1659 = vpop.f32.mrf.mxu0
        %v1660 = vadd.f32 %v1607, %v1659
        %v1661 = vpop.f32.mrf.mxu0
        %v1662 = vadd.f32 %v1609, %v1661
        %v1663 = vpop.f32.mrf.mxu0
        %v1664 = vadd.f32 %v1611, %v1663
        %1665 = vdwg.mxu0
        %v1666 = vld [vmem:[%s5] sm:$0xf]
        %v1667 = vld [vmem:[%s5 + $0x4] sm:$0xf]
        %v1668 = vld [vmem:[%s5 + $0x8] sm:$0xf]
        %v1669 = vld [vmem:[%s5 + $0xc] sm:$0xf]
        %v1670 = vpack.c.bf16 %v1652, %v1648
        %v1671 = vpack.c.bf16 %v1654, %v1650
        %v1672 = vpack.c.bf16 %v1662, %v1658
        %v1673 = vpack.c.bf16 %v1664, %v1660
        %v1678 = vunpack.c.l.b16 %v1666
        %v1679 = vunpack.c.l.b16 %v1667
        %v1680 = vunpack.c.l.b16 %v1668
        %v1681 = vunpack.c.l.b16 %v1669
        %v1682 = vpack.c.b16 %v1679, %v1678
        %v1683 = vpack.c.b16 %v1681, %v1680
        %vm1684 = vcmask 261120
        %v1686 = vsel %vm1684, %v1682, 0
        %v1689 = vsel %vm1684, %v1683, 0
        %1691 = vmatprep.subr.bf16.mxu0 0
        %1692 = vmatpush1.bf16.msra.mxu0 0
        %1693 = vmatprep.subr.bf16.mxu0 0
        %1694 = vmatpush1.bf16.msra.mxu0 0
        %1695 = vmatprep.subr.bf16.mxu0 0
        %1696 = vmatpush1.bf16.msra.mxu0 0
        %1697 = vmatprep.subr.bf16.mxu0 0
        %1698 = vmatpush1.bf16.msra.mxu0 0
        %1699 = vmatprep.subr.bf16.mxu0 0
        %1700 = vmatpush1.bf16.msra.mxu0 0
        %1701 = vmatprep.subr.bf16.mxu0 0
        %1702 = vmatpush1.bf16.msra.mxu0 0
        %1703 = vmatprep.subr.bf16.mxu0 %v1673
        %1704 = vmatpush1.bf16.msra.mxu0 %v1672
        %1705 = vmatprep.subr.bf16.mxu0 %v1671
        %1706 = vmatpush1.bf16.msra.mxu0 %v1670
        %1707 = vmatprep.subr.bf16.mxu0 0
        %1708 = vmatpush2.bf16.msra.mxu0 0
        %1709 = vmatprep.subr.bf16.mxu0 0
        %1710 = vmatpush2.bf16.msra.mxu0 0
        %1711 = vmatprep.subr.bf16.mxu0 0
        %1712 = vmatpush2.bf16.msra.mxu0 0
        %1713 = vmatprep.subr.bf16.mxu0 0
        %1714 = vmatpush2.bf16.msra.mxu0 0
        %1715 = vmatprep.subr.bf16.mxu0 0
        %1716 = vmatpush2.bf16.msra.mxu0 0
        %1717 = vmatprep.subr.bf16.mxu0 0
        %1718 = vmatpush2.bf16.msra.mxu0 0
        %1719 = vmatprep.subr.bf16.mxu0 0
        %1720 = vmatpush2.bf16.msra.mxu0 0
        %1721 = vmatprep.subr.bf16.mxu0 0
        %1722 = vmatpush2.bf16.msra.mxu0 0
        %1723 = vmatprep.mubr.bf16.mxu0 0
        %1724 = vmatmul.mubr.bf16.gmra.mxu0 %v1686
        %v1725 = vpop.f32.mrf.mxu0
        %v1726 = vadd.f32 0.0, %v1725
        %v1727 = vpop.f32.mrf.mxu0
        %v1728 = vadd.f32 0.0, %v1727
        %v1729 = vpop.f32.mrf.mxu0
        %v1730 = vadd.f32 0.0, %v1729
        %v1731 = vpop.f32.mrf.mxu0
        %v1732 = vadd.f32 0.0, %v1731
        %1733 = vmatprep.mubr.bf16.mxu0 0
        %1734 = vmatmul.mubr.bf16.gmra.mxu0 %v1689
        %v1735 = vpop.f32.mrf.mxu0
        %v1736 = vadd.f32 0.0, %v1735
        %v1737 = vpop.f32.mrf.mxu0
        %v1738 = vadd.f32 0.0, %v1737
        %v1739 = vpop.f32.mrf.mxu0
        %v1740 = vadd.f32 0.0, %v1739
        %v1741 = vpop.f32.mrf.mxu0
        %v1742 = vadd.f32 0.0, %v1741
        %1743 = vdwg.mxu0
        %v1744 = vld [vmem:[%s6] sm:$0xff]
        %v1745 = vld [vmem:[%s6 + $0x8] sm:$0xff]
        %v1746 = vld [vmem:[%s6 + $0x10] sm:$0xff]
        %v1747 = vld [vmem:[%s6 + $0x18] sm:$0xff]
        %1749 = vset.pattern.permute.xlu0 0
        %1750 = vperm.xlu0 %1749, %v1744
        %v1751 = vpop.permute.xlu0 %1750
        %1754 = vset.pattern.permute.xlu0 0
        %1755 = vperm.xlu0 %1754, %v1745
        %v1756 = vpop.permute.xlu0 %1755
        %1759 = vset.pattern.permute.xlu0 0
        %1760 = vperm.xlu0 %1759, %v1746
        %v1761 = vpop.permute.xlu0 %1760
        %1764 = vset.pattern.permute.xlu0 0
        %1765 = vperm.xlu0 %1764, %v1747
        %v1766 = vpop.permute.xlu0 %1765
        %v1768 = vmul.f32 %v1726, %v1751
        %v1769 = vmul.f32 %v1728, %v1751
        %v1770 = vmul.f32 %v1730, %v1756
        %v1771 = vmul.f32 %v1732, %v1756
        %v1772 = vmul.f32 %v1736, %v1761
        %v1773 = vmul.f32 %v1738, %v1761
        %v1774 = vmul.f32 %v1740, %v1766
        %v1775 = vmul.f32 %v1742, %v1766
        %v1776 = vld [vmem:[%s7] sm:$0xff]
        %v1777 = vld [vmem:[%s7 + $0x8] sm:$0xff]
        %v1778 = vld [vmem:[%s7 + $0x10] sm:$0xff]
        %v1779 = vld [vmem:[%s7 + $0x18] sm:$0xff]
        %1781 = vset.pattern.permute.xlu0 0
        %1782 = vperm.xlu0 %1781, %v1776
        %v1783 = vpop.permute.xlu0 %1782
        %1786 = vset.pattern.permute.xlu0 0
        %1787 = vperm.xlu0 %1786, %v1777
        %v1788 = vpop.permute.xlu0 %1787
        %1791 = vset.pattern.permute.xlu0 0
        %1792 = vperm.xlu0 %1791, %v1778
        %v1793 = vpop.permute.xlu0 %1792
        %1796 = vset.pattern.permute.xlu0 0
        %1797 = vperm.xlu0 %1796, %v1779
        %v1798 = vpop.permute.xlu0 %1797
        %v1800 = vadd.f32 %v1768, %v1783
        %v1801 = vadd.f32 %v1769, %v1783
        %v1802 = vadd.f32 %v1770, %v1788
        %v1803 = vadd.f32 %v1771, %v1788
        %v1804 = vadd.f32 %v1772, %v1793
        %v1805 = vadd.f32 %v1773, %v1793
        %v1806 = vadd.f32 %v1774, %v1798
        %v1807 = vadd.f32 %v1775, %v1798
        %v1808 = vmax.f32 %v1800, 0.0
        %v1809 = vmax.f32 %v1801, 0.0
        %v1810 = vmax.f32 %v1802, 0.0
        %v1811 = vmax.f32 %v1803, 0.0
        %v1812 = vmax.f32 %v1804, 0.0
        %v1813 = vmax.f32 %v1805, 0.0
        %v1814 = vmax.f32 %v1806, 0.0
        %v1815 = vmax.f32 %v1807, 0.0
        %1816 = vrot.lane.b32.xlu0 %v1808, 8
        %v1817 = vpop.permute.xlu0 %1816
        %1818 = vrot.lane.b32.xlu0 %v1810, 8
        %v1819 = vpop.permute.xlu0 %1818
        %1820 = vrot.lane.b32.xlu0 %v1812, 8
        %v1821 = vpop.permute.xlu0 %1820
        %1822 = vrot.lane.b32.xlu0 %v1814, 8
        %v1823 = vpop.permute.xlu0 %1822
        %1824 = vrot.lane.b32.xlu0 %v1809, 8
        %v1825 = vpop.permute.xlu0 %1824
        %1826 = vrot.lane.b32.xlu0 %v1811, 8
        %v1827 = vpop.permute.xlu0 %1826
        %1828 = vrot.lane.b32.xlu0 %v1813, 8
        %v1829 = vpop.permute.xlu0 %1828
        %1830 = vrot.lane.b32.xlu0 %v1815, 8
        %v1831 = vpop.permute.xlu0 %1830
        %v1832 = vlaneseq
        %v1833 = vand.u32 %v1832, 127
        %vm1834 = vcmp.lt.s32.totalorder %v1833, 8
        %v1835 = vsel %vm1834, %v1817, %v1825
        %v1836 = vsel %vm1834, %v1819, %v1827
        %v1837 = vsel %vm1834, %v1821, %v1829
        %v1838 = vsel %vm1834, %v1823, %v1831
        %v1839 = vsel %vm1834, %v1825, %v1817
        %v1840 = vsel %vm1834, %v1827, %v1819
        %v1841 = vsel %vm1834, %v1829, %v1821
        %v1842 = vsel %vm1834, %v1831, %v1823
        %1843 = vrot.lane.b32.xlu0 %v1808, 7
        %v1844 = vpop.permute.xlu0 %1843
        %1845 = vrot.lane.b32.xlu0 %v1810, 7
        %v1846 = vpop.permute.xlu0 %1845
        %1847 = vrot.lane.b32.xlu0 %v1812, 7
        %v1848 = vpop.permute.xlu0 %1847
        %1849 = vrot.lane.b32.xlu0 %v1814, 7
        %v1850 = vpop.permute.xlu0 %1849
        %1851 = vrot.lane.b32.xlu0 %v1809, 7
        %v1852 = vpop.permute.xlu0 %1851
        %1853 = vrot.lane.b32.xlu0 %v1811, 7
        %v1854 = vpop.permute.xlu0 %1853
        %1855 = vrot.lane.b32.xlu0 %v1813, 7
        %v1856 = vpop.permute.xlu0 %1855
        %1857 = vrot.lane.b32.xlu0 %v1815, 7
        %v1858 = vpop.permute.xlu0 %1857
        %vm1859 = vcmp.lt.s32.totalorder %v1833, 7
        %v1860 = vsel %vm1859, %v1844, %v1852
        %v1861 = vsel %vm1859, %v1846, %v1854
        %v1862 = vsel %vm1859, %v1848, %v1856
        %v1863 = vsel %vm1859, %v1850, %v1858
        %v1864 = vsel %vm1859, %v1852, %v1844
        %v1865 = vsel %vm1859, %v1854, %v1846
        %v1866 = vsel %vm1859, %v1856, %v1848
        %v1867 = vsel %vm1859, %v1858, %v1850
        %1868 = vrot.lane.b32.xlu0 %v1808, 6
        %v1869 = vpop.permute.xlu0 %1868
        %1870 = vrot.lane.b32.xlu0 %v1810, 6
        %v1871 = vpop.permute.xlu0 %1870
        %1872 = vrot.lane.b32.xlu0 %v1812, 6
        %v1873 = vpop.permute.xlu0 %1872
        %1874 = vrot.lane.b32.xlu0 %v1814, 6
        %v1875 = vpop.permute.xlu0 %1874
        %1876 = vrot.lane.b32.xlu0 %v1809, 6
        %v1877 = vpop.permute.xlu0 %1876
        %1878 = vrot.lane.b32.xlu0 %v1811, 6
        %v1879 = vpop.permute.xlu0 %1878
        %1880 = vrot.lane.b32.xlu0 %v1813, 6
        %v1881 = vpop.permute.xlu0 %1880
        %1882 = vrot.lane.b32.xlu0 %v1815, 6
        %v1883 = vpop.permute.xlu0 %1882
        %vm1884 = vcmp.lt.s32.totalorder %v1833, 6
        %v1885 = vsel %vm1884, %v1869, %v1877
        %v1886 = vsel %vm1884, %v1871, %v1879
        %v1887 = vsel %vm1884, %v1873, %v1881
        %v1888 = vsel %vm1884, %v1875, %v1883
        %v1889 = vsel %vm1884, %v1877, %v1869
        %v1890 = vsel %vm1884, %v1879, %v1871
        %v1891 = vsel %vm1884, %v1881, %v1873
        %v1892 = vsel %vm1884, %v1883, %v1875
        %1893 = vrot.lane.b32.xlu0 %v1808, 1
        %v1894 = vpop.permute.xlu0 %1893
        %1895 = vrot.lane.b32.xlu0 %v1810, 1
        %v1896 = vpop.permute.xlu0 %1895
        %1897 = vrot.lane.b32.xlu0 %v1812, 1
        %v1898 = vpop.permute.xlu0 %1897
        %1899 = vrot.lane.b32.xlu0 %v1814, 1
        %v1900 = vpop.permute.xlu0 %1899
        %1901 = vrot.lane.b32.xlu0 %v1809, 1
        %v1902 = vpop.permute.xlu0 %1901
        %1903 = vrot.lane.b32.xlu0 %v1811, 1
        %v1904 = vpop.permute.xlu0 %1903
        %1905 = vrot.lane.b32.xlu0 %v1813, 1
        %v1906 = vpop.permute.xlu0 %1905
        %1907 = vrot.lane.b32.xlu0 %v1815, 1
        %v1908 = vpop.permute.xlu0 %1907
        %vm1909 = vcmp.lt.s32.totalorder %v1833, 1
        %v1910 = vsel %vm1909, %v1894, %v1902
        %v1911 = vsel %vm1909, %v1896, %v1904
        %v1912 = vsel %vm1909, %v1898, %v1906
        %v1913 = vsel %vm1909, %v1900, %v1908
        %v1914 = vsel %vm1909, %v1902, %v1894
        %v1915 = vsel %vm1909, %v1904, %v1896
        %v1916 = vsel %vm1909, %v1906, %v1898
        %v1917 = vsel %vm1909, %v1908, %v1900
        %1918 = vrot.lane.b32.xlu0 %v1808, 127
        %v1919 = vpop.permute.xlu0 %1918
        %1920 = vrot.lane.b32.xlu0 %v1810, 127
        %v1921 = vpop.permute.xlu0 %1920
        %1922 = vrot.lane.b32.xlu0 %v1812, 127
        %v1923 = vpop.permute.xlu0 %1922
        %1924 = vrot.lane.b32.xlu0 %v1814, 127
        %v1925 = vpop.permute.xlu0 %1924
        %1926 = vrot.lane.b32.xlu0 %v1809, 127
        %v1927 = vpop.permute.xlu0 %1926
        %1928 = vrot.lane.b32.xlu0 %v1811, 127
        %v1929 = vpop.permute.xlu0 %1928
        %1930 = vrot.lane.b32.xlu0 %v1813, 127
        %v1931 = vpop.permute.xlu0 %1930
        %1932 = vrot.lane.b32.xlu0 %v1815, 127
        %v1933 = vpop.permute.xlu0 %1932
        %vm1934 = vcmp.lt.s32.totalorder %v1833, 127
        %v1935 = vsel %vm1934, %v1919, %v1927
        %v1936 = vsel %vm1934, %v1921, %v1929
        %v1937 = vsel %vm1934, %v1923, %v1931
        %v1938 = vsel %vm1934, %v1925, %v1933
        %v1939 = vsel %vm1934, %v1927, %v1919
        %v1940 = vsel %vm1934, %v1929, %v1921
        %v1941 = vsel %vm1934, %v1931, %v1923
        %v1942 = vsel %vm1934, %v1933, %v1925
        %1943 = vrot.lane.b32.xlu0 %v1808, 122
        %v1944 = vpop.permute.xlu0 %1943
        %1945 = vrot.lane.b32.xlu0 %v1810, 122
        %v1946 = vpop.permute.xlu0 %1945
        %1947 = vrot.lane.b32.xlu0 %v1812, 122
        %v1948 = vpop.permute.xlu0 %1947
        %1949 = vrot.lane.b32.xlu0 %v1814, 122
        %v1950 = vpop.permute.xlu0 %1949
        %1951 = vrot.lane.b32.xlu0 %v1809, 122
        %v1952 = vpop.permute.xlu0 %1951
        %1953 = vrot.lane.b32.xlu0 %v1811, 122
        %v1954 = vpop.permute.xlu0 %1953
        %1955 = vrot.lane.b32.xlu0 %v1813, 122
        %v1956 = vpop.permute.xlu0 %1955
        %1957 = vrot.lane.b32.xlu0 %v1815, 122
        %v1958 = vpop.permute.xlu0 %1957
        %vm1959 = vcmp.lt.s32.totalorder %v1833, 122
        %v1960 = vsel %vm1959, %v1944, %v1952
        %v1961 = vsel %vm1959, %v1946, %v1954
        %v1962 = vsel %vm1959, %v1948, %v1956
        %v1963 = vsel %vm1959, %v1950, %v1958
        %v1964 = vsel %vm1959, %v1952, %v1944
        %v1965 = vsel %vm1959, %v1954, %v1946
        %v1966 = vsel %vm1959, %v1956, %v1948
        %v1967 = vsel %vm1959, %v1958, %v1950
        %1968 = vrot.lane.b32.xlu0 %v1808, 121
        %v1969 = vpop.permute.xlu0 %1968
        %1970 = vrot.lane.b32.xlu0 %v1810, 121
        %v1971 = vpop.permute.xlu0 %1970
        %1972 = vrot.lane.b32.xlu0 %v1812, 121
        %v1973 = vpop.permute.xlu0 %1972
        %1974 = vrot.lane.b32.xlu0 %v1814, 121
        %v1975 = vpop.permute.xlu0 %1974
        %1976 = vrot.lane.b32.xlu0 %v1809, 121
        %v1977 = vpop.permute.xlu0 %1976
        %1978 = vrot.lane.b32.xlu0 %v1811, 121
        %v1979 = vpop.permute.xlu0 %1978
        %1980 = vrot.lane.b32.xlu0 %v1813, 121
        %v1981 = vpop.permute.xlu0 %1980
        %1982 = vrot.lane.b32.xlu0 %v1815, 121
        %v1983 = vpop.permute.xlu0 %1982
        %vm1984 = vcmp.lt.s32.totalorder %v1833, 121
        %v1985 = vsel %vm1984, %v1969, %v1977
        %v1986 = vsel %vm1984, %v1971, %v1979
        %v1987 = vsel %vm1984, %v1973, %v1981
        %v1988 = vsel %vm1984, %v1975, %v1983
        %v1989 = vsel %vm1984, %v1977, %v1969
        %v1990 = vsel %vm1984, %v1979, %v1971
        %v1991 = vsel %vm1984, %v1981, %v1973
        %v1992 = vsel %vm1984, %v1983, %v1975
        %1993 = vrot.lane.b32.xlu0 %v1808, 120
        %v1994 = vpop.permute.xlu0 %1993
        %1995 = vrot.lane.b32.xlu0 %v1810, 120
        %v1996 = vpop.permute.xlu0 %1995
        %1997 = vrot.lane.b32.xlu0 %v1812, 120
        %v1998 = vpop.permute.xlu0 %1997
        %1999 = vrot.lane.b32.xlu0 %v1814, 120
        %v2000 = vpop.permute.xlu0 %1999
        %2001 = vrot.lane.b32.xlu0 %v1809, 120
        %v2002 = vpop.permute.xlu0 %2001
        %2003 = vrot.lane.b32.xlu0 %v1811, 120
        %v2004 = vpop.permute.xlu0 %2003
        %2005 = vrot.lane.b32.xlu0 %v1813, 120
        %v2006 = vpop.permute.xlu0 %2005
        %2007 = vrot.lane.b32.xlu0 %v1815, 120
        %v2008 = vpop.permute.xlu0 %2007
        %vm2009 = vcmp.lt.s32.totalorder %v1833, 120
        %v2010 = vsel %vm2009, %v1994, %v2002
        %v2011 = vsel %vm2009, %v1996, %v2004
        %v2012 = vsel %vm2009, %v1998, %v2006
        %v2013 = vsel %vm2009, %v2000, %v2008
        %v2014 = vsel %vm2009, %v2002, %v1994
        %v2015 = vsel %vm2009, %v2004, %v1996
        %v2016 = vsel %vm2009, %v2006, %v1998
        %v2017 = vsel %vm2009, %v2008, %v2000
        %v2018 = vld [vmem:[#allocation6] sm:$0xff]
        %v2019 = vld [vmem:[#allocation6 + $0x8] sm:$0xff]
        %v2020 = vld [vmem:[#allocation6 + $0x10] sm:$0xff]
        %v2021 = vld [vmem:[#allocation6 + $0x18] sm:$0xff]
        %v2022 = vld [vmem:[#allocation6 + $0x20] sm:$0xff]
        %v2023 = vld [vmem:[#allocation6 + $0x28] sm:$0xff]
        %v2024 = vld [vmem:[#allocation6 + $0x30] sm:$0xff]
        %v2025 = vld [vmem:[#allocation6 + $0x38] sm:$0xff]
        %v2026 = vld [vmem:[#allocation6 + $0x40] sm:$0xff]
        %v2027 = vld [vmem:[#allocation6 + $0x48] sm:$0xff]
        %v2028 = vld [vmem:[#allocation6 + $0x50] sm:$0xff]
        %v2029 = vld [vmem:[#allocation6 + $0x58] sm:$0xff]
        %v2030 = vld [vmem:[#allocation6 + $0x60] sm:$0xff]
        %v2031 = vld [vmem:[#allocation6 + $0x68] sm:$0xff]
        %v2032 = vld [vmem:[#allocation6 + $0x70] sm:$0xff]
        %v2033 = vld [vmem:[#allocation6 + $0x78] sm:$0xff]
        %v2034 = vld [vmem:[#allocation6 + $0x80] sm:$0xff]
        %v2035 = vld [vmem:[#allocation6 + $0x88] sm:$0xff]
        %v2036 = vld [vmem:[#allocation6 + $0x90] sm:$0xff]
        %v2037 = vld [vmem:[#allocation6 + $0x98] sm:$0xff]
        %v2038 = vld [vmem:[#allocation6 + $0xa0] sm:$0xff]
        %v2039 = vld [vmem:[#allocation6 + $0xa8] sm:$0xff]
        %v2040 = vld [vmem:[#allocation6 + $0xb0] sm:$0xff]
        %v2041 = vld [vmem:[#allocation6 + $0xb8] sm:$0xff]
        %v2042 = vld [vmem:[#allocation6 + $0xc0] sm:$0xff]
        %v2043 = vld [vmem:[#allocation6 + $0xc8] sm:$0xff]
        %v2044 = vld [vmem:[#allocation6 + $0xd0] sm:$0xff]
        %v2045 = vld [vmem:[#allocation6 + $0xd8] sm:$0xff]
        %v2046 = vld [vmem:[#allocation6 + $0xe0] sm:$0xff]
        %v2047 = vld [vmem:[#allocation6 + $0xe8] sm:$0xff]
        %v2048 = vld [vmem:[#allocation6 + $0xf0] sm:$0xff]
        %v2049 = vld [vmem:[#allocation6 + $0xf8] sm:$0xff]
        %v2050 = vld [vmem:[#allocation6 + $0x100] sm:$0xff]
        %v2051 = vld [vmem:[#allocation6 + $0x108] sm:$0xff]
        %v2052 = vld [vmem:[#allocation6 + $0x110] sm:$0xff]
        %v2053 = vld [vmem:[#allocation6 + $0x118] sm:$0xff]
        %v2054 = vld [vmem:[#allocation6 + $0x120] sm:$0xff]
        %v2055 = vld [vmem:[#allocation6 + $0x128] sm:$0xff]
        %v2056 = vld [vmem:[#allocation6 + $0x130] sm:$0xff]
        %v2057 = vld [vmem:[#allocation6 + $0x138] sm:$0xff]
        %v2058 = vld [vmem:[#allocation6 + $0x140] sm:$0xff]
        %v2059 = vld [vmem:[#allocation6 + $0x148] sm:$0xff]
        %v2060 = vld [vmem:[#allocation6 + $0x150] sm:$0xff]
        %v2061 = vld [vmem:[#allocation6 + $0x158] sm:$0xff]
        %v2062 = vld [vmem:[#allocation6 + $0x160] sm:$0xff]
        %v2063 = vld [vmem:[#allocation6 + $0x168] sm:$0xff]
        %v2064 = vld [vmem:[#allocation6 + $0x170] sm:$0xff]
        %v2065 = vld [vmem:[#allocation6 + $0x178] sm:$0xff]
        %v2066 = vld [vmem:[#allocation6 + $0x180] sm:$0xff]
        %v2067 = vld [vmem:[#allocation6 + $0x188] sm:$0xff]
        %v2068 = vld [vmem:[#allocation6 + $0x190] sm:$0xff]
        %v2069 = vld [vmem:[#allocation6 + $0x198] sm:$0xff]
        %v2070 = vld [vmem:[#allocation6 + $0x1a0] sm:$0xff]
        %v2071 = vld [vmem:[#allocation6 + $0x1a8] sm:$0xff]
        %v2072 = vld [vmem:[#allocation6 + $0x1b0] sm:$0xff]
        %v2073 = vld [vmem:[#allocation6 + $0x1b8] sm:$0xff]
        %v2074 = vld [vmem:[#allocation6 + $0x1c0] sm:$0xff]
        %v2075 = vld [vmem:[#allocation6 + $0x1c8] sm:$0xff]
        %v2076 = vld [vmem:[#allocation6 + $0x1d0] sm:$0xff]
        %v2077 = vld [vmem:[#allocation6 + $0x1d8] sm:$0xff]
        %v2078 = vld [vmem:[#allocation6 + $0x1e0] sm:$0xff]
        %v2079 = vld [vmem:[#allocation6 + $0x1e8] sm:$0xff]
        %v2080 = vld [vmem:[#allocation6 + $0x1f0] sm:$0xff]
        %v2081 = vld [vmem:[#allocation6 + $0x1f8] sm:$0xff]
        %v2082 = vld [vmem:[#allocation6 + $0x200] sm:$0xff]
        %v2083 = vld [vmem:[#allocation6 + $0x208] sm:$0xff]
        %v2084 = vld [vmem:[#allocation6 + $0x210] sm:$0xff]
        %v2085 = vld [vmem:[#allocation6 + $0x218] sm:$0xff]
        %v2086 = vld [vmem:[#allocation6 + $0x220] sm:$0xff]
        %v2087 = vld [vmem:[#allocation6 + $0x228] sm:$0xff]
        %v2088 = vld [vmem:[#allocation6 + $0x230] sm:$0xff]
        %v2089 = vld [vmem:[#allocation6 + $0x238] sm:$0xff]
        %v2090 = vmul.f32 %v1839, %v2018
        %v2091 = vmul.f32 %v1835, %v2019
        %v2092 = vmul.f32 %v1840, %v2020
        %v2093 = vmul.f32 %v1836, %v2021
        %v2094 = vmul.f32 %v1841, %v2022
        %v2095 = vmul.f32 %v1837, %v2023
        %v2096 = vmul.f32 %v1842, %v2024
        %v2097 = vmul.f32 %v1838, %v2025
        %v2098 = vmul.f32 %v1864, %v2026
        %v2099 = vmul.f32 %v1860, %v2027
        %v2100 = vmul.f32 %v1865, %v2028
        %v2101 = vmul.f32 %v1861, %v2029
        %v2102 = vmul.f32 %v1866, %v2030
        %v2103 = vmul.f32 %v1862, %v2031
        %v2104 = vmul.f32 %v1867, %v2032
        %v2105 = vmul.f32 %v1863, %v2033
        %v2106 = vmul.f32 %v1889, %v2034
        %v2107 = vmul.f32 %v1885, %v2035
        %v2108 = vmul.f32 %v1890, %v2036
        %v2109 = vmul.f32 %v1886, %v2037
        %v2110 = vmul.f32 %v1891, %v2038
        %v2111 = vmul.f32 %v1887, %v2039
        %v2112 = vmul.f32 %v1892, %v2040
        %v2113 = vmul.f32 %v1888, %v2041
        %v2114 = vmul.f32 %v1914, %v2042
        %v2115 = vmul.f32 %v1910, %v2043
        %v2116 = vmul.f32 %v1915, %v2044
        %v2117 = vmul.f32 %v1911, %v2045
        %v2118 = vmul.f32 %v1916, %v2046
        %v2119 = vmul.f32 %v1912, %v2047
        %v2120 = vmul.f32 %v1917, %v2048
        %v2121 = vmul.f32 %v1913, %v2049
        %v2122 = vmul.f32 %v1808, %v2050
        %v2123 = vmul.f32 %v1809, %v2051
        %v2124 = vmul.f32 %v1810, %v2052
        %v2125 = vmul.f32 %v1811, %v2053
        %v2126 = vmul.f32 %v1812, %v2054
        %v2127 = vmul.f32 %v1813, %v2055
        %v2128 = vmul.f32 %v1814, %v2056
        %v2129 = vmul.f32 %v1815, %v2057
        %v2130 = vmul.f32 %v1935, %v2058
        %v2131 = vmul.f32 %v1939, %v2059
        %v2132 = vmul.f32 %v1936, %v2060
        %v2133 = vmul.f32 %v1940, %v2061
        %v2134 = vmul.f32 %v1937, %v2062
        %v2135 = vmul.f32 %v1941, %v2063
        %v2136 = vmul.f32 %v1938, %v2064
        %v2137 = vmul.f32 %v1942, %v2065
        %v2138 = vmul.f32 %v1960, %v2066
        %v2139 = vmul.f32 %v1964, %v2067
        %v2140 = vmul.f32 %v1961, %v2068
        %v2141 = vmul.f32 %v1965, %v2069
        %v2142 = vmul.f32 %v1962, %v2070
        %v2143 = vmul.f32 %v1966, %v2071
        %v2144 = vmul.f32 %v1963, %v2072
        %v2145 = vmul.f32 %v1967, %v2073
        %v2146 = vmul.f32 %v1985, %v2074
        %v2147 = vmul.f32 %v1989, %v2075
        %v2148 = vmul.f32 %v1986, %v2076
        %v2149 = vmul.f32 %v1990, %v2077
        %v2150 = vmul.f32 %v1987, %v2078
        %v2151 = vmul.f32 %v1991, %v2079
        %v2152 = vmul.f32 %v1988, %v2080
        %v2153 = vmul.f32 %v1992, %v2081
        %v2154 = vmul.f32 %v2010, %v2082
        %v2155 = vmul.f32 %v2014, %v2083
        %v2156 = vmul.f32 %v2011, %v2084
        %v2157 = vmul.f32 %v2015, %v2085
        %v2158 = vmul.f32 %v2012, %v2086
        %v2159 = vmul.f32 %v2016, %v2087
        %v2160 = vmul.f32 %v2013, %v2088
        %v2161 = vmul.f32 %v2017, %v2089
        %v2162 = vld [vmem:[%s8] sm:$0xff]
        %v2163 = vld [vmem:[%s8 + $0x8] sm:$0xf]
        %v2164 = vpack.c.bf16 %v2092, %v2090
        %v2165 = vpack.c.bf16 %v2093, %v2091
        %v2166 = vpack.c.bf16 %v2096, %v2094
        %v2167 = vpack.c.bf16 %v2097, %v2095
        %v2168 = vpack.c.bf16 %v2100, %v2098
        %v2169 = vpack.c.bf16 %v2101, %v2099
        %v2170 = vpack.c.bf16 %v2104, %v2102
        %v2171 = vpack.c.bf16 %v2105, %v2103
        %v2172 = vpack.c.bf16 %v2108, %v2106
        %v2173 = vpack.c.bf16 %v2109, %v2107
        %v2174 = vpack.c.bf16 %v2112, %v2110
        %v2175 = vpack.c.bf16 %v2113, %v2111
        %v2176 = vpack.c.bf16 %v2116, %v2114
        %v2177 = vpack.c.bf16 %v2117, %v2115
        %v2178 = vpack.c.bf16 %v2120, %v2118
        %v2179 = vpack.c.bf16 %v2121, %v2119
        %v2180 = vpack.c.bf16 %v2124, %v2122
        %v2181 = vpack.c.bf16 %v2125, %v2123
        %v2182 = vpack.c.bf16 %v2128, %v2126
        %v2183 = vpack.c.bf16 %v2129, %v2127
        %v2184 = vpack.c.bf16 %v2132, %v2130
        %v2185 = vpack.c.bf16 %v2133, %v2131
        %v2186 = vpack.c.bf16 %v2136, %v2134
        %v2187 = vpack.c.bf16 %v2137, %v2135
        %v2188 = vpack.c.bf16 %v2140, %v2138
        %v2189 = vpack.c.bf16 %v2141, %v2139
        %v2190 = vpack.c.bf16 %v2144, %v2142
        %v2191 = vpack.c.bf16 %v2145, %v2143
        %v2192 = vpack.c.bf16 %v2148, %v2146
        %v2193 = vpack.c.bf16 %v2149, %v2147
        %v2194 = vpack.c.bf16 %v2152, %v2150
        %v2195 = vpack.c.bf16 %v2153, %v2151
        %v2196 = vpack.c.bf16 %v2156, %v2154
        %v2197 = vpack.c.bf16 %v2157, %v2155
        %v2198 = vpack.c.bf16 %v2160, %v2158
        %v2199 = vpack.c.bf16 %v2161, %v2159
        %v2202 = vunpack.c.l.b16 %v2162
        %v2203 = vunpack.c.h.b16 %v2162
        %v2204 = vunpack.c.l.b16 %v2163
        %v2205 = vpack.c.b16 %v2202, %v2202
        %v2206 = vpack.c.b16 %v2203, %v2203
        %v2207 = vpack.c.b16 %v2204, %v2204
        %v2211 = vsel %vm1684, %v2207, 0
        %2213 = vmatprep.subr.bf16.mxu0 %v2179
        %2214 = vmatpush1.bf16.msra.mxu0 %v2178
        %2215 = vmatprep.subr.bf16.mxu0 %v2177
        %2216 = vmatpush1.bf16.msra.mxu0 %v2176
        %2217 = vmatprep.subr.bf16.mxu0 %v2175
        %2218 = vmatpush1.bf16.msra.mxu0 %v2174
        %2219 = vmatprep.subr.bf16.mxu0 %v2173
        %2220 = vmatpush1.bf16.msra.mxu0 %v2172
        %2221 = vmatprep.subr.bf16.mxu0 %v2171
        %2222 = vmatpush1.bf16.msra.mxu0 %v2170
        %2223 = vmatprep.subr.bf16.mxu0 %v2169
        %2224 = vmatpush1.bf16.msra.mxu0 %v2168
        %2225 = vmatprep.subr.bf16.mxu0 %v2167
        %2226 = vmatpush1.bf16.msra.mxu0 %v2166
        %2227 = vmatprep.subr.bf16.mxu0 %v2165
        %2228 = vmatpush1.bf16.msra.mxu0 %v2164
        %2229 = vmatprep.subr.bf16.mxu0 %v2195
        %2230 = vmatpush2.bf16.msra.mxu0 %v2194
        %2231 = vmatprep.subr.bf16.mxu0 %v2193
        %2232 = vmatpush2.bf16.msra.mxu0 %v2192
        %2233 = vmatprep.subr.bf16.mxu0 %v2191
        %2234 = vmatpush2.bf16.msra.mxu0 %v2190
        %2235 = vmatprep.subr.bf16.mxu0 %v2189
        %2236 = vmatpush2.bf16.msra.mxu0 %v2188
        %2237 = vmatprep.subr.bf16.mxu0 %v2187
        %2238 = vmatpush2.bf16.msra.mxu0 %v2186
        %2239 = vmatprep.subr.bf16.mxu0 %v2185
        %2240 = vmatpush2.bf16.msra.mxu0 %v2184
        %2241 = vmatprep.subr.bf16.mxu0 %v2183
        %2242 = vmatpush2.bf16.msra.mxu0 %v2182
        %2243 = vmatprep.subr.bf16.mxu0 %v2181
        %2244 = vmatpush2.bf16.msra.mxu0 %v2180
        %2245 = vmatprep.mubr.bf16.mxu0 %v2206
        %2246 = vmatmul.mubr.bf16.gmra.mxu0 %v2205
        %v2247 = vpop.f32.mrf.mxu0
        %v2248 = vadd.f32 0.0, %v2247
        %v2249 = vpop.f32.mrf.mxu0
        %v2250 = vadd.f32 0.0, %v2249
        %v2251 = vpop.f32.mrf.mxu0
        %v2252 = vpop.f32.mrf.mxu0
        %2253 = vdwg.mxu0
        %2254 = vmatprep.subr.bf16.mxu0 0
        %2255 = vmatpush1.bf16.msra.mxu0 0
        %2256 = vmatprep.subr.bf16.mxu0 0
        %2257 = vmatpush1.bf16.msra.mxu0 0
        %2258 = vmatprep.subr.bf16.mxu0 0
        %2259 = vmatpush1.bf16.msra.mxu0 0
        %2260 = vmatprep.subr.bf16.mxu0 0
        %2261 = vmatpush1.bf16.msra.mxu0 0
        %2262 = vmatprep.subr.bf16.mxu0 0
        %2263 = vmatpush1.bf16.msra.mxu0 0
        %2264 = vmatprep.subr.bf16.mxu0 0
        %2265 = vmatpush1.bf16.msra.mxu0 0
        %2266 = vmatprep.subr.bf16.mxu0 %v2199
        %2267 = vmatpush1.bf16.msra.mxu0 %v2198
        %2268 = vmatprep.subr.bf16.mxu0 %v2197
        %2269 = vmatpush1.bf16.msra.mxu0 %v2196
        %2270 = vmatprep.subr.bf16.mxu0 0
        %2271 = vmatpush2.bf16.msra.mxu0 0
        %2272 = vmatprep.subr.bf16.mxu0 0
        %2273 = vmatpush2.bf16.msra.mxu0 0
        %2274 = vmatprep.subr.bf16.mxu0 0
        %2275 = vmatpush2.bf16.msra.mxu0 0
        %2276 = vmatprep.subr.bf16.mxu0 0
        %2277 = vmatpush2.bf16.msra.mxu0 0
        %2278 = vmatprep.subr.bf16.mxu0 0
        %2279 = vmatpush2.bf16.msra.mxu0 0
        %2280 = vmatprep.subr.bf16.mxu0 0
        %2281 = vmatpush2.bf16.msra.mxu0 0
        %2282 = vmatprep.subr.bf16.mxu0 0
        %2283 = vmatpush2.bf16.msra.mxu0 0
        %2284 = vmatprep.subr.bf16.mxu0 0
        %2285 = vmatpush2.bf16.msra.mxu0 0
        %2286 = vmatprep.mubr.bf16.mxu0 0
        %2287 = vmatmul.mubr.bf16.gmra.mxu0 %v2211
        %v2288 = vpop.f32.mrf.mxu0
        %v2289 = vadd.f32 %v2248, %v2288
        %v2290 = vpop.f32.mrf.mxu0
        %v2291 = vadd.f32 %v2250, %v2290
        %v2292 = vpop.f32.mrf.mxu0
        %v2293 = vpop.f32.mrf.mxu0
        %2294 = vdwg.mxu0
        %v2295 = vld [vmem:[%s9] sm:$0xff]
        %2297 = vset.pattern.permute.xlu0 0
        %2298 = vperm.xlu0 %2297, %v2295
        %v2299 = vpop.permute.xlu0 %2298
        %v2301 = vmul.f32 %v2289, %v2299
        %v2302 = vmul.f32 %v2291, %v2299
        %v2303 = vld [vmem:[%s10] sm:$0xff]
        %2305 = vset.pattern.permute.xlu0 0
        %2306 = vperm.xlu0 %2305, %v2303
        %v2307 = vpop.permute.xlu0 %2306
        %v2309 = vadd.f32 %v2301, %v2307
        %v2310 = vadd.f32 %v2302, %v2307
        %v2311 = vmax.f32 %v2309, 0.0
        %v2312 = vmax.f32 %v2310, 0.0
        %2313 = vrot.lane.b32.xlu0 %v2311, 8
        %v2314 = vpop.permute.xlu0 %2313
        %2315 = vrot.lane.b32.xlu0 %v2312, 8
        %v2316 = vpop.permute.xlu0 %2315
        %v2317 = vsel %vm1834, %v2314, %v2316
        %v2318 = vsel %vm1834, %v2316, %v2314
        %2319 = vrot.lane.b32.xlu0 %v2311, 7
        %v2320 = vpop.permute.xlu0 %2319
        %2321 = vrot.lane.b32.xlu0 %v2312, 7
        %v2322 = vpop.permute.xlu0 %2321
        %v2323 = vsel %vm1859, %v2320, %v2322
        %v2324 = vsel %vm1859, %v2322, %v2320
        %2325 = vrot.lane.b32.xlu0 %v2311, 6
        %v2326 = vpop.permute.xlu0 %2325
        %2327 = vrot.lane.b32.xlu0 %v2312, 6
        %v2328 = vpop.permute.xlu0 %2327
        %v2329 = vsel %vm1884, %v2326, %v2328
        %v2330 = vsel %vm1884, %v2328, %v2326
        %2331 = vrot.lane.b32.xlu0 %v2311, 1
        %v2332 = vpop.permute.xlu0 %2331
        %2333 = vrot.lane.b32.xlu0 %v2312, 1
        %v2334 = vpop.permute.xlu0 %2333
        %v2335 = vsel %vm1909, %v2332, %v2334
        %v2336 = vsel %vm1909, %v2334, %v2332
        %2337 = vrot.lane.b32.xlu0 %v2311, 127
        %v2338 = vpop.permute.xlu0 %2337
        %2339 = vrot.lane.b32.xlu0 %v2312, 127
        %v2340 = vpop.permute.xlu0 %2339
        %v2341 = vsel %vm1934, %v2338, %v2340
        %v2342 = vsel %vm1934, %v2340, %v2338
        %2343 = vrot.lane.b32.xlu0 %v2311, 122
        %v2344 = vpop.permute.xlu0 %2343
        %2345 = vrot.lane.b32.xlu0 %v2312, 122
        %v2346 = vpop.permute.xlu0 %2345
        %v2347 = vsel %vm1959, %v2344, %v2346
        %v2348 = vsel %vm1959, %v2346, %v2344
        %2349 = vrot.lane.b32.xlu0 %v2311, 121
        %v2350 = vpop.permute.xlu0 %2349
        %2351 = vrot.lane.b32.xlu0 %v2312, 121
        %v2352 = vpop.permute.xlu0 %2351
        %v2353 = vsel %vm1984, %v2350, %v2352
        %v2354 = vsel %vm1984, %v2352, %v2350
        %2355 = vrot.lane.b32.xlu0 %v2311, 120
        %v2356 = vpop.permute.xlu0 %2355
        %2357 = vrot.lane.b32.xlu0 %v2312, 120
        %v2358 = vpop.permute.xlu0 %2357
        %v2359 = vsel %vm2009, %v2356, %v2358
        %v2360 = vsel %vm2009, %v2358, %v2356
        %v2361 = vld [vmem:[#allocation8] sm:$0xff]
        %v2362 = vld [vmem:[#allocation8 + $0x8] sm:$0xff]
        %v2363 = vld [vmem:[#allocation8 + $0x10] sm:$0xff]
        %v2364 = vld [vmem:[#allocation8 + $0x18] sm:$0xff]
        %v2365 = vld [vmem:[#allocation8 + $0x20] sm:$0xff]
        %v2366 = vld [vmem:[#allocation8 + $0x28] sm:$0xff]
        %v2367 = vld [vmem:[#allocation8 + $0x30] sm:$0xff]
        %v2368 = vld [vmem:[#allocation8 + $0x38] sm:$0xff]
        %v2369 = vld [vmem:[#allocation8 + $0x40] sm:$0xff]
        %v2370 = vld [vmem:[#allocation8 + $0x48] sm:$0xff]
        %v2371 = vld [vmem:[#allocation8 + $0x50] sm:$0xff]
        %v2372 = vld [vmem:[#allocation8 + $0x58] sm:$0xff]
        %v2373 = vld [vmem:[#allocation8 + $0x60] sm:$0xff]
        %v2374 = vld [vmem:[#allocation8 + $0x68] sm:$0xff]
        %v2375 = vld [vmem:[#allocation8 + $0x70] sm:$0xff]
        %v2376 = vld [vmem:[#allocation8 + $0x78] sm:$0xff]
        %v2377 = vld [vmem:[#allocation8 + $0x80] sm:$0xff]
        %v2378 = vld [vmem:[#allocation8 + $0x88] sm:$0xff]
        %v2379 = vmul.f32 %v2318, %v2361
        %v2380 = vmul.f32 %v2317, %v2362
        %v2381 = vmul.f32 %v2324, %v2363
        %v2382 = vmul.f32 %v2323, %v2364
        %v2383 = vmul.f32 %v2330, %v2365
        %v2384 = vmul.f32 %v2329, %v2366
        %v2385 = vmul.f32 %v2336, %v2367
        %v2386 = vmul.f32 %v2335, %v2368
        %v2387 = vmul.f32 %v2311, %v2369
        %v2388 = vmul.f32 %v2312, %v2370
        %v2389 = vmul.f32 %v2341, %v2371
        %v2390 = vmul.f32 %v2342, %v2372
        %v2391 = vmul.f32 %v2347, %v2373
        %v2392 = vmul.f32 %v2348, %v2374
        %v2393 = vmul.f32 %v2353, %v2375
        %v2394 = vmul.f32 %v2354, %v2376
        %v2395 = vmul.f32 %v2359, %v2377
        %v2396 = vmul.f32 %v2360, %v2378
        %v2397 = vld [vmem:[%s11] sm:$0x1]
        %v2398 = vpack.c.bf16 %v2381, %v2379
        %v2399 = vpack.c.bf16 %v2382, %v2380
        %v2400 = vpack.c.bf16 %v2385, %v2383
        %v2401 = vpack.c.bf16 %v2386, %v2384
        %v2402 = vpack.c.bf16 %v2389, %v2387
        %v2403 = vpack.c.bf16 %v2390, %v2388
        %v2404 = vpack.c.bf16 %v2393, %v2391
        %v2405 = vpack.c.bf16 %v2394, %v2392
        %v2406 = vpack.c.bf16 %v2395, %v2395
        %v2407 = vpack.c.bf16 %v2396, %v2396
        %vm2408 = vcmask 588800
        %v2410 = vsel %vm2408, %v2397, 0
        %vm2412 = vcmask 1043456
        %v2414 = vsel %vm2412, %v2406, 0
        %v2417 = vsel %vm2412, %v2407, 0
        %2419 = vmatprep.subr.bf16.mxu0 0
        %2420 = vmatpush1.bf16.msra.mxu0 0
        %2421 = vmatprep.subr.bf16.mxu0 0
        %2422 = vmatpush1.bf16.msra.mxu0 0
        %2423 = vmatprep.subr.bf16.mxu0 0
        %2424 = vmatpush1.bf16.msra.mxu0 0
        %2425 = vmatprep.subr.bf16.mxu0 %v2417
        %2426 = vmatpush1.bf16.msra.mxu0 %v2414
        %2427 = vmatprep.subr.bf16.mxu0 %v2405
        %2428 = vmatpush1.bf16.msra.mxu0 %v2404
        %2429 = vmatprep.subr.bf16.mxu0 %v2403
        %2430 = vmatpush1.bf16.msra.mxu0 %v2402
        %2431 = vmatprep.subr.bf16.mxu0 %v2401
        %2432 = vmatpush1.bf16.msra.mxu0 %v2400
        %2433 = vmatprep.subr.bf16.mxu0 %v2399
        %2434 = vmatpush1.bf16.msra.mxu0 %v2398
        %2435 = vmatprep.subr.bf16.mxu0 0
        %2436 = vmatpush2.bf16.msra.mxu0 0
        %2437 = vmatprep.subr.bf16.mxu0 0
        %2438 = vmatpush2.bf16.msra.mxu0 0
        %2439 = vmatprep.subr.bf16.mxu0 0
        %2440 = vmatpush2.bf16.msra.mxu0 0
        %2441 = vmatprep.subr.bf16.mxu0 0
        %2442 = vmatpush2.bf16.msra.mxu0 0
        %2443 = vmatprep.subr.bf16.mxu0 0
        %2444 = vmatpush2.bf16.msra.mxu0 0
        %2445 = vmatprep.subr.bf16.mxu0 0
        %2446 = vmatpush2.bf16.msra.mxu0 0
        %2447 = vmatprep.subr.bf16.mxu0 0
        %2448 = vmatpush2.bf16.msra.mxu0 0
        %2449 = vmatprep.subr.bf16.mxu0 0
        %2450 = vmatpush2.bf16.msra.mxu0 0
        %2451 = vmatprep.mubr.bf16.mxu0 0
        %2452 = vmatmul.mubr.bf16.gmra.mxu0 %v2410
        %v2453 = vpop.f32.mrf.mxu0
        %v2454 = vadd.f32 0.0, %v2453
        %v2455 = vpop.f32.mrf.mxu0
        %v2456 = vadd.f32 0.0, %v2455
        %v2457 = vpop.f32.mrf.mxu0
        %v2458 = vpop.f32.mrf.mxu0
        %2459 = vdwg.mxu0
        %v2460 = vld [vmem:[%s12] sm:$0x3]
        %2462 = vset.pattern.permute.xlu0 0
        %2463 = vperm.xlu0 %2462, %v2460
        %v2464 = vpop.permute.xlu0 %2463
        %v2466 = vmul.f32 %v2454, %v2464
        %v2467 = vmul.f32 %v2456, %v2464
        %v2468 = vld [vmem:[%s13] sm:$0x3]
        %2470 = vset.pattern.permute.xlu0 0
        %2471 = vperm.xlu0 %2470, %v2468
        %v2472 = vpop.permute.xlu0 %2471
        %v2474 = vadd.f32 %v2466, %v2472
        %v2475 = vadd.f32 %v2467, %v2472
        %v2476 = vmax.f32 %v2474, 0.0
        %v2477 = vmax.f32 %v2475, 0.0
        %v2478 = vmul.f32 %v2476, %v2476
        %v2479 = vmul.f32 %v2477, %v2477
        %vm2480 = vcmask 1041408
        %v2481 = vsel %vm2480, %v2478, 0.0
        %v2482 = vrot.slane %v2481, 4
        %v2483 = vadd.f32 %v2481, %v2482
        %v2484 = vrot.slane %v2483, 2
        %v2485 = vadd.f32 %v2483, %v2484
        %v2486 = vrot.slane %v2485, 1
        %v2487 = vadd.f32 %v2485, %v2486
        %v2488 = vsel %vm2480, %v2479, 0.0
        %v2489 = vrot.slane %v2488, 4
        %v2490 = vadd.f32 %v2488, %v2489
        %v2491 = vrot.slane %v2490, 2
        %v2492 = vadd.f32 %v2490, %v2491
        %v2493 = vrot.slane %v2492, 1
        %v2494 = vadd.f32 %v2492, %v2493
        %v2495 = vld [vmem:[%s14] sm:$0xf]
        %v2496 = vld [vmem:[%s14 + $0x4] sm:$0xf]
        %v2497 = vld [vmem:[%s14 + $0x8] sm:$0xf]
        %v2498 = vld [vmem:[%s14 + $0xc] sm:$0xf]
        %v2499 = vld [vmem:[%s14 + $0x10] sm:$0xf]
        %v2500 = vld [vmem:[%s14 + $0x14] sm:$0xf]
        %v2501 = vld [vmem:[%s14 + $0x18] sm:$0xf]
        %v2502 = vld [vmem:[%s14 + $0x1c] sm:$0xf]
        %v2505 = vcombine.low %v2476, %v2477
        %v2507 = vunpack.c.l.s4 1983009808
        %v2508 = vunpack.c.0.s8 %v2507
        %v2509 = vlaneseq
        %v2510 = vshrl.u32 %v2509, 7
        %v2511 = vsub.s32 %v2508, %v2510
        %v2512 = vrot.slane %v2505, %v2511
        %v2514 = vmul.f32 %v2495, %v2512
        %v2515 = vmul.f32 %v2496, %v2512
        %v2516 = vmul.f32 %v2497, %v2512
        %v2517 = vmul.f32 %v2498, %v2512
        %v2518 = vmul.f32 %v2499, %v2512
        %v2519 = vmul.f32 %v2500, %v2512
        %v2520 = vmul.f32 %v2501, %v2512
        %v2521 = vmul.f32 %v2502, %v2512
        %v2531 = vunpack.c.l.s4 1983009808
        %v2532 = vunpack.c.0.s8 %v2531
        %v2533 = vlaneseq
        %v2534 = vshrl.u32 %v2533, 7
        %v2535 = vsub.s32 %v2532, %v2534
        %v2536 = vrot.slane %v2514, %v2535
        %v2537 = vcombine.high %v2536, %v2536
        %v2539 = vunpack.c.l.s4 1983009808
        %v2540 = vunpack.c.0.s8 %v2539
        %v2541 = vlaneseq
        %v2542 = vshrl.u32 %v2541, 7
        %v2543 = vsub.s32 %v2540, %v2542
        %v2544 = vrot.slane %v2515, %v2543
        %v2545 = vcombine.high %v2544, %v2544
        %v2547 = vunpack.c.l.s4 1983009808
        %v2548 = vunpack.c.0.s8 %v2547
        %v2549 = vlaneseq
        %v2550 = vshrl.u32 %v2549, 7
        %v2551 = vsub.s32 %v2548, %v2550
        %v2552 = vrot.slane %v2516, %v2551
        %v2553 = vcombine.high %v2552, %v2552
        %v2555 = vunpack.c.l.s4 1983009808
        %v2556 = vunpack.c.0.s8 %v2555
        %v2557 = vlaneseq
        %v2558 = vshrl.u32 %v2557, 7
        %v2559 = vsub.s32 %v2556, %v2558
        %v2560 = vrot.slane %v2517, %v2559
        %v2561 = vcombine.high %v2560, %v2560
        %v2563 = vunpack.c.l.s4 1983009808
        %v2564 = vunpack.c.0.s8 %v2563
        %v2565 = vlaneseq
        %v2566 = vshrl.u32 %v2565, 7
        %v2567 = vsub.s32 %v2564, %v2566
        %v2568 = vrot.slane %v2518, %v2567
        %v2569 = vcombine.high %v2568, %v2568
        %v2571 = vunpack.c.l.s4 1983009808
        %v2572 = vunpack.c.0.s8 %v2571
        %v2573 = vlaneseq
        %v2574 = vshrl.u32 %v2573, 7
        %v2575 = vsub.s32 %v2572, %v2574
        %v2576 = vrot.slane %v2519, %v2575
        %v2577 = vcombine.high %v2576, %v2576
        %v2579 = vunpack.c.l.s4 1983009808
        %v2580 = vunpack.c.0.s8 %v2579
        %v2581 = vlaneseq
        %v2582 = vshrl.u32 %v2581, 7
        %v2583 = vsub.s32 %v2580, %v2582
        %v2584 = vrot.slane %v2520, %v2583
        %v2585 = vcombine.high %v2584, %v2584
        %v2587 = vunpack.c.l.s4 1983009808
        %v2588 = vunpack.c.0.s8 %v2587
        %v2589 = vlaneseq
        %v2590 = vshrl.u32 %v2589, 7
        %v2591 = vsub.s32 %v2588, %v2590
        %v2592 = vrot.slane %v2521, %v2591
        %v2593 = vcombine.high %v2592, %v2592
        %v2610 = vsel %vm2480, %v2536, 0.0
        %v2611 = vrot.slane %v2610, 4
        %v2612 = vadd.f32 %v2610, %v2611
        %v2613 = vrot.slane %v2612, 2
        %v2614 = vadd.f32 %v2612, %v2613
        %v2615 = vrot.slane %v2614, 1
        %v2616 = vadd.f32 %v2614, %v2615
        %v2617 = vsel %vm2480, %v2537, 0.0
        %v2618 = vrot.slane %v2617, 4
        %v2619 = vadd.f32 %v2617, %v2618
        %v2620 = vrot.slane %v2619, 2
        %v2621 = vadd.f32 %v2619, %v2620
        %v2622 = vrot.slane %v2621, 1
        %v2623 = vadd.f32 %v2621, %v2622
        %v2624 = vsel %vm2480, %v2544, 0.0
        %v2625 = vrot.slane %v2624, 4
        %v2626 = vadd.f32 %v2624, %v2625
        %v2627 = vrot.slane %v2626, 2
        %v2628 = vadd.f32 %v2626, %v2627
        %v2629 = vrot.slane %v2628, 1
        %v2630 = vadd.f32 %v2628, %v2629
        %v2631 = vsel %vm2480, %v2545, 0.0
        %v2632 = vrot.slane %v2631, 4
        %v2633 = vadd.f32 %v2631, %v2632
        %v2634 = vrot.slane %v2633, 2
        %v2635 = vadd.f32 %v2633, %v2634
        %v2636 = vrot.slane %v2635, 1
        %v2637 = vadd.f32 %v2635, %v2636
        %v2638 = vsel %vm2480, %v2552, 0.0
        %v2639 = vrot.slane %v2638, 4
        %v2640 = vadd.f32 %v2638, %v2639
        %v2641 = vrot.slane %v2640, 2
        %v2642 = vadd.f32 %v2640, %v2641
        %v2643 = vrot.slane %v2642, 1
        %v2644 = vadd.f32 %v2642, %v2643
        %v2645 = vsel %vm2480, %v2553, 0.0
        %v2646 = vrot.slane %v2645, 4
        %v2647 = vadd.f32 %v2645, %v2646
        %v2648 = vrot.slane %v2647, 2
        %v2649 = vadd.f32 %v2647, %v2648
        %v2650 = vrot.slane %v2649, 1
        %v2651 = vadd.f32 %v2649, %v2650
        %v2652 = vsel %vm2480, %v2560, 0.0
        %v2653 = vrot.slane %v2652, 4
        %v2654 = vadd.f32 %v2652, %v2653
        %v2655 = vrot.slane %v2654, 2
        %v2656 = vadd.f32 %v2654, %v2655
        %v2657 = vrot.slane %v2656, 1
        %v2658 = vadd.f32 %v2656, %v2657
        %v2659 = vsel %vm2480, %v2561, 0.0
        %v2660 = vrot.slane %v2659, 4
        %v2661 = vadd.f32 %v2659, %v2660
        %v2662 = vrot.slane %v2661, 2
        %v2663 = vadd.f32 %v2661, %v2662
        %v2664 = vrot.slane %v2663, 1
        %v2665 = vadd.f32 %v2663, %v2664
        %v2666 = vsel %vm2480, %v2568, 0.0
        %v2667 = vrot.slane %v2666, 4
        %v2668 = vadd.f32 %v2666, %v2667
        %v2669 = vrot.slane %v2668, 2
        %v2670 = vadd.f32 %v2668, %v2669
        %v2671 = vrot.slane %v2670, 1
        %v2672 = vadd.f32 %v2670, %v2671
        %v2673 = vsel %vm2480, %v2569, 0.0
        %v2674 = vrot.slane %v2673, 4
        %v2675 = vadd.f32 %v2673, %v2674
        %v2676 = vrot.slane %v2675, 2
        %v2677 = vadd.f32 %v2675, %v2676
        %v2678 = vrot.slane %v2677, 1
        %v2679 = vadd.f32 %v2677, %v2678
        %v2680 = vsel %vm2480, %v2576, 0.0
        %v2681 = vrot.slane %v2680, 4
        %v2682 = vadd.f32 %v2680, %v2681
        %v2683 = vrot.slane %v2682, 2
        %v2684 = vadd.f32 %v2682, %v2683
        %v2685 = vrot.slane %v2684, 1
        %v2686 = vadd.f32 %v2684, %v2685
        %v2687 = vsel %vm2480, %v2577, 0.0
        %v2688 = vrot.slane %v2687, 4
        %v2689 = vadd.f32 %v2687, %v2688
        %v2690 = vrot.slane %v2689, 2
        %v2691 = vadd.f32 %v2689, %v2690
        %v2692 = vrot.slane %v2691, 1
        %v2693 = vadd.f32 %v2691, %v2692
        %v2694 = vsel %vm2480, %v2584, 0.0
        %v2695 = vrot.slane %v2694, 4
        %v2696 = vadd.f32 %v2694, %v2695
        %v2697 = vrot.slane %v2696, 2
        %v2698 = vadd.f32 %v2696, %v2697
        %v2699 = vrot.slane %v2698, 1
        %v2700 = vadd.f32 %v2698, %v2699
        %v2701 = vsel %vm2480, %v2585, 0.0
        %v2702 = vrot.slane %v2701, 4
        %v2703 = vadd.f32 %v2701, %v2702
        %v2704 = vrot.slane %v2703, 2
        %v2705 = vadd.f32 %v2703, %v2704
        %v2706 = vrot.slane %v2705, 1
        %v2707 = vadd.f32 %v2705, %v2706
        %v2708 = vsel %vm2480, %v2592, 0.0
        %v2709 = vrot.slane %v2708, 4
        %v2710 = vadd.f32 %v2708, %v2709
        %v2711 = vrot.slane %v2710, 2
        %v2712 = vadd.f32 %v2710, %v2711
        %v2713 = vrot.slane %v2712, 1
        %v2714 = vadd.f32 %v2712, %v2713
        %v2715 = vsel %vm2480, %v2593, 0.0
        %v2716 = vrot.slane %v2715, 4
        %v2717 = vadd.f32 %v2715, %v2716
        %v2718 = vrot.slane %v2717, 2
        %v2719 = vadd.f32 %v2717, %v2718
        %v2720 = vrot.slane %v2719, 1
        %v2721 = vadd.f32 %v2719, %v2720
        %vm2738 = vcmask 1042434
        %v2739 = vsel %vm2738, %v2630, %v2616
        %vm2740 = vcmask 1043459
        %v2741 = vsel %vm2740, %v2644, %v2739
        %vm2742 = vcmask 1044484
        %v2743 = vsel %vm2742, %v2658, %v2741
        %vm2744 = vcmask 1045509
        %v2745 = vsel %vm2744, %v2672, %v2743
        %vm2746 = vcmask 1046534
        %v2747 = vsel %vm2746, %v2686, %v2745
        %vm2748 = vcmask 1047559
        %v2749 = vsel %vm2748, %v2700, %v2747
        %v2750 = vsel %vm2738, %v2637, %v2623
        %v2751 = vsel %vm2740, %v2651, %v2750
        %v2752 = vsel %vm2742, %v2665, %v2751
        %v2753 = vsel %vm2744, %v2679, %v2752
        %v2754 = vsel %vm2746, %v2693, %v2753
        %v2755 = vsel %vm2748, %v2707, %v2754
        %vm2760 = vcmask 1040384
        %v2761 = vsel %vm2760, %v2487, %v2749
        %v2762 = vsel %vm2760, %v2494, %v2755
        %v2763 = vld [vmem:[%s2] sm:$0xff]
        %v2764 = vld [vmem:[%s2 + $0x8] sm:$0xff]
        %v2765 = vld [vmem:[%s2 + $0x10] sm:$0xff]
        %v2766 = vld [vmem:[%s2 + $0x18] sm:$0xff]
        %v2767 = vld [vmem:[%s2 + $0x20] sm:$0xff]
        %v2768 = vld [vmem:[%s2 + $0x28] sm:$0xff]
        %v2769 = vld [vmem:[%s2 + $0x30] sm:$0xff]
        %v2770 = vld [vmem:[%s2 + $0x38] sm:$0xff]
        %v2771 = vld [vmem:[%s2 + $0x40] sm:$0xff]
        %v2772 = vld [vmem:[%s2 + $0x48] sm:$0xff]
        %v2773 = vld [vmem:[%s2 + $0x50] sm:$0xff]
        %v2774 = vld [vmem:[%s2 + $0x58] sm:$0xff]
        %v2775 = vld [vmem:[%s2 + $0x60] sm:$0xff]
        %v2776 = vld [vmem:[%s2 + $0x68] sm:$0xff]
        %v2777 = vld [vmem:[%s2 + $0x70] sm:$0xff]
        %v2778 = vld [vmem:[%s2 + $0x78] sm:$0xff]
        %v2779 = vld [vmem:[%s2 + $0x80] sm:$0xff]
        %v2780 = vld [vmem:[%s2 + $0x88] sm:$0xff]
        %v2781 = vld [vmem:[%s2 + $0x90] sm:$0xff]
        %v2782 = vld [vmem:[%s2 + $0x98] sm:$0xff]
        %v2783 = vld [vmem:[%s2 + $0xa0] sm:$0xff]
        %v2784 = vld [vmem:[%s2 + $0xa8] sm:$0xff]
        %v2785 = vld [vmem:[%s2 + $0xb0] sm:$0xff]
        %v2786 = vld [vmem:[%s2 + $0xb8] sm:$0xff]
        %v2787 = vld [vmem:[%s2 + $0xc0] sm:$0xff]
        %v2788 = vld [vmem:[%s2 + $0xc8] sm:$0xff]
        %v2789 = vld [vmem:[%s2 + $0xd0] sm:$0xff]
        %v2790 = vld [vmem:[%s2 + $0xd8] sm:$0xff]
        %v2791 = vld [vmem:[%s2 + $0xe0] sm:$0xff]
        %v2792 = vld [vmem:[%s2 + $0xe8] sm:$0xff]
        %v2793 = vld [vmem:[%s2 + $0xf0] sm:$0xff]
        %v2794 = vld [vmem:[%s2 + $0xf8] sm:$0xff]
        %2795 = vmatprep.subr.mxu0 0.0
        %2796 = vmatpush1.msra.mxu0 %v2778
        %2797 = vmatprep.subr.mxu0 0.0
        %2798 = vmatpush1.msra.mxu0 %v2777
        %2799 = vmatprep.subr.mxu0 0.0
        %2800 = vmatpush1.msra.mxu0 %v2776
        %2801 = vmatprep.subr.mxu0 0.0
        %2802 = vmatpush1.msra.mxu0 %v2775
        %2803 = vmatprep.subr.mxu0 0.0
        %2804 = vmatpush1.msra.mxu0 %v2774
        %2805 = vmatprep.subr.mxu0 0.0
        %2806 = vmatpush1.msra.mxu0 %v2773
        %2807 = vmatprep.subr.mxu0 0.0
        %2808 = vmatpush1.msra.mxu0 %v2772
        %2809 = vmatprep.subr.mxu0 0.0
        %2810 = vmatpush1.msra.mxu0 %v2771
        %2811 = vmatprep.subr.mxu0 0.0
        %2812 = vmatpush1.msra.mxu0 %v2770
        %2813 = vmatprep.subr.mxu0 0.0
        %2814 = vmatpush1.msra.mxu0 %v2769
        %2815 = vmatprep.subr.mxu0 0.0
        %2816 = vmatpush1.msra.mxu0 %v2768
        %2817 = vmatprep.subr.mxu0 0.0
        %2818 = vmatpush1.msra.mxu0 %v2767
        %2819 = vmatprep.subr.mxu0 0.0
        %2820 = vmatpush1.msra.mxu0 %v2766
        %2821 = vmatprep.subr.mxu0 0.0
        %2822 = vmatpush1.msra.mxu0 %v2765
        %2823 = vmatprep.subr.mxu0 0.0
        %2824 = vmatpush1.msra.mxu0 %v2764
        %2825 = vmatprep.subr.mxu0 0.0
        %2826 = vmatpush1.msra.mxu0 %v2763
        %2827 = vmatprep.subr.mxu0 0.0
        %2828 = vmatpush2.msra.mxu0 %v2794
        %2829 = vmatprep.subr.mxu0 0.0
        %2830 = vmatpush2.msra.mxu0 %v2793
        %2831 = vmatprep.subr.mxu0 0.0
        %2832 = vmatpush2.msra.mxu0 %v2792
        %2833 = vmatprep.subr.mxu0 0.0
        %2834 = vmatpush2.msra.mxu0 %v2791
        %2835 = vmatprep.subr.mxu0 0.0
        %2836 = vmatpush2.msra.mxu0 %v2790
        %2837 = vmatprep.subr.mxu0 0.0
        %2838 = vmatpush2.msra.mxu0 %v2789
        %2839 = vmatprep.subr.mxu0 0.0
        %2840 = vmatpush2.msra.mxu0 %v2788
        %2841 = vmatprep.subr.mxu0 0.0
        %2842 = vmatpush2.msra.mxu0 %v2787
        %2843 = vmatprep.subr.mxu0 0.0
        %2844 = vmatpush2.msra.mxu0 %v2786
        %2845 = vmatprep.subr.mxu0 0.0
        %2846 = vmatpush2.msra.mxu0 %v2785
        %2847 = vmatprep.subr.mxu0 0.0
        %2848 = vmatpush2.msra.mxu0 %v2784
        %2849 = vmatprep.subr.mxu0 0.0
        %2850 = vmatpush2.msra.mxu0 %v2783
        %2851 = vmatprep.subr.mxu0 0.0
        %2852 = vmatpush2.msra.mxu0 %v2782
        %2853 = vmatprep.subr.mxu0 0.0
        %2854 = vmatpush2.msra.mxu0 %v2781
        %2855 = vmatprep.subr.mxu0 0.0
        %2856 = vmatpush2.msra.mxu0 %v2780
        %2857 = vmatprep.subr.mxu0 0.0
        %2858 = vmatpush2.msra.mxu0 %v2779
        %2859 = vmatprep.mubr.f32.mxu0 %v2762
        %2860 = vmatmul.mubr.f32.gmra.mxu0 %v2761
        %v2861 = vpop.f32.mrf.mxu0
        %v2862 = vadd.f32 0.0, %v2861
        %v2863 = vpop.f32.mrf.mxu0
        %2864 = vmatprep.mubr.f32.mxu0 %v2721
        %2865 = vmatmul.mubr.f32.gmra.mxu0 %v2714
        %v2866 = vpop.f32.mrf.mxu0
        %v2867 = vadd.f32 0.0, %v2866
        %v2868 = vpop.f32.mrf.mxu0
        %2869 = vdwg.mxu0
        %2870 = vxpose.xlu0.b32.start [1/16] %v2862, 128
        %2871 = vxpose.xlu0.b32.cont [2/16] %v2867, 128
        %2872 = vxpose.xlu0.b32.cont [3/16] 0.0, 128
        %2873 = vxpose.xlu0.b32.cont [4/16] 0.0, 128
        %2874 = vxpose.xlu0.b32.cont [5/16] 0.0, 128
        %2875 = vxpose.xlu0.b32.cont [6/16] 0.0, 128
        %2876 = vxpose.xlu0.b32.cont [7/16] 0.0, 128
        %2877 = vxpose.xlu0.b32.cont [8/16] 0.0, 128
        %2878 = vxpose.xlu0.b32.cont [9/16] 0.0, 128
        %2879 = vxpose.xlu0.b32.cont [10/16] 0.0, 128
        %2880 = vxpose.xlu0.b32.cont [11/16] 0.0, 128
        %2881 = vxpose.xlu0.b32.cont [12/16] 0.0, 128
        %2882 = vxpose.xlu0.b32.cont [13/16] 0.0, 128
        %2883 = vxpose.xlu0.b32.cont [14/16] 0.0, 128
        %2884 = vxpose.xlu0.b32.cont [15/16] 0.0, 128
        %2885 = vxpose.xlu0.b32.end [16/16] 0.0, 128
        %v2886 = vpop.trf.xlu0
        %v2887 = vpop.trf.xlu0
        %v2888 = vpop.trf.xlu0
        %v2889 = vpop.trf.xlu0
        %v2890 = vpop.trf.xlu0
        %v2891 = vpop.trf.xlu0
        %v2892 = vpop.trf.xlu0
        %v2893 = vpop.trf.xlu0
        %v2894 = vpop.trf.xlu0
        %v2895 = vpop.trf.xlu0
        %v2896 = vpop.trf.xlu0
        %v2897 = vpop.trf.xlu0
        %v2898 = vpop.trf.xlu0
        %v2899 = vpop.trf.xlu0
        %v2900 = vpop.trf.xlu0
        %v2901 = vpop.trf.xlu0
        %v2902 = vadd.f32 %v2886, 1e-24
        %v2903 = vrsqrt.pop %v2902
        %v2904 = vmul.f32 %v2903, 9.899495
        %2906 = vset.pattern.permute.xlu0 0
        %2907 = vperm.xlu0 %2906, %v2904
        %v2908 = vpop.permute.xlu0 %2907
        %v2910 = vmul.f32 %v2886, %v2908
        %v2911 = vlaneseq
        %v2912 = vshrl.u32 %v2911, 7
        %v2913 = vsub.s32 0, %v2912
        %v2914 = vrot.slane %v2910, %v2913
        %s2916 = sor.u32 256, 1
        %2917 = vbcast.lane.b32.xlu0 %v2914, %s2916
        %v2918 = vpop.permute.xlu0 %2917
        %v2919 = vlaneseq
        %v2920 = vshrl.u32 %v2919, 7
        %v2921 = vsub.s32 1, %v2920
        %v2922 = vrot.slane %v2910, %v2921
        %s2924 = sor.u32 256, 1
        %2925 = vbcast.lane.b32.xlu0 %v2922, %s2924
        %v2926 = vpop.permute.xlu0 %2925
        %v2927 = vlaneseq
        %v2928 = vshrl.u32 %v2927, 7
        %v2929 = vsub.s32 2, %v2928
        %v2930 = vrot.slane %v2910, %v2929
        %s2932 = sor.u32 256, 1
        %2933 = vbcast.lane.b32.xlu0 %v2930, %s2932
        %v2934 = vpop.permute.xlu0 %2933
        %v2935 = vlaneseq
        %v2936 = vshrl.u32 %v2935, 7
        %v2937 = vsub.s32 3, %v2936
        %v2938 = vrot.slane %v2910, %v2937
        %s2940 = sor.u32 256, 1
        %2941 = vbcast.lane.b32.xlu0 %v2938, %s2940
        %v2942 = vpop.permute.xlu0 %2941
        %s2944 = sor.u32 256, 3
        %2945 = vbcast.lane.b32.xlu0 %v2914, %s2944
        %v2946 = vpop.permute.xlu0 %2945
        %s2948 = sor.u32 256, 3
        %2949 = vbcast.lane.b32.xlu0 %v2922, %s2948
        %v2950 = vpop.permute.xlu0 %2949
        %s2952 = sor.u32 256, 3
        %2953 = vbcast.lane.b32.xlu0 %v2930, %s2952
        %v2954 = vpop.permute.xlu0 %2953
        %s2956 = sor.u32 256, 3
        %2957 = vbcast.lane.b32.xlu0 %v2938, %s2956
        %v2958 = vpop.permute.xlu0 %2957
        %s2960 = sor.u32 256, 5
        %2961 = vbcast.lane.b32.xlu0 %v2914, %s2960
        %v2962 = vpop.permute.xlu0 %2961
        %s2964 = sor.u32 256, 5
        %2965 = vbcast.lane.b32.xlu0 %v2922, %s2964
        %v2966 = vpop.permute.xlu0 %2965
        %s2968 = sor.u32 256, 5
        %2969 = vbcast.lane.b32.xlu0 %v2930, %s2968
        %v2970 = vpop.permute.xlu0 %2969
        %s2972 = sor.u32 256, 5
        %2973 = vbcast.lane.b32.xlu0 %v2938, %s2972
        %v2974 = vpop.permute.xlu0 %2973
        %s2976 = sor.u32 256, 7
        %2977 = vbcast.lane.b32.xlu0 %v2914, %s2976
        %v2978 = vpop.permute.xlu0 %2977
        %s2980 = sor.u32 256, 7
        %2981 = vbcast.lane.b32.xlu0 %v2922, %s2980
        %v2982 = vpop.permute.xlu0 %2981
        %s2984 = sor.u32 256, 7
        %2985 = vbcast.lane.b32.xlu0 %v2930, %s2984
        %v2986 = vpop.permute.xlu0 %2985
        %s2988 = sor.u32 256, 7
        %2989 = vbcast.lane.b32.xlu0 %v2938, %s2988
        %v2990 = vpop.permute.xlu0 %2989
        %v2991 = vxor.u32 %v2918, 2147483648
        %v2992 = vxor.u32 %v2926, 2147483648
        %v2993 = vxor.u32 %v2934, 2147483648
        %v2994 = vxor.u32 %v2942, 2147483648
        %v2995 = vmul.f32 %v2991, 1.442695
        %v2996 = vpow.pop %v2995
        %v2997 = vmul.f32 %v2992, 1.442695
        %v2998 = vpow.pop %v2997
        %v2999 = vmul.f32 %v2993, 1.442695
        %v3000 = vpow.pop %v2999
        %v3001 = vmul.f32 %v2994, 1.442695
        %v3002 = vpow.pop %v3001
        %v3003 = vadd.f32 %v2996, 1.0
        %v3004 = vadd.f32 %v2998, 1.0
        %v3005 = vadd.f32 %v3000, 1.0
        %v3006 = vadd.f32 %v3002, 1.0
        %v3007 = vrcp.pop %v3003
        %v3008 = vmul.f32 1.0, %v3007
        %v3009 = vrcp.pop %v3004
        %v3010 = vmul.f32 1.0, %v3009
        %v3011 = vrcp.pop %v3005
        %v3012 = vmul.f32 1.0, %v3011
        %v3013 = vrcp.pop %v3006
        %v3014 = vmul.f32 1.0, %v3013
        %v3015 = vmul.f32 %v3008, 7.0
        %v3016 = vmul.f32 %v3010, 7.0
        %v3017 = vmul.f32 %v3012, 7.0
        %v3018 = vmul.f32 %v3014, 7.0
        %v3019 = vsub.f32 %v3015, 0.5
        %v3020 = vsub.f32 %v3016, 0.5
        %v3021 = vsub.f32 %v3017, 0.5
        %v3022 = vsub.f32 %v3018, 0.5
        %v3023 = vxor.u32 %v2946, 2147483648
        %v3024 = vxor.u32 %v2950, 2147483648
        %v3025 = vxor.u32 %v2954, 2147483648
        %v3026 = vxor.u32 %v2958, 2147483648
        %v3027 = vmul.f32 %v3023, 1.442695
        %v3028 = vpow.pop %v3027
        %v3029 = vmul.f32 %v3024, 1.442695
        %v3030 = vpow.pop %v3029
        %v3031 = vmul.f32 %v3025, 1.442695
        %v3032 = vpow.pop %v3031
        %v3033 = vmul.f32 %v3026, 1.442695
        %v3034 = vpow.pop %v3033
        %v3035 = vadd.f32 %v3028, 1.0
        %v3036 = vadd.f32 %v3030, 1.0
        %v3037 = vadd.f32 %v3032, 1.0
        %v3038 = vadd.f32 %v3034, 1.0
        %v3039 = vrcp.pop %v3035
        %v3040 = vmul.f32 1.0, %v3039
        %v3041 = vrcp.pop %v3036
        %v3042 = vmul.f32 1.0, %v3041
        %v3043 = vrcp.pop %v3037
        %v3044 = vmul.f32 1.0, %v3043
        %v3045 = vrcp.pop %v3038
        %v3046 = vmul.f32 1.0, %v3045
        %v3047 = vmul.f32 %v3040, 7.0
        %v3048 = vmul.f32 %v3042, 7.0
        %v3049 = vmul.f32 %v3044, 7.0
        %v3050 = vmul.f32 %v3046, 7.0
        %v3051 = vsub.f32 %v3047, 0.5
        %v3052 = vsub.f32 %v3048, 0.5
        %v3053 = vsub.f32 %v3049, 0.5
        %v3054 = vsub.f32 %v3050, 0.5
        %v3055 = vxor.u32 %v2962, 2147483648
        %v3056 = vxor.u32 %v2966, 2147483648
        %v3057 = vxor.u32 %v2970, 2147483648
        %v3058 = vxor.u32 %v2974, 2147483648
        %v3059 = vmul.f32 %v3055, 1.442695
        %v3060 = vpow.pop %v3059
        %v3061 = vmul.f32 %v3056, 1.442695
        %v3062 = vpow.pop %v3061
        %v3063 = vmul.f32 %v3057, 1.442695
        %v3064 = vpow.pop %v3063
        %v3065 = vmul.f32 %v3058, 1.442695
        %v3066 = vpow.pop %v3065
        %v3067 = vadd.f32 %v3060, 1.0
        %v3068 = vadd.f32 %v3062, 1.0
        %v3069 = vadd.f32 %v3064, 1.0
        %v3070 = vadd.f32 %v3066, 1.0
        %v3071 = vrcp.pop %v3067
        %v3072 = vmul.f32 1.0, %v3071
        %v3073 = vrcp.pop %v3068
        %v3074 = vmul.f32 1.0, %v3073
        %v3075 = vrcp.pop %v3069
        %v3076 = vmul.f32 1.0, %v3075
        %v3077 = vrcp.pop %v3070
        %v3078 = vmul.f32 1.0, %v3077
        %v3079 = vmul.f32 %v3072, 2.0
        %v3080 = vmul.f32 %v3074, 2.0
        %v3081 = vmul.f32 %v3076, 2.0
        %v3082 = vmul.f32 %v3078, 2.0
        %v3083 = vsub.f32 %v3079, 1.0
        %v3084 = vsub.f32 %v3080, 1.0
        %v3085 = vsub.f32 %v3081, 1.0
        %v3086 = vsub.f32 %v3082, 1.0
        %v3087 = vmul.f32 %v3083, 0.6931472
        %v3088 = vmul.f32 %v3084, 0.6931472
        %v3089 = vmul.f32 %v3085, 0.6931472
        %v3090 = vmul.f32 %v3086, 0.6931472
        %v3091 = vmul.f32 %v3087, 1.442695
        %v3092 = vpow.pop %v3091
        %v3093 = vmul.f32 %v3088, 1.442695
        %v3094 = vpow.pop %v3093
        %v3095 = vmul.f32 %v3089, 1.442695
        %v3096 = vpow.pop %v3095
        %v3097 = vmul.f32 %v3090, 1.442695
        %v3098 = vpow.pop %v3097
        %v3099 = vsub.f32 0.0, %v3087
        %v3100 = vsub.f32 0.0, %v3088
        %v3101 = vsub.f32 0.0, %v3089
        %v3102 = vsub.f32 0.0, %v3090
        %v3103 = vmul.f32 %v3099, 1.442695
        %v3104 = vpow.pop %v3103
        %v3105 = vmul.f32 %v3100, 1.442695
        %v3106 = vpow.pop %v3105
        %v3107 = vmul.f32 %v3101, 1.442695
        %v3108 = vpow.pop %v3107
        %v3109 = vmul.f32 %v3102, 1.442695
        %v3110 = vpow.pop %v3109
        %v3111 = vxor.u32 %v2978, 2147483648
        %v3112 = vxor.u32 %v2982, 2147483648
        %v3113 = vxor.u32 %v2986, 2147483648
        %v3114 = vxor.u32 %v2990, 2147483648
        %v3115 = vmul.f32 %v3111, 1.442695
        %v3116 = vpow.pop %v3115
        %v3117 = vmul.f32 %v3112, 1.442695
        %v3118 = vpow.pop %v3117
        %v3119 = vmul.f32 %v3113, 1.442695
        %v3120 = vpow.pop %v3119
        %v3121 = vmul.f32 %v3114, 1.442695
        %v3122 = vpow.pop %v3121
        %v3123 = vadd.f32 %v3116, 1.0
        %v3124 = vadd.f32 %v3118, 1.0
        %v3125 = vadd.f32 %v3120, 1.0
        %v3126 = vadd.f32 %v3122, 1.0
        %v3127 = vrcp.pop %v3123
        %v3128 = vmul.f32 1.0, %v3127
        %v3129 = vrcp.pop %v3124
        %v3130 = vmul.f32 1.0, %v3129
        %v3131 = vrcp.pop %v3125
        %v3132 = vmul.f32 1.0, %v3131
        %v3133 = vrcp.pop %v3126
        %v3134 = vmul.f32 1.0, %v3133
        %v3135 = vmul.f32 %v3128, 1.8
        %v3136 = vmul.f32 %v3130, 1.8
        %v3137 = vmul.f32 %v3132, 1.8
        %v3138 = vmul.f32 %v3134, 1.8
        %v3139 = vsub.f32 %v3135, 0.9
        %v3140 = vsub.f32 %v3136, 0.9
        %v3141 = vsub.f32 %v3137, 0.9
        %v3142 = vsub.f32 %v3138, 0.9
        %v3143 = vmul.f32 %v3139, %v3139
        %v3144 = vmul.f32 %v3140, %v3140
        %v3145 = vmul.f32 %v3141, %v3141
        %v3146 = vmul.f32 %v3142, %v3142
        %v3147 = vsub.f32 1.0, %v3143
        %v3148 = vsub.f32 1.0, %v3144
        %v3149 = vsub.f32 1.0, %v3145
        %v3150 = vsub.f32 1.0, %v3146
        %v3151 = vrcp.pop %v3147
        %v3152 = vmul.f32 -0.010204081, %v3151
        %v3153 = vrcp.pop %v3148
        %v3154 = vmul.f32 -0.010204081, %v3153
        %v3155 = vrcp.pop %v3149
        %v3156 = vmul.f32 -0.010204081, %v3155
        %v3157 = vrcp.pop %v3150
        %v3158 = vmul.f32 -0.010204081, %v3157
        %v3159 = vcvt.s32.f32 %v1833
        %v3160 = vrcp.pop 7.0
        %v3161 = vmul.f32 %v3159, %v3160
        %v3162 = vfloor.f32 %v3161
        %v3163 = vmul.f32 %v3162, 7.0
        %v3164 = vsub.f32 %v3159, %v3163
        %vm3165 = vcmp.lt.f32.partialorder %v3159, 49.0
        %v3166 = vsel %vm3165, 1, 0
        %v3167 = vcvt.s32.f32 %v3166
        %v3168 = vsub.f32 %v3019, %v3162
        %v3169 = vsub.f32 %v3020, %v3162
        %v3170 = vsub.f32 %v3021, %v3162
        %v3171 = vsub.f32 %v3022, %v3162
        %v3172 = vsub.f32 %v3051, %v3164
        %v3173 = vsub.f32 %v3052, %v3164
        %v3174 = vsub.f32 %v3053, %v3164
        %v3175 = vsub.f32 %v3054, %v3164
        %v3176 = vmul.f32 %v3168, %v3168
        %v3177 = vmul.f32 %v3169, %v3169
        %v3178 = vmul.f32 %v3170, %v3170
        %v3179 = vmul.f32 %v3171, %v3171
        %v3180 = vmul.f32 %v3176, %v3092
        %v3181 = vmul.f32 %v3177, %v3094
        %v3182 = vmul.f32 %v3178, %v3096
        %v3183 = vmul.f32 %v3179, %v3098
        %v3184 = vmul.f32 %v3172, %v3172
        %v3185 = vmul.f32 %v3173, %v3173
        %v3186 = vmul.f32 %v3174, %v3174
        %v3187 = vmul.f32 %v3175, %v3175
        %v3188 = vmul.f32 %v3184, %v3104
        %v3189 = vmul.f32 %v3185, %v3106
        %v3190 = vmul.f32 %v3186, %v3108
        %v3191 = vmul.f32 %v3187, %v3110
        %v3192 = vadd.f32 %v3180, %v3188
        %v3193 = vadd.f32 %v3181, %v3189
        %v3194 = vadd.f32 %v3182, %v3190
        %v3195 = vadd.f32 %v3183, %v3191
        %v3196 = vmul.f32 %v3139, 2.0
        %v3197 = vmul.f32 %v3140, 2.0
        %v3198 = vmul.f32 %v3141, 2.0
        %v3199 = vmul.f32 %v3142, 2.0
        %v3200 = vmul.f32 %v3196, %v3168
        %v3201 = vmul.f32 %v3197, %v3169
        %v3202 = vmul.f32 %v3198, %v3170
        %v3203 = vmul.f32 %v3199, %v3171
        %v3204 = vmul.f32 %v3200, %v3172
        %v3205 = vmul.f32 %v3201, %v3173
        %v3206 = vmul.f32 %v3202, %v3174
        %v3207 = vmul.f32 %v3203, %v3175
        %v3208 = vsub.f32 %v3192, %v3204
        %v3209 = vsub.f32 %v3193, %v3205
        %v3210 = vsub.f32 %v3194, %v3206
        %v3211 = vsub.f32 %v3195, %v3207
        %v3212 = vmul.f32 %v3152, %v3208
        %v3213 = vmul.f32 %v3154, %v3209
        %v3214 = vmul.f32 %v3156, %v3210
        %v3215 = vmul.f32 %v3158, %v3211
        %v3216 = vmul.f32 %v3212, 1.442695
        %v3217 = vpow.pop %v3216
        %v3218 = vmul.f32 %v3213, 1.442695
        %v3219 = vpow.pop %v3218
        %v3220 = vmul.f32 %v3214, 1.442695
        %v3221 = vpow.pop %v3220
        %v3222 = vmul.f32 %v3215, 1.442695
        %v3223 = vpow.pop %v3222
        %v3224 = vadd.f32 %v3217, 1e-12
        %v3225 = vadd.f32 %v3219, 1e-12
        %v3226 = vadd.f32 %v3221, 1e-12
        %v3227 = vadd.f32 %v3223, 1e-12
        %v3228 = vmul.f32 %v3224, %v3167
        %v3229 = vmul.f32 %v3225, %v3167
        %v3230 = vmul.f32 %v3226, %v3167
        %v3231 = vmul.f32 %v3227, %v3167
        %vm3232 = vcmask 517120
        %v3233 = vsel %vm3232, %v3228, 0.0
        %3234 = vadd.xlane.f32.xlu0 %v3233
        %v3235 = vpop.xlane.xlu0 %3234
        %v3236 = vsel %vm3232, %v3229, 0.0
        %3237 = vadd.xlane.f32.xlu0 %v3236
        %v3238 = vpop.xlane.xlu0 %3237
        %v3239 = vsel %vm3232, %v3230, 0.0
        %3240 = vadd.xlane.f32.xlu0 %v3239
        %v3241 = vpop.xlane.xlu0 %3240
        %v3242 = vsel %vm3232, %v3231, 0.0
        %3243 = vadd.xlane.f32.xlu0 %v3242
        %v3244 = vpop.xlane.xlu0 %3243
        %v3245 = vrcp.pop %v3235
        %v3246 = vrcp.pop %v3238
        %v3247 = vrcp.pop %v3241
        %v3248 = vrcp.pop %v3244
        %v3249 = vmul.f32 %v3228, %v3245
        %v3250 = vmul.f32 %v3229, %v3246
        %v3251 = vmul.f32 %v3230, %v3247
        %v3252 = vmul.f32 %v3231, %v3248
        %3253 = vst.msk [vmem:[%s586] sm:$0x3] %vm3232, %v3249
        %3254 = vst.msk [vmem:[%s586 + $0x2] sm:$0x3] %vm3232, %v3250
        %3255 = vst.msk [vmem:[%s586 + $0x4] sm:$0x3] %vm3232, %v3251
        %3256 = vst.msk [vmem:[%s586 + $0x6] sm:$0x3] %vm3232, %v3252
        %s3257 = sand.u32 %s359, 1
        %s3258 = scalar_lea.sflag [#allocation5], %s3257
        %s3259 = sand.u32 %s359, 1
        %s3260 = smul.addr %s3259, 8
        %s3261 = scalar_lea.vmem [#allocation9], %s3260
        // Predicated region
        $region116: #{tpu_custom_call.1} parent=98 // pred_check
          %p3262 = pneg %p369
        $region117: #{tpu_custom_call.1} parent=98 // pred_check_branch
          %3264 = sbr.rel (%p3262) target = $region119
        $region118: #{tpu_custom_call.1} parent=98 // pred_region
          %s3265 = smul.u32 4, %s31
          %s3267 = ssub.s32 128, 128
          %3268 = vsyncadd %s3258, %s3267
          %s3269 = smul.addr %s3265, 32
          %s3270 = scalar_lea.hbm %s15, %s3269
          %s3271 = sshll.u32 %s3261, 4
          %s3272 = int_to_ptr.vmem [resolvable:$true] %s3271
          %3277 = dma.vmem_to_hbm [thread:$0]  %s3272, 128, %s3270, %s3258, 32, 32, 2
        $region119: #{tpu_custom_call.1} parent=98 // pred_fallthru
          _
      $region99: #{tpu_custom_call.1} parent=5 // pred_fallthru
        _
      %p3278 = scmp.le.s32.totalorder 2, %s26
      // Predicated region
      $region120: #{tpu_custom_call.1} parent=5 // pred_check
        %p3279 = pneg %p3278
      $region121: #{tpu_custom_call.1} parent=5 // pred_check_branch
        %3281 = sbr.rel (%p3279) target = $region123
      $region122: #{tpu_custom_call.1} parent=5 // pred_region
        %s3282 = ssub.s32 %s26, 2
        // Predicated region
        $region124: #{tpu_custom_call.1} parent=122 // pred_check
          %p3283 = pneg %p375
        $region125: #{tpu_custom_call.1} parent=122 // pred_check_branch
          %3285 = sbr.rel (%p3283) target = $region127
        $region126: #{tpu_custom_call.1} parent=122 // pred_region
          %s3286 = sand.u32 %s360, 1
          %s3287 = scalar_lea.sflag [#allocation5], %s3286
          %s3288 = sand.u32 %s360, 1
          %s3289 = smul.addr %s3288, 8
          %s3290 = scalar_lea.vmem [#allocation9], %s3289
          %3291 = dma.done %s3287, 128
        $region127: #{tpu_custom_call.1} parent=122 // pred_fallthru
          _
      $region123: #{tpu_custom_call.1} parent=5 // pred_fallthru
        _
    $region6: #{tpu_custom_call.1} parent=1 // loop_footer
      %s30 = sadd.s32 1, %s26
    $region7: #{tpu_custom_call.1} parent=1 // loop_footer_branch
      %25 = sbr.rel target = $region3
    $region8: #{tpu_custom_call.1} parent=1 // loop_exit
      _
    %3292 = vsyncpa [#allocation4], 1
    %s3293 = scalar_lea.sflag [#allocation4], 1
    %3294 = vsyncpa %s3293, 1
    %3295 = vsyncpa [#allocation7], 1
    %3296 = vsyncpa [#allocation5], 1
    %s3297 = scalar_lea.sflag [#allocation5], 1
    %3298 = vsyncpa %s3297, 1

</llo_original>
